<compile_context>
chip_gen: v7x
topology: tpu7x:2x2x1
jax: 0.10.0
libtpu: 0.0.40
codegen_flags: <defaults>
</compile_context>

<pallas_src>
import functools

import numpy as np
import jax
import jax.numpy as jnp
from jax import lax
from jax.experimental import pallas as pl
from jax.experimental.pallas import tpu as pltpu


def _round_up(x, m):
    return ((x + m - 1) // m) * m


def _vmem_limit_bytes():
    """Budget-aware scoped-VMEM cap: ~100 MiB on 128-MiB chips (v5e/v6e), ~56 MiB on v7x."""
    cap = 64 * 1024 * 1024                       # conservative fallback (v7x physical VMEM)
    try:
        cap = int(pltpu.get_tpu_info().vmem_capacity_bytes)
    except Exception:
        pass
    return int(min(cap - 8 * 1024 * 1024, 100 * 1024 * 1024))


# --------------------------------------------------------------------------------------
# GRU cell step (h-dependent part only; gi already contains W_ih x + b_ih + b_hh[r,z]).
# bhh_n arrives pre-broadcast to (b_tile, Hp).  PyTorch gate order [r, z, n].
# --------------------------------------------------------------------------------------
def _gru_step(gi, h, whh, bhh_n, Hp):
    gh = jnp.dot(h, whh, preferred_element_type=jnp.float32)          # (B, 3Hp)
    r = jax.nn.sigmoid(gi[:, 0 * Hp:1 * Hp] + gh[:, 0 * Hp:1 * Hp])
    z = jax.nn.sigmoid(gi[:, 1 * Hp:2 * Hp] + gh[:, 1 * Hp:2 * Hp])
    n = jnp.tanh(gi[:, 2 * Hp:3 * Hp] + r * (gh[:, 2 * Hp:3 * Hp] + bhh_n))
    return (1.0 - z) * n + z * h


# --------------------------------------------------------------------------------------
# Chunked GRU recurrence kernel (intermediate layers): emits the hidden sequence.
# grid = (batch_tiles, seq_chunks); hidden state persists in VMEM scratch across chunks.
# --------------------------------------------------------------------------------------
def _gru_chunk_kernel(seq_len, t_chunk, has_pad, unroll,
                      h0_ref, gi_ref, whh_ref, bhhn_ref,
                      out_ref, hT_ref, h_scr):
    c = pl.program_id(1)
    b_tile, Hp = h_scr.shape

    @pl.when(c == 0)
    def _():
        h_scr[...] = h0_ref[...].astype(jnp.float32)

    whh = whh_ref[...]                                             # straight to MXU
    bhh_n = jnp.broadcast_to(bhhn_ref[...].astype(jnp.float32), (b_tile, Hp))
    t0 = c * t_chunk

    def step(i, h):
        gi = gi_ref[i].astype(jnp.float32)                         # (b_tile, 3Hp)
        h_new = _gru_step(gi, h, whh, bhh_n, Hp)
        if has_pad:                                                # static flag
            h_new = jnp.where(t0 + i < seq_len, h_new, h)
        out_ref[i] = h_new.astype(out_ref.dtype)
        return h_new

    h_fin = lax.fori_loop(0, t_chunk, step, h_scr[...], unroll=unroll)
    h_scr[...] = h_fin

    @pl.when(c == pl.num_programs(1) - 1)
    def _():
        hT_ref[...] = h_fin.astype(hT_ref.dtype)


# --------------------------------------------------------------------------------------
# Chunked GRU + fused output projection (last layer).  The chunk's hidden states are
# buffered in VMEM and projected with ONE (t_chunk*b_tile, Hp) @ (Hp, Np) matmul that sits
# off the serial h-dependency chain.
# --------------------------------------------------------------------------------------
def _gru_chunk_fused_kernel(seq_len, t_chunk, has_pad, unroll,
                            h0_ref, gi_ref, whh_ref, bhhn_ref, w2_ref, b2_ref,
                            out_ref, hT_ref, h_scr, hs_scr):
    c = pl.program_id(1)
    b_tile, Hp = h_scr.shape
    Np = out_ref.shape[-1]

    @pl.when(c == 0)
    def _():
        h_scr[...] = h0_ref[...].astype(jnp.float32)

    whh = whh_ref[...]
    bhh_n = jnp.broadcast_to(bhhn_ref[...].astype(jnp.float32), (b_tile, Hp))
    t0 = c * t_chunk

    def step(i, h):
        gi = gi_ref[i].astype(jnp.float32)
        h_new = _gru_step(gi, h, whh, bhh_n, Hp)
        if has_pad:
            h_new = jnp.where(t0 + i < seq_len, h_new, h)
        hs_scr[i] = h_new                                          # off-chain store
        return h_new

    h_fin = lax.fori_loop(0, t_chunk, step, h_scr[...], unroll=unroll)
    h_scr[...] = h_fin

    # TODO(synk): self.drop (dropout before densor2) and nn.GRU inter-layer dropout are
    #             identity in eval mode; training-mode dropout masks are not implemented.
    hs = hs_scr[...].reshape(t_chunk * b_tile, Hp)                 # layout-free merge (b_tile % 8 == 0)
    proj = jnp.dot(hs, w2_ref[...], preferred_element_type=jnp.float32)
    proj = proj + jnp.broadcast_to(b2_ref[...].astype(jnp.float32),
                                   (t_chunk * b_tile, Np))
    out_ref[...] = proj.reshape(t_chunk, b_tile, Np).astype(out_ref.dtype)

    @pl.when(c == pl.num_programs(1) - 1)
    def _():
        hT_ref[...] = h_fin.astype(hT_ref.dtype)


def gru_layer(gi, h0, whh_t, bhh_n, *, t_chunk, seq_len, has_pad, b_tile, unroll,
              w2_t=None, b2=None):
    """Run one (padded) GRU layer.

    gi:  (seq_pad, B_p, 3Hp) precomputed input projection (time-major, padded).
    h0:  (B_p, Hp) initial hidden.
    Returns (out, hT):
        out = (seq_pad, B_p, Hp)  hidden sequence               if w2_t is None
            = (seq_pad, B_p, Np)  fused output h @ W2^T + b2    otherwise
        hT  = (B_p, Hp) final hidden state.
    """
    seq_pad, B_p, threeHp = gi.shape
    Hp = h0.shape[1]
    n_chunks = seq_pad // t_chunk
    n_btiles = B_p // b_tile
    fused = w2_t is not None
    out_feat = w2_t.shape[1] if fused else Hp

    scratch = [pltpu.VMEM((b_tile, Hp), jnp.float32)]              # resident hidden state
    if fused:
        kernel = functools.partial(_gru_chunk_fused_kernel, seq_len, t_chunk, has_pad, unroll)
        extra_in = (w2_t, b2)
        extra_specs = [pl.BlockSpec((Hp, out_feat), lambda b, c: (0, 0)),   # W2^T
                       pl.BlockSpec((1, out_feat), lambda b, c: (0, 0))]    # b2
        scratch.append(pltpu.VMEM((t_chunk, b_tile, Hp), jnp.float32))      # chunk h buffer
    else:
        kernel = functools.partial(_gru_chunk_kernel, seq_len, t_chunk, has_pad, unroll)
        extra_in = ()
        extra_specs = []

    out, hT = pl.pallas_call(
        kernel,
        out_shape=(jax.ShapeDtypeStruct((seq_pad, B_p, out_feat), jnp.float32),
                   jax.ShapeDtypeStruct((B_p, Hp), jnp.float32)),
        grid_spec=pltpu.PrefetchScalarGridSpec(
            num_scalar_prefetch=0,
            grid=(n_btiles, n_chunks),
            in_specs=[
                pl.BlockSpec((b_tile, Hp), lambda b, c: (b, 0)),                  # h0
                pl.BlockSpec((t_chunk, b_tile, threeHp), lambda b, c: (c, b, 0)), # gi chunk
                pl.BlockSpec((Hp, threeHp), lambda b, c: (0, 0)),                 # W_hh^T
                pl.BlockSpec((1, Hp), lambda b, c: (0, 0)),                       # b_hh[n]
            ] + extra_specs,
            out_specs=[
                pl.BlockSpec((t_chunk, b_tile, out_feat), lambda b, c: (c, b, 0)),
                pl.BlockSpec((b_tile, Hp), lambda b, c: (b, 0)),
            ],
            scratch_shapes=scratch,
        ),
        compiler_params=pltpu.CompilerParams(
            dimension_semantics=("parallel", "arbitrary"),
            vmem_limit_bytes=_vmem_limit_bytes(),
        ),
    )(h0, gi, whh_t, bhh_n, *extra_in)
    return out, hT


# --------------------------------------------------------------------------------------
# Parameter init (PyTorch layout) and packing into padded/transposed kernel layout.
# --------------------------------------------------------------------------------------
def init_params(key, ninp, nhid, nlayers, nout):
    """GRU: U(-1/sqrt(nhid), 1/sqrt(nhid)); densor2: weight U(-0.1, 0.1), bias = 0."""
    params = {"gru": []}
    stdv = 1.0 / np.sqrt(nhid)
    keys = jax.random.split(key, nlayers * 4 + 1)
    for l in range(nlayers):
        in_size = ninp if l == 0 else nhid
        k0, k1, k2, k3 = keys[4 * l:4 * l + 4]
        params["gru"].append({
            "wih": jax.random.uniform(k0, (3 * nhid, in_size), jnp.float32, -stdv, stdv),
            "whh": jax.random.uniform(k1, (3 * nhid, nhid), jnp.float32, -stdv, stdv),
            "bih": jax.random.uniform(k2, (3 * nhid,), jnp.float32, -stdv, stdv),
            "bhh": jax.random.uniform(k3, (3 * nhid,), jnp.float32, -stdv, stdv),
        })
    params["w2"] = jax.random.uniform(keys[-1], (nout, nhid), jnp.float32, -0.1, 0.1)
    params["b2"] = jnp.zeros((nout,), jnp.float32)
    return params


def pack_params(params, ninp, nhid, nout, t_chunk=32):
    """Pad nhid -> Hp (x128), nout -> Np (x128), transpose weights, fold b_hh[r,z] into
    the hoisted input-projection bias (b_hh[n] stays separate: it sits inside r * (...))."""
    H = nhid
    Hp = _round_up(H, 128)
    Np = _round_up(nout, 128)

    def pad_gates_mat(w):                       # (3H, K) -> (3Hp, K), per-gate padding
        K = w.shape[1]
        w3 = jnp.pad(w.reshape(3, H, K), ((0, 0), (0, Hp - H), (0, 0)))
        return w3.reshape(3 * Hp, K)

    def pad_gates_vec(b):                       # (3H,) -> (3Hp,)
        return jnp.pad(b.reshape(3, H), ((0, 0), (0, Hp - H))).reshape(3 * Hp)

    layers = []
    for l, p in enumerate(params["gru"]):
        K_in = p["wih"].shape[1]
        K_pad = K_in if l == 0 else Hp          # layers > 0 take the padded hidden as input
        wih_p = jnp.pad(pad_gates_mat(p["wih"]), ((0, 0), (0, K_pad - K_in)))
        whh_p = jnp.pad(pad_gates_mat(p["whh"]), ((0, 0), (0, Hp - H)))
        bih_p = pad_gates_vec(p["bih"])
        bhh_p = pad_gates_vec(p["bhh"])
        bias_folded = bih_p.at[:2 * Hp].add(bhh_p[:2 * Hp])
        layers.append({
            "wih_t": wih_p.T,                               # (K_pad, 3Hp)
            "whh_t": whh_p.T,                               # (Hp, 3Hp)
            "bias_folded": bias_folded.reshape(1, 3 * Hp),  # b_ih + b_hh[r,z]
            "bhh_n": bhh_p[2 * Hp:].reshape(1, Hp),         # b_hh[n]
        })

    w2_p = jnp.pad(params["w2"], ((0, Np - nout), (0, Hp - H)))
    b2_p = jnp.pad(params["b2"], (0, Np - nout))
    return {"layers": layers, "w2_t": w2_p.T, "b2": b2_p.reshape(1, Np),
            "nhid": H, "Hp": Hp, "nout": nout, "Np": Np, "ninp": ninp,
            "t_chunk": t_chunk}


# --------------------------------------------------------------------------------------
# Forward wrapper (mirrors RecoGRU_flux.forward; eval-mode dropout = identity).
# --------------------------------------------------------------------------------------
def reco_gru_flux_forward(packed, inputs, hidden, *, b_tile=None):
    """inputs: (batch, seq, ninp); hidden: (nlayers, batch, nhid).
    Returns (output, hidden_out): output (batch, seq, nout), hidden_out (nlayers, batch, nhid)."""
    batch, seq, _ = inputs.shape
    nlayers = hidden.shape[0]
    H, Hp, nout = packed["nhid"], packed["Hp"], packed["nout"]

    # Batch tiling: one big tile on single-TC chips (best MXU M-util, fewest grid steps).
    # TODO(synk): on v7x (2 TCs) prefer b_tile = B_p // 2 when B_p >= 128 so both cores work.
    B_p = _round_up(batch, 8)
    if b_tile is None:
        b_tile = B_p if B_p <= 128 else 128
    B_p = _round_up(B_p, b_tile)

    # Time chunking: pick t_chunk so padding is minimal (usually zero -> mask compiled out).
    target = max(1, min(packed["t_chunk"], seq))
    n_chunks = -(-seq // target)
    t_chunk = -(-seq // n_chunks)
    seq_pad = t_chunk * n_chunks
    has_pad = seq_pad != seq
    unroll = max(1, min(t_chunk, 8))            # partial unroll: limits vreg pressure at big Hp

    # time-major + tile padding (pad x BEFORE the hoisted gi matmul: 3x+ smaller copy)
    x = jnp.transpose(inputs, (1, 0, 2)).astype(jnp.float32)         # (seq, batch, ninp)
    x = jnp.pad(x, ((0, seq_pad - seq), (0, B_p - batch), (0, 0)))   # (seq_pad, B_p, ninp)
    h0_all = jnp.pad(hidden.astype(jnp.float32),
                     ((0, 0), (0, B_p - batch), (0, Hp - H)))        # (L, B_p, Hp)

    new_h = []
    final_out = None
    for l, layer in enumerate(packed["layers"]):
        # Hoisted input projection for ALL timesteps (one well-shaped XLA matmul).
        gi = x @ layer["wih_t"] + layer["bias_folded"]               # (seq_pad, B_p, 3Hp)
        is_last = (l == nlayers - 1)
        out, hT = gru_layer(
            gi, h0_all[l], layer["whh_t"], layer["bhh_n"],
            t_chunk=t_chunk, seq_len=seq, has_pad=has_pad,
            b_tile=b_tile, unroll=unroll,
            w2_t=packed["w2_t"] if is_last else None,
            b2=packed["b2"] if is_last else None)
        new_h.append(hT[:batch, :H])
        if is_last:
            final_out = out                                          # (seq_pad, B_p, Np)
        else:
            x = out                                                  # (seq_pad, B_p, Hp)

    out = final_out[:seq, :batch, :nout]
    output = jnp.transpose(out, (1, 0, 2))                           # back to batch_first
    return output, jnp.stack(new_h, axis=0)


# --------------------------------------------------------------------------------------
# Pure-JAX reference (unpadded, per-step math) for correctness checking.
# --------------------------------------------------------------------------------------
def _gru_layer_ref(x_tbi, h0, wih, whh, bih, bhh):
    H = h0.shape[1]

    def step(h, xt):
        gi = xt @ wih.T + bih
        gh = h @ whh.T + bhh
        r = jax.nn.sigmoid(gi[:, :H] + gh[:, :H])
        z = jax.nn.sigmoid(gi[:, H:2 * H] + gh[:, H:2 * H])
        n = jnp.tanh(gi[:, 2 * H:] + r * gh[:, 2 * H:])
        hn = (1.0 - z) * n + z * h
        return hn, hn

    hT, ys = lax.scan(step, h0, x_tbi)
    return ys, hT


def forward_ref(params, inputs, hidden):
    x = jnp.transpose(inputs, (1, 0, 2))
    new_h = []
    for l, p in enumerate(params["gru"]):
        x, hT = _gru_layer_ref(x, hidden[l], p["wih"], p["whh"], p["bih"], p["bhh"])
        new_h.append(hT)
    out = x @ params["w2"].T + params["b2"]
    return jnp.transpose(out, (1, 0, 2)), jnp.stack(new_h, axis=0)


if __name__ == "__main__":
    ninp, nhid, nlayers, nout = 4, 32, 2, 3
    batch, seq = 2, 8

    key = jax.random.PRNGKey(0)
    kp, kx = jax.random.split(key)
    params = init_params(kp, ninp, nhid, nlayers, nout)
    packed = pack_params(params, ninp, nhid, nout, t_chunk=32)

    inputs = jax.random.normal(kx, (batch, seq, ninp), jnp.float32)
    hidden = jnp.zeros((nlayers, batch, nhid), jnp.float32)   # == init_hidden(batch)

    fwd = jax.jit(functools.partial(reco_gru_flux_forward, packed))
    out, h_new = fwd(inputs, hidden)
    jax.block_until_ready((out, h_new))

    ref_out, ref_h = forward_ref(params, inputs, hidden)
    assert out.shape == (batch, seq, nout)
    assert h_new.shape == (nlayers, batch, nhid)
    np.testing.assert_allclose(np.asarray(out), np.asarray(ref_out), rtol=1e-5, atol=1e-5)
    np.testing.assert_allclose(np.asarray(h_new), np.asarray(ref_h), rtol=1e-5, atol=1e-5)

    print("KERNEL_OK")
</pallas_src>

<mosaic_0001>
module attributes {stable_mosaic.version = 11 : i64} {
  func.func @_gru_chunk_kernel(%arg0: i32, %arg1: i32, %arg2: memref<8x128xf32, #tpu.memory_space<vmem>>, %arg3: memref<8x8x384xf32, #tpu.memory_space<vmem>>, %arg4: memref<128x384xf32, #tpu.memory_space<vmem>>, %arg5: memref<1x128xf32, #tpu.memory_space<vmem>>, %arg6: memref<8x8x128xf32, #tpu.memory_space<vmem>>, %arg7: memref<8x128xf32, #tpu.memory_space<vmem>>, %arg8: memref<8x128xf32, #tpu.memory_space<vmem>>) attributes {dimension_semantics = [#tpu.dimension_semantics<parallel>, #tpu.dimension_semantics<arbitrary>], iteration_bounds = array<i64: 1, 1>, scalar_prefetch = 0 : i64, scratch_operands = 1 : i64, tpu.core_type = #tpu.core_type<tc>, window_params = [{transform_indices = @transform_0, window_bounds = array<i64: 8, 128>}, {transform_indices = @transform_1, window_bounds = array<i64: 8, 8, 384>}, {pipeline_mode = #tpu.pipeline_mode<synchronous>, transform_indices = @transform_2, window_bounds = array<i64: 128, 384>}, {pipeline_mode = #tpu.pipeline_mode<synchronous>, transform_indices = @transform_3, window_bounds = array<i64: 1, 128>}, {transform_indices = @transform_4, window_bounds = array<i64: 8, 8, 128>}, {transform_indices = @transform_5, window_bounds = array<i64: 8, 128>}]} {
    %c0_i32 = arith.constant 0 : i32
    %0 = arith.cmpi eq, %arg1, %c0_i32 : i32
    %1 = arith.extui %0 : i1 to i32
    %c0_i32_0 = arith.constant 0 : i32
    %2 = arith.cmpi ne, %1, %c0_i32_0 : i32
    scf.if %2 {
      %c0_74 = arith.constant 0 : index
      %c0_75 = arith.constant 0 : index
      %292 = vector.load %arg2[%c0_74, %c0_75] : memref<8x128xf32, #tpu.memory_space<vmem>>, vector<8x128xf32>
      %c0_76 = arith.constant 0 : index
      %c0_77 = arith.constant 0 : index
      %293 = vector.load %arg8[%c0_76, %c0_77] : memref<8x128xf32, #tpu.memory_space<vmem>>, vector<8x128xf32>
      tpu.vector_store %arg8[%c0_76, %c0_77], %292 {strides = array<i32>} : memref<8x128xf32, #tpu.memory_space<vmem>>, vector<8x128xf32>,
    } else {
    }
    %c0 = arith.constant 0 : index
    %c0_1 = arith.constant 0 : index
    %3 = vector.load %arg4[%c0, %c0_1] : memref<128x384xf32, #tpu.memory_space<vmem>>, vector<128x384xf32>
    %c0_2 = arith.constant 0 : index
    %c0_3 = arith.constant 0 : index
    %4 = vector.load %arg5[%c0_2, %c0_3] : memref<1x128xf32, #tpu.memory_space<vmem>>, vector<1x128xf32>
    %5 = vector.shape_cast %4 : vector<1x128xf32> to vector<1x128xf32>
    %6 = vector.broadcast %5 : vector<1x128xf32> to vector<8x128xf32>
    %c0_4 = arith.constant 0 : index
    %c0_5 = arith.constant 0 : index
    %7 = vector.load %arg8[%c0_4, %c0_5] : memref<8x128xf32, #tpu.memory_space<vmem>>, vector<8x128xf32>
    %c0_i32_6 = arith.constant 0 : i32
    %8 = arith.index_cast %c0_i32_6 : i32 to index
    %c0_7 = arith.constant 0 : index
    %c0_8 = arith.constant 0 : index
    %9 = vector.load %arg3[%8, %c0_7, %c0_8] : memref<8x8x384xf32, #tpu.memory_space<vmem>>, vector<1x8x384xf32>
    %10 = vector.shape_cast %9 : vector<1x8x384xf32> to vector<8x384xf32>
    %cst = arith.constant dense<0.000000e+00> : vector<8x384xf32>
    %11 = tpu.matmul %7, %3, %cst {dimension_numbers = #tpu.dot_dimension_numbers<[1], [0], [0], [1], [0, 0, 1, 1], [], []>} : vector<8x128xf32>, vector<128x384xf32>, vector<8x384xf32> -> vector<8x384xf32>
    %12 = vector.extract_strided_slice %10 {offsets = [0, 0], sizes = [8, 128], strides = [1, 1]} : vector<8x384xf32> to vector<8x128xf32>
    %13 = vector.extract_strided_slice %11 {offsets = [0, 0], sizes = [8, 128], strides = [1, 1]} : vector<8x384xf32> to vector<8x128xf32>
    %14 = arith.addf %12, %13 : vector<8x128xf32>
    %15 = arith.negf %14 : vector<8x128xf32>
    %16 = math.exp %15 : vector<8x128xf32>
    %cst_9 = arith.constant 1.000000e+00 : f32
    %17 = vector.broadcast %cst_9 : f32 to vector<8x128xf32>
    %18 = arith.addf %17, %16 : vector<8x128xf32>
    %19 = arith.divf %17, %18 : vector<8x128xf32>
    %20 = vector.extract_strided_slice %10 {offsets = [0, 128], sizes = [8, 128], strides = [1, 1]} : vector<8x384xf32> to vector<8x128xf32>
    %21 = vector.extract_strided_slice %11 {offsets = [0, 128], sizes = [8, 128], strides = [1, 1]} : vector<8x384xf32> to vector<8x128xf32>
    %22 = arith.addf %20, %21 : vector<8x128xf32>
    %23 = arith.negf %22 : vector<8x128xf32>
    %24 = math.exp %23 : vector<8x128xf32>
    %cst_10 = arith.constant 1.000000e+00 : f32
    %25 = vector.broadcast %cst_10 : f32 to vector<8x128xf32>
    %26 = arith.addf %25, %24 : vector<8x128xf32>
    %27 = arith.divf %25, %26 : vector<8x128xf32>
    %28 = vector.extract_strided_slice %10 {offsets = [0, 256], sizes = [8, 128], strides = [1, 1]} : vector<8x384xf32> to vector<8x128xf32>
    %29 = vector.extract_strided_slice %11 {offsets = [0, 256], sizes = [8, 128], strides = [1, 1]} : vector<8x384xf32> to vector<8x128xf32>
    %30 = arith.addf %29, %6 : vector<8x128xf32>
    %31 = arith.mulf %19, %30 : vector<8x128xf32>
    %32 = arith.addf %28, %31 : vector<8x128xf32>
    %33 = math.tanh %32 : vector<8x128xf32>
    %cst_11 = arith.constant 1.000000e+00 : f32
    %34 = vector.broadcast %cst_11 : f32 to vector<8x128xf32>
    %35 = arith.subf %34, %27 : vector<8x128xf32>
    %36 = arith.mulf %35, %33 : vector<8x128xf32>
    %37 = arith.mulf %27, %7 : vector<8x128xf32>
    %38 = arith.addf %36, %37 : vector<8x128xf32>
    %39 = arith.index_cast %c0_i32_6 : i32 to index
    %c0_12 = arith.constant 0 : index
    %c0_13 = arith.constant 0 : index
    %40 = vector.load %arg6[%39, %c0_12, %c0_13] : memref<8x8x128xf32, #tpu.memory_space<vmem>>, vector<1x8x128xf32>
    %41 = vector.shape_cast %40 : vector<1x8x128xf32> to vector<8x128xf32>
    %42 = vector.shape_cast %38 : vector<8x128xf32> to vector<1x8x128xf32>
    tpu.vector_store %arg6[%39, %c0_12, %c0_13], %42 {strides = array<i32>} : memref<8x8x128xf32, #tpu.memory_space<vmem>>, vector<1x8x128xf32>,
    %c1_i32 = arith.constant 1 : i32
    %43 = arith.index_cast %c1_i32 : i32 to index
    %c0_14 = arith.constant 0 : index
    %c0_15 = arith.constant 0 : index
    %44 = vector.load %arg3[%43, %c0_14, %c0_15] : memref<8x8x384xf32, #tpu.memory_space<vmem>>, vector<1x8x384xf32>
    %45 = vector.shape_cast %44 : vector<1x8x384xf32> to vector<8x384xf32>
    %cst_16 = arith.constant dense<0.000000e+00> : vector<8x384xf32>
    %46 = tpu.matmul %38, %3, %cst_16 {dimension_numbers = #tpu.dot_dimension_numbers<[1], [0], [0], [1], [0, 0, 1, 1], [], []>} : vector<8x128xf32>, vector<128x384xf32>, vector<8x384xf32> -> vector<8x384xf32>
    %47 = vector.extract_strided_slice %45 {offsets = [0, 0], sizes = [8, 128], strides = [1, 1]} : vector<8x384xf32> to vector<8x128xf32>
    %48 = vector.extract_strided_slice %46 {offsets = [0, 0], sizes = [8, 128], strides = [1, 1]} : vector<8x384xf32> to vector<8x128xf32>
    %49 = arith.addf %47, %48 : vector<8x128xf32>
    %50 = arith.negf %49 : vector<8x128xf32>
    %51 = math.exp %50 : vector<8x128xf32>
    %cst_17 = arith.constant 1.000000e+00 : f32
    %52 = vector.broadcast %cst_17 : f32 to vector<8x128xf32>
    %53 = arith.addf %52, %51 : vector<8x128xf32>
    %54 = arith.divf %52, %53 : vector<8x128xf32>
    %55 = vector.extract_strided_slice %45 {offsets = [0, 128], sizes = [8, 128], strides = [1, 1]} : vector<8x384xf32> to vector<8x128xf32>
    %56 = vector.extract_strided_slice %46 {offsets = [0, 128], sizes = [8, 128], strides = [1, 1]} : vector<8x384xf32> to vector<8x128xf32>
    %57 = arith.addf %55, %56 : vector<8x128xf32>
    %58 = arith.negf %57 : vector<8x128xf32>
    %59 = math.exp %58 : vector<8x128xf32>
    %cst_18 = arith.constant 1.000000e+00 : f32
    %60 = vector.broadcast %cst_18 : f32 to vector<8x128xf32>
    %61 = arith.addf %60, %59 : vector<8x128xf32>
    %62 = arith.divf %60, %61 : vector<8x128xf32>
    %63 = vector.extract_strided_slice %45 {offsets = [0, 256], sizes = [8, 128], strides = [1, 1]} : vector<8x384xf32> to vector<8x128xf32>
    %64 = vector.extract_strided_slice %46 {offsets = [0, 256], sizes = [8, 128], strides = [1, 1]} : vector<8x384xf32> to vector<8x128xf32>
    %65 = arith.addf %64, %6 : vector<8x128xf32>
    %66 = arith.mulf %54, %65 : vector<8x128xf32>
    %67 = arith.addf %63, %66 : vector<8x128xf32>
    %68 = math.tanh %67 : vector<8x128xf32>
    %cst_19 = arith.constant 1.000000e+00 : f32
    %69 = vector.broadcast %cst_19 : f32 to vector<8x128xf32>
    %70 = arith.subf %69, %62 : vector<8x128xf32>
    %71 = arith.mulf %70, %68 : vector<8x128xf32>
    %72 = arith.mulf %62, %38 : vector<8x128xf32>
    %73 = arith.addf %71, %72 : vector<8x128xf32>
    %74 = arith.index_cast %c1_i32 : i32 to index
    %c0_20 = arith.constant 0 : index
    %c0_21 = arith.constant 0 : index
    %75 = vector.load %arg6[%74, %c0_20, %c0_21] : memref<8x8x128xf32, #tpu.memory_space<vmem>>, vector<1x8x128xf32>
    %76 = vector.shape_cast %75 : vector<1x8x128xf32> to vector<8x128xf32>
    %77 = vector.shape_cast %73 : vector<8x128xf32> to vector<1x8x128xf32>
    tpu.vector_store %arg6[%74, %c0_20, %c0_21], %77 {strides = array<i32>} : memref<8x8x128xf32, #tpu.memory_space<vmem>>, vector<1x8x128xf32>,
    %c2_i32 = arith.constant 2 : i32
    %78 = arith.index_cast %c2_i32 : i32 to index
    %c0_22 = arith.constant 0 : index
    %c0_23 = arith.constant 0 : index
    %79 = vector.load %arg3[%78, %c0_22, %c0_23] : memref<8x8x384xf32, #tpu.memory_space<vmem>>, vector<1x8x384xf32>
    %80 = vector.shape_cast %79 : vector<1x8x384xf32> to vector<8x384xf32>
    %cst_24 = arith.constant dense<0.000000e+00> : vector<8x384xf32>
    %81 = tpu.matmul %73, %3, %cst_24 {dimension_numbers = #tpu.dot_dimension_numbers<[1], [0], [0], [1], [0, 0, 1, 1], [], []>} : vector<8x128xf32>, vector<128x384xf32>, vector<8x384xf32> -> vector<8x384xf32>
    %82 = vector.extract_strided_slice %80 {offsets = [0, 0], sizes = [8, 128], strides = [1, 1]} : vector<8x384xf32> to vector<8x128xf32>
    %83 = vector.extract_strided_slice %81 {offsets = [0, 0], sizes = [8, 128], strides = [1, 1]} : vector<8x384xf32> to vector<8x128xf32>
    %84 = arith.addf %82, %83 : vector<8x128xf32>
    %85 = arith.negf %84 : vector<8x128xf32>
    %86 = math.exp %85 : vector<8x128xf32>
    %cst_25 = arith.constant 1.000000e+00 : f32
    %87 = vector.broadcast %cst_25 : f32 to vector<8x128xf32>
    %88 = arith.addf %87, %86 : vector<8x128xf32>
    %89 = arith.divf %87, %88 : vector<8x128xf32>
    %90 = vector.extract_strided_slice %80 {offsets = [0, 128], sizes = [8, 128], strides = [1, 1]} : vector<8x384xf32> to vector<8x128xf32>
    %91 = vector.extract_strided_slice %81 {offsets = [0, 128], sizes = [8, 128], strides = [1, 1]} : vector<8x384xf32> to vector<8x128xf32>
    %92 = arith.addf %90, %91 : vector<8x128xf32>
    %93 = arith.negf %92 : vector<8x128xf32>
    %94 = math.exp %93 : vector<8x128xf32>
    %cst_26 = arith.constant 1.000000e+00 : f32
    %95 = vector.broadcast %cst_26 : f32 to vector<8x128xf32>
    %96 = arith.addf %95, %94 : vector<8x128xf32>
    %97 = arith.divf %95, %96 : vector<8x128xf32>
    %98 = vector.extract_strided_slice %80 {offsets = [0, 256], sizes = [8, 128], strides = [1, 1]} : vector<8x384xf32> to vector<8x128xf32>
    %99 = vector.extract_strided_slice %81 {offsets = [0, 256], sizes = [8, 128], strides = [1, 1]} : vector<8x384xf32> to vector<8x128xf32>
    %100 = arith.addf %99, %6 : vector<8x128xf32>
    %101 = arith.mulf %89, %100 : vector<8x128xf32>
    %102 = arith.addf %98, %101 : vector<8x128xf32>
    %103 = math.tanh %102 : vector<8x128xf32>
    %cst_27 = arith.constant 1.000000e+00 : f32
    %104 = vector.broadcast %cst_27 : f32 to vector<8x128xf32>
    %105 = arith.subf %104, %97 : vector<8x128xf32>
    %106 = arith.mulf %105, %103 : vector<8x128xf32>
    %107 = arith.mulf %97, %73 : vector<8x128xf32>
    %108 = arith.addf %106, %107 : vector<8x128xf32>
    %109 = arith.index_cast %c2_i32 : i32 to index
    %c0_28 = arith.constant 0 : index
    %c0_29 = arith.constant 0 : index
    %110 = vector.load %arg6[%109, %c0_28, %c0_29] : memref<8x8x128xf32, #tpu.memory_space<vmem>>, vector<1x8x128xf32>
    %111 = vector.shape_cast %110 : vector<1x8x128xf32> to vector<8x128xf32>
    %112 = vector.shape_cast %108 : vector<8x128xf32> to vector<1x8x128xf32>
    tpu.vector_store %arg6[%109, %c0_28, %c0_29], %112 {strides = array<i32>} : memref<8x8x128xf32, #tpu.memory_space<vmem>>, vector<1x8x128xf32>,
    %c3_i32 = arith.constant 3 : i32
    %113 = arith.index_cast %c3_i32 : i32 to index
    %c0_30 = arith.constant 0 : index
    %c0_31 = arith.constant 0 : index
    %114 = vector.load %arg3[%113, %c0_30, %c0_31] : memref<8x8x384xf32, #tpu.memory_space<vmem>>, vector<1x8x384xf32>
    %115 = vector.shape_cast %114 : vector<1x8x384xf32> to vector<8x384xf32>
    %cst_32 = arith.constant dense<0.000000e+00> : vector<8x384xf32>
    %116 = tpu.matmul %108, %3, %cst_32 {dimension_numbers = #tpu.dot_dimension_numbers<[1], [0], [0], [1], [0, 0, 1, 1], [], []>} : vector<8x128xf32>, vector<128x384xf32>, vector<8x384xf32> -> vector<8x384xf32>
    %117 = vector.extract_strided_slice %115 {offsets = [0, 0], sizes = [8, 128], strides = [1, 1]} : vector<8x384xf32> to vector<8x128xf32>
    %118 = vector.extract_strided_slice %116 {offsets = [0, 0], sizes = [8, 128], strides = [1, 1]} : vector<8x384xf32> to vector<8x128xf32>
    %119 = arith.addf %117, %118 : vector<8x128xf32>
    %120 = arith.negf %119 : vector<8x128xf32>
    %121 = math.exp %120 : vector<8x128xf32>
    %cst_33 = arith.constant 1.000000e+00 : f32
    %122 = vector.broadcast %cst_33 : f32 to vector<8x128xf32>
    %123 = arith.addf %122, %121 : vector<8x128xf32>
    %124 = arith.divf %122, %123 : vector<8x128xf32>
    %125 = vector.extract_strided_slice %115 {offsets = [0, 128], sizes = [8, 128], strides = [1, 1]} : vector<8x384xf32> to vector<8x128xf32>
    %126 = vector.extract_strided_slice %116 {offsets = [0, 128], sizes = [8, 128], strides = [1, 1]} : vector<8x384xf32> to vector<8x128xf32>
    %127 = arith.addf %125, %126 : vector<8x128xf32>
    %128 = arith.negf %127 : vector<8x128xf32>
    %129 = math.exp %128 : vector<8x128xf32>
    %cst_34 = arith.constant 1.000000e+00 : f32
    %130 = vector.broadcast %cst_34 : f32 to vector<8x128xf32>
    %131 = arith.addf %130, %129 : vector<8x128xf32>
    %132 = arith.divf %130, %131 : vector<8x128xf32>
    %133 = vector.extract_strided_slice %115 {offsets = [0, 256], sizes = [8, 128], strides = [1, 1]} : vector<8x384xf32> to vector<8x128xf32>
    %134 = vector.extract_strided_slice %116 {offsets = [0, 256], sizes = [8, 128], strides = [1, 1]} : vector<8x384xf32> to vector<8x128xf32>
    %135 = arith.addf %134, %6 : vector<8x128xf32>
    %136 = arith.mulf %124, %135 : vector<8x128xf32>
    %137 = arith.addf %133, %136 : vector<8x128xf32>
    %138 = math.tanh %137 : vector<8x128xf32>
    %cst_35 = arith.constant 1.000000e+00 : f32
    %139 = vector.broadcast %cst_35 : f32 to vector<8x128xf32>
    %140 = arith.subf %139, %132 : vector<8x128xf32>
    %141 = arith.mulf %140, %138 : vector<8x128xf32>
    %142 = arith.mulf %132, %108 : vector<8x128xf32>
    %143 = arith.addf %141, %142 : vector<8x128xf32>
    %144 = arith.index_cast %c3_i32 : i32 to index
    %c0_36 = arith.constant 0 : index
    %c0_37 = arith.constant 0 : index
    %145 = vector.load %arg6[%144, %c0_36, %c0_37] : memref<8x8x128xf32, #tpu.memory_space<vmem>>, vector<1x8x128xf32>
    %146 = vector.shape_cast %145 : vector<1x8x128xf32> to vector<8x128xf32>
    %147 = vector.shape_cast %143 : vector<8x128xf32> to vector<1x8x128xf32>
    tpu.vector_store %arg6[%144, %c0_36, %c0_37], %147 {strides = array<i32>} : memref<8x8x128xf32, #tpu.memory_space<vmem>>, vector<1x8x128xf32>,
    %c4_i32 = arith.constant 4 : i32
    %148 = arith.index_cast %c4_i32 : i32 to index
    %c0_38 = arith.constant 0 : index
    %c0_39 = arith.constant 0 : index
    %149 = vector.load %arg3[%148, %c0_38, %c0_39] : memref<8x8x384xf32, #tpu.memory_space<vmem>>, vector<1x8x384xf32>
    %150 = vector.shape_cast %149 : vector<1x8x384xf32> to vector<8x384xf32>
    %cst_40 = arith.constant dense<0.000000e+00> : vector<8x384xf32>
    %151 = tpu.matmul %143, %3, %cst_40 {dimension_numbers = #tpu.dot_dimension_numbers<[1], [0], [0], [1], [0, 0, 1, 1], [], []>} : vector<8x128xf32>, vector<128x384xf32>, vector<8x384xf32> -> vector<8x384xf32>
    %152 = vector.extract_strided_slice %150 {offsets = [0, 0], sizes = [8, 128], strides = [1, 1]} : vector<8x384xf32> to vector<8x128xf32>
    %153 = vector.extract_strided_slice %151 {offsets = [0, 0], sizes = [8, 128], strides = [1, 1]} : vector<8x384xf32> to vector<8x128xf32>
    %154 = arith.addf %152, %153 : vector<8x128xf32>
    %155 = arith.negf %154 : vector<8x128xf32>
    %156 = math.exp %155 : vector<8x128xf32>
    %cst_41 = arith.constant 1.000000e+00 : f32
    %157 = vector.broadcast %cst_41 : f32 to vector<8x128xf32>
    %158 = arith.addf %157, %156 : vector<8x128xf32>
    %159 = arith.divf %157, %158 : vector<8x128xf32>
    %160 = vector.extract_strided_slice %150 {offsets = [0, 128], sizes = [8, 128], strides = [1, 1]} : vector<8x384xf32> to vector<8x128xf32>
    %161 = vector.extract_strided_slice %151 {offsets = [0, 128], sizes = [8, 128], strides = [1, 1]} : vector<8x384xf32> to vector<8x128xf32>
    %162 = arith.addf %160, %161 : vector<8x128xf32>
    %163 = arith.negf %162 : vector<8x128xf32>
    %164 = math.exp %163 : vector<8x128xf32>
    %cst_42 = arith.constant 1.000000e+00 : f32
    %165 = vector.broadcast %cst_42 : f32 to vector<8x128xf32>
    %166 = arith.addf %165, %164 : vector<8x128xf32>
    %167 = arith.divf %165, %166 : vector<8x128xf32>
    %168 = vector.extract_strided_slice %150 {offsets = [0, 256], sizes = [8, 128], strides = [1, 1]} : vector<8x384xf32> to vector<8x128xf32>
    %169 = vector.extract_strided_slice %151 {offsets = [0, 256], sizes = [8, 128], strides = [1, 1]} : vector<8x384xf32> to vector<8x128xf32>
    %170 = arith.addf %169, %6 : vector<8x128xf32>
    %171 = arith.mulf %159, %170 : vector<8x128xf32>
    %172 = arith.addf %168, %171 : vector<8x128xf32>
    %173 = math.tanh %172 : vector<8x128xf32>
    %cst_43 = arith.constant 1.000000e+00 : f32
    %174 = vector.broadcast %cst_43 : f32 to vector<8x128xf32>
    %175 = arith.subf %174, %167 : vector<8x128xf32>
    %176 = arith.mulf %175, %173 : vector<8x128xf32>
    %177 = arith.mulf %167, %143 : vector<8x128xf32>
    %178 = arith.addf %176, %177 : vector<8x128xf32>
    %179 = arith.index_cast %c4_i32 : i32 to index
    %c0_44 = arith.constant 0 : index
    %c0_45 = arith.constant 0 : index
    %180 = vector.load %arg6[%179, %c0_44, %c0_45] : memref<8x8x128xf32, #tpu.memory_space<vmem>>, vector<1x8x128xf32>
    %181 = vector.shape_cast %180 : vector<1x8x128xf32> to vector<8x128xf32>
    %182 = vector.shape_cast %178 : vector<8x128xf32> to vector<1x8x128xf32>
    tpu.vector_store %arg6[%179, %c0_44, %c0_45], %182 {strides = array<i32>} : memref<8x8x128xf32, #tpu.memory_space<vmem>>, vector<1x8x128xf32>,
    %c5_i32 = arith.constant 5 : i32
    %183 = arith.index_cast %c5_i32 : i32 to index
    %c0_46 = arith.constant 0 : index
    %c0_47 = arith.constant 0 : index
    %184 = vector.load %arg3[%183, %c0_46, %c0_47] : memref<8x8x384xf32, #tpu.memory_space<vmem>>, vector<1x8x384xf32>
    %185 = vector.shape_cast %184 : vector<1x8x384xf32> to vector<8x384xf32>
    %cst_48 = arith.constant dense<0.000000e+00> : vector<8x384xf32>
    %186 = tpu.matmul %178, %3, %cst_48 {dimension_numbers = #tpu.dot_dimension_numbers<[1], [0], [0], [1], [0, 0, 1, 1], [], []>} : vector<8x128xf32>, vector<128x384xf32>, vector<8x384xf32> -> vector<8x384xf32>
    %187 = vector.extract_strided_slice %185 {offsets = [0, 0], sizes = [8, 128], strides = [1, 1]} : vector<8x384xf32> to vector<8x128xf32>
    %188 = vector.extract_strided_slice %186 {offsets = [0, 0], sizes = [8, 128], strides = [1, 1]} : vector<8x384xf32> to vector<8x128xf32>
    %189 = arith.addf %187, %188 : vector<8x128xf32>
    %190 = arith.negf %189 : vector<8x128xf32>
    %191 = math.exp %190 : vector<8x128xf32>
    %cst_49 = arith.constant 1.000000e+00 : f32
    %192 = vector.broadcast %cst_49 : f32 to vector<8x128xf32>
    %193 = arith.addf %192, %191 : vector<8x128xf32>
    %194 = arith.divf %192, %193 : vector<8x128xf32>
    %195 = vector.extract_strided_slice %185 {offsets = [0, 128], sizes = [8, 128], strides = [1, 1]} : vector<8x384xf32> to vector<8x128xf32>
    %196 = vector.extract_strided_slice %186 {offsets = [0, 128], sizes = [8, 128], strides = [1, 1]} : vector<8x384xf32> to vector<8x128xf32>
    %197 = arith.addf %195, %196 : vector<8x128xf32>
    %198 = arith.negf %197 : vector<8x128xf32>
    %199 = math.exp %198 : vector<8x128xf32>
    %cst_50 = arith.constant 1.000000e+00 : f32
    %200 = vector.broadcast %cst_50 : f32 to vector<8x128xf32>
    %201 = arith.addf %200, %199 : vector<8x128xf32>
    %202 = arith.divf %200, %201 : vector<8x128xf32>
    %203 = vector.extract_strided_slice %185 {offsets = [0, 256], sizes = [8, 128], strides = [1, 1]} : vector<8x384xf32> to vector<8x128xf32>
    %204 = vector.extract_strided_slice %186 {offsets = [0, 256], sizes = [8, 128], strides = [1, 1]} : vector<8x384xf32> to vector<8x128xf32>
    %205 = arith.addf %204, %6 : vector<8x128xf32>
    %206 = arith.mulf %194, %205 : vector<8x128xf32>
    %207 = arith.addf %203, %206 : vector<8x128xf32>
    %208 = math.tanh %207 : vector<8x128xf32>
    %cst_51 = arith.constant 1.000000e+00 : f32
    %209 = vector.broadcast %cst_51 : f32 to vector<8x128xf32>
    %210 = arith.subf %209, %202 : vector<8x128xf32>
    %211 = arith.mulf %210, %208 : vector<8x128xf32>
    %212 = arith.mulf %202, %178 : vector<8x128xf32>
    %213 = arith.addf %211, %212 : vector<8x128xf32>
    %214 = arith.index_cast %c5_i32 : i32 to index
    %c0_52 = arith.constant 0 : index
    %c0_53 = arith.constant 0 : index
    %215 = vector.load %arg6[%214, %c0_52, %c0_53] : memref<8x8x128xf32, #tpu.memory_space<vmem>>, vector<1x8x128xf32>
    %216 = vector.shape_cast %215 : vector<1x8x128xf32> to vector<8x128xf32>
    %217 = vector.shape_cast %213 : vector<8x128xf32> to vector<1x8x128xf32>
    tpu.vector_store %arg6[%214, %c0_52, %c0_53], %217 {strides = array<i32>} : memref<8x8x128xf32, #tpu.memory_space<vmem>>, vector<1x8x128xf32>,
    %c6_i32 = arith.constant 6 : i32
    %218 = arith.index_cast %c6_i32 : i32 to index
    %c0_54 = arith.constant 0 : index
    %c0_55 = arith.constant 0 : index
    %219 = vector.load %arg3[%218, %c0_54, %c0_55] : memref<8x8x384xf32, #tpu.memory_space<vmem>>, vector<1x8x384xf32>
    %220 = vector.shape_cast %219 : vector<1x8x384xf32> to vector<8x384xf32>
    %cst_56 = arith.constant dense<0.000000e+00> : vector<8x384xf32>
    %221 = tpu.matmul %213, %3, %cst_56 {dimension_numbers = #tpu.dot_dimension_numbers<[1], [0], [0], [1], [0, 0, 1, 1], [], []>} : vector<8x128xf32>, vector<128x384xf32>, vector<8x384xf32> -> vector<8x384xf32>
    %222 = vector.extract_strided_slice %220 {offsets = [0, 0], sizes = [8, 128], strides = [1, 1]} : vector<8x384xf32> to vector<8x128xf32>
    %223 = vector.extract_strided_slice %221 {offsets = [0, 0], sizes = [8, 128], strides = [1, 1]} : vector<8x384xf32> to vector<8x128xf32>
    %224 = arith.addf %222, %223 : vector<8x128xf32>
    %225 = arith.negf %224 : vector<8x128xf32>
    %226 = math.exp %225 : vector<8x128xf32>
    %cst_57 = arith.constant 1.000000e+00 : f32
    %227 = vector.broadcast %cst_57 : f32 to vector<8x128xf32>
    %228 = arith.addf %227, %226 : vector<8x128xf32>
    %229 = arith.divf %227, %228 : vector<8x128xf32>
    %230 = vector.extract_strided_slice %220 {offsets = [0, 128], sizes = [8, 128], strides = [1, 1]} : vector<8x384xf32> to vector<8x128xf32>
    %231 = vector.extract_strided_slice %221 {offsets = [0, 128], sizes = [8, 128], strides = [1, 1]} : vector<8x384xf32> to vector<8x128xf32>
    %232 = arith.addf %230, %231 : vector<8x128xf32>
    %233 = arith.negf %232 : vector<8x128xf32>
    %234 = math.exp %233 : vector<8x128xf32>
    %cst_58 = arith.constant 1.000000e+00 : f32
    %235 = vector.broadcast %cst_58 : f32 to vector<8x128xf32>
    %236 = arith.addf %235, %234 : vector<8x128xf32>
    %237 = arith.divf %235, %236 : vector<8x128xf32>
    %238 = vector.extract_strided_slice %220 {offsets = [0, 256], sizes = [8, 128], strides = [1, 1]} : vector<8x384xf32> to vector<8x128xf32>
    %239 = vector.extract_strided_slice %221 {offsets = [0, 256], sizes = [8, 128], strides = [1, 1]} : vector<8x384xf32> to vector<8x128xf32>
    %240 = arith.addf %239, %6 : vector<8x128xf32>
    %241 = arith.mulf %229, %240 : vector<8x128xf32>
    %242 = arith.addf %238, %241 : vector<8x128xf32>
    %243 = math.tanh %242 : vector<8x128xf32>
    %cst_59 = arith.constant 1.000000e+00 : f32
    %244 = vector.broadcast %cst_59 : f32 to vector<8x128xf32>
    %245 = arith.subf %244, %237 : vector<8x128xf32>
    %246 = arith.mulf %245, %243 : vector<8x128xf32>
    %247 = arith.mulf %237, %213 : vector<8x128xf32>
    %248 = arith.addf %246, %247 : vector<8x128xf32>
    %249 = arith.index_cast %c6_i32 : i32 to index
    %c0_60 = arith.constant 0 : index
    %c0_61 = arith.constant 0 : index
    %250 = vector.load %arg6[%249, %c0_60, %c0_61] : memref<8x8x128xf32, #tpu.memory_space<vmem>>, vector<1x8x128xf32>
    %251 = vector.shape_cast %250 : vector<1x8x128xf32> to vector<8x128xf32>
    %252 = vector.shape_cast %248 : vector<8x128xf32> to vector<1x8x128xf32>
    tpu.vector_store %arg6[%249, %c0_60, %c0_61], %252 {strides = array<i32>} : memref<8x8x128xf32, #tpu.memory_space<vmem>>, vector<1x8x128xf32>,
    %c7_i32 = arith.constant 7 : i32
    %253 = arith.index_cast %c7_i32 : i32 to index
    %c0_62 = arith.constant 0 : index
    %c0_63 = arith.constant 0 : index
    %254 = vector.load %arg3[%253, %c0_62, %c0_63] : memref<8x8x384xf32, #tpu.memory_space<vmem>>, vector<1x8x384xf32>
    %255 = vector.shape_cast %254 : vector<1x8x384xf32> to vector<8x384xf32>
    %cst_64 = arith.constant dense<0.000000e+00> : vector<8x384xf32>
    %256 = tpu.matmul %248, %3, %cst_64 {dimension_numbers = #tpu.dot_dimension_numbers<[1], [0], [0], [1], [0, 0, 1, 1], [], []>} : vector<8x128xf32>, vector<128x384xf32>, vector<8x384xf32> -> vector<8x384xf32>
    %257 = vector.extract_strided_slice %255 {offsets = [0, 0], sizes = [8, 128], strides = [1, 1]} : vector<8x384xf32> to vector<8x128xf32>
    %258 = vector.extract_strided_slice %256 {offsets = [0, 0], sizes = [8, 128], strides = [1, 1]} : vector<8x384xf32> to vector<8x128xf32>
    %259 = arith.addf %257, %258 : vector<8x128xf32>
    %260 = arith.negf %259 : vector<8x128xf32>
    %261 = math.exp %260 : vector<8x128xf32>
    %cst_65 = arith.constant 1.000000e+00 : f32
    %262 = vector.broadcast %cst_65 : f32 to vector<8x128xf32>
    %263 = arith.addf %262, %261 : vector<8x128xf32>
    %264 = arith.divf %262, %263 : vector<8x128xf32>
    %265 = vector.extract_strided_slice %255 {offsets = [0, 128], sizes = [8, 128], strides = [1, 1]} : vector<8x384xf32> to vector<8x128xf32>
    %266 = vector.extract_strided_slice %256 {offsets = [0, 128], sizes = [8, 128], strides = [1, 1]} : vector<8x384xf32> to vector<8x128xf32>
    %267 = arith.addf %265, %266 : vector<8x128xf32>
    %268 = arith.negf %267 : vector<8x128xf32>
    %269 = math.exp %268 : vector<8x128xf32>
    %cst_66 = arith.constant 1.000000e+00 : f32
    %270 = vector.broadcast %cst_66 : f32 to vector<8x128xf32>
    %271 = arith.addf %270, %269 : vector<8x128xf32>
    %272 = arith.divf %270, %271 : vector<8x128xf32>
    %273 = vector.extract_strided_slice %255 {offsets = [0, 256], sizes = [8, 128], strides = [1, 1]} : vector<8x384xf32> to vector<8x128xf32>
    %274 = vector.extract_strided_slice %256 {offsets = [0, 256], sizes = [8, 128], strides = [1, 1]} : vector<8x384xf32> to vector<8x128xf32>
    %275 = arith.addf %274, %6 : vector<8x128xf32>
    %276 = arith.mulf %264, %275 : vector<8x128xf32>
    %277 = arith.addf %273, %276 : vector<8x128xf32>
    %278 = math.tanh %277 : vector<8x128xf32>
    %cst_67 = arith.constant 1.000000e+00 : f32
    %279 = vector.broadcast %cst_67 : f32 to vector<8x128xf32>
    %280 = arith.subf %279, %272 : vector<8x128xf32>
    %281 = arith.mulf %280, %278 : vector<8x128xf32>
    %282 = arith.mulf %272, %248 : vector<8x128xf32>
    %283 = arith.addf %281, %282 : vector<8x128xf32>
    %284 = arith.index_cast %c7_i32 : i32 to index
    %c0_68 = arith.constant 0 : index
    %c0_69 = arith.constant 0 : index
    %285 = vector.load %arg6[%284, %c0_68, %c0_69] : memref<8x8x128xf32, #tpu.memory_space<vmem>>, vector<1x8x128xf32>
    %286 = vector.shape_cast %285 : vector<1x8x128xf32> to vector<8x128xf32>
    %287 = vector.shape_cast %283 : vector<8x128xf32> to vector<1x8x128xf32>
    tpu.vector_store %arg6[%284, %c0_68, %c0_69], %287 {strides = array<i32>} : memref<8x8x128xf32, #tpu.memory_space<vmem>>, vector<1x8x128xf32>,
    %c8_i32 = arith.constant 8 : i32
    %c0_70 = arith.constant 0 : index
    %c0_71 = arith.constant 0 : index
    %288 = vector.load %arg8[%c0_70, %c0_71] : memref<8x128xf32, #tpu.memory_space<vmem>>, vector<8x128xf32>
    tpu.vector_store %arg8[%c0_70, %c0_71], %283 {strides = array<i32>} : memref<8x128xf32, #tpu.memory_space<vmem>>, vector<8x128xf32>,
    %c0_i32_72 = arith.constant 0 : i32
    %289 = arith.cmpi eq, %arg1, %c0_i32_72 : i32
    %290 = arith.extui %289 : i1 to i32
    %c0_i32_73 = arith.constant 0 : i32
    %291 = arith.cmpi ne, %290, %c0_i32_73 : i32
    scf.if %291 {
      %c0_74 = arith.constant 0 : index
      %c0_75 = arith.constant 0 : index
      %292 = vector.load %arg7[%c0_74, %c0_75] : memref<8x128xf32, #tpu.memory_space<vmem>>, vector<8x128xf32>
      tpu.vector_store %arg7[%c0_74, %c0_75], %283 {strides = array<i32>} : memref<8x128xf32, #tpu.memory_space<vmem>>, vector<8x128xf32>,
    } else {
    }
    return
  }
  func.func @transform_0(%arg0: i32, %arg1: i32) -> (i32, i32) {
    %c0_i32 = arith.constant 0 : i32
    %c0_i32_0 = arith.constant 0 : i32
    return %arg0, %c0_i32 : i32, i32
  }
  func.func @transform_1(%arg0: i32, %arg1: i32) -> (i32, i32, i32) {
    %c0_i32 = arith.constant 0 : i32
    %c0_i32_0 = arith.constant 0 : i32
    return %arg1, %arg0, %c0_i32 : i32, i32, i32
  }
  func.func @transform_2(%arg0: i32, %arg1: i32) -> (i32, i32) {
    %c0_i32 = arith.constant 0 : i32
    %c0_i32_0 = arith.constant 0 : i32
    %c0_i32_1 = arith.constant 0 : i32
    return %c0_i32, %c0_i32_0 : i32, i32
  }
  func.func @transform_3(%arg0: i32, %arg1: i32) -> (i32, i32) {
    %c0_i32 = arith.constant 0 : i32
    %c0_i32_0 = arith.constant 0 : i32
    %c0_i32_1 = arith.constant 0 : i32
    return %c0_i32, %c0_i32_0 : i32, i32
  }
  func.func @transform_4(%arg0: i32, %arg1: i32) -> (i32, i32, i32) {
    %c0_i32 = arith.constant 0 : i32
    %c0_i32_0 = arith.constant 0 : i32
    return %arg1, %arg0, %c0_i32 : i32, i32, i32
  }
  func.func @transform_5(%arg0: i32, %arg1: i32) -> (i32, i32) {
    %c0_i32 = arith.constant 0 : i32
    %c0_i32_0 = arith.constant 0 : i32
    return %arg0, %c0_i32 : i32, i32
  }
}

module attributes {stable_mosaic.version = 11 : i64} {
  func.func @_gru_chunk_fused_kernel(%arg0: i32, %arg1: i32, %arg2: memref<8x128xf32, #tpu.memory_space<vmem>>, %arg3: memref<8x8x384xf32, #tpu.memory_space<vmem>>, %arg4: memref<128x384xf32, #tpu.memory_space<vmem>>, %arg5: memref<1x128xf32, #tpu.memory_space<vmem>>, %arg6: memref<128x128xf32, #tpu.memory_space<vmem>>, %arg7: memref<1x128xf32, #tpu.memory_space<vmem>>, %arg8: memref<8x8x128xf32, #tpu.memory_space<vmem>>, %arg9: memref<8x128xf32, #tpu.memory_space<vmem>>, %arg10: memref<8x128xf32, #tpu.memory_space<vmem>>, %arg11: memref<8x8x128xf32, #tpu.memory_space<vmem>>) attributes {dimension_semantics = [#tpu.dimension_semantics<parallel>, #tpu.dimension_semantics<arbitrary>], iteration_bounds = array<i64: 1, 1>, scalar_prefetch = 0 : i64, scratch_operands = 2 : i64, tpu.core_type = #tpu.core_type<tc>, window_params = [{transform_indices = @transform_0, window_bounds = array<i64: 8, 128>}, {transform_indices = @transform_1, window_bounds = array<i64: 8, 8, 384>}, {pipeline_mode = #tpu.pipeline_mode<synchronous>, transform_indices = @transform_2, window_bounds = array<i64: 128, 384>}, {pipeline_mode = #tpu.pipeline_mode<synchronous>, transform_indices = @transform_3, window_bounds = array<i64: 1, 128>}, {pipeline_mode = #tpu.pipeline_mode<synchronous>, transform_indices = @transform_4, window_bounds = array<i64: 128, 128>}, {pipeline_mode = #tpu.pipeline_mode<synchronous>, transform_indices = @transform_5, window_bounds = array<i64: 1, 128>}, {transform_indices = @transform_6, window_bounds = array<i64: 8, 8, 128>}, {transform_indices = @transform_7, window_bounds = array<i64: 8, 128>}]} {
    %c0_i32 = arith.constant 0 : i32
    %0 = arith.cmpi eq, %arg1, %c0_i32 : i32
    %1 = arith.extui %0 : i1 to i32
    %c0_i32_0 = arith.constant 0 : i32
    %2 = arith.cmpi ne, %1, %c0_i32_0 : i32
    scf.if %2 {
      %c0_85 = arith.constant 0 : index
      %c0_86 = arith.constant 0 : index
      %302 = vector.load %arg2[%c0_85, %c0_86] : memref<8x128xf32, #tpu.memory_space<vmem>>, vector<8x128xf32>
      %c0_87 = arith.constant 0 : index
      %c0_88 = arith.constant 0 : index
      %303 = vector.load %arg10[%c0_87, %c0_88] : memref<8x128xf32, #tpu.memory_space<vmem>>, vector<8x128xf32>
      tpu.vector_store %arg10[%c0_87, %c0_88], %302 {strides = array<i32>} : memref<8x128xf32, #tpu.memory_space<vmem>>, vector<8x128xf32>,
    } else {
    }
    %c0 = arith.constant 0 : index
    %c0_1 = arith.constant 0 : index
    %3 = vector.load %arg4[%c0, %c0_1] : memref<128x384xf32, #tpu.memory_space<vmem>>, vector<128x384xf32>
    %c0_2 = arith.constant 0 : index
    %c0_3 = arith.constant 0 : index
    %4 = vector.load %arg5[%c0_2, %c0_3] : memref<1x128xf32, #tpu.memory_space<vmem>>, vector<1x128xf32>
    %5 = vector.shape_cast %4 : vector<1x128xf32> to vector<1x128xf32>
    %6 = vector.broadcast %5 : vector<1x128xf32> to vector<8x128xf32>
    %c0_4 = arith.constant 0 : index
    %c0_5 = arith.constant 0 : index
    %7 = vector.load %arg10[%c0_4, %c0_5] : memref<8x128xf32, #tpu.memory_space<vmem>>, vector<8x128xf32>
    %c0_i32_6 = arith.constant 0 : i32
    %8 = arith.index_cast %c0_i32_6 : i32 to index
    %c0_7 = arith.constant 0 : index
    %c0_8 = arith.constant 0 : index
    %9 = vector.load %arg3[%8, %c0_7, %c0_8] : memref<8x8x384xf32, #tpu.memory_space<vmem>>, vector<1x8x384xf32>
    %10 = vector.shape_cast %9 : vector<1x8x384xf32> to vector<8x384xf32>
    %cst = arith.constant dense<0.000000e+00> : vector<8x384xf32>
    %11 = tpu.matmul %7, %3, %cst {dimension_numbers = #tpu.dot_dimension_numbers<[1], [0], [0], [1], [0, 0, 1, 1], [], []>} : vector<8x128xf32>, vector<128x384xf32>, vector<8x384xf32> -> vector<8x384xf32>
    %12 = vector.extract_strided_slice %10 {offsets = [0, 0], sizes = [8, 128], strides = [1, 1]} : vector<8x384xf32> to vector<8x128xf32>
    %13 = vector.extract_strided_slice %11 {offsets = [0, 0], sizes = [8, 128], strides = [1, 1]} : vector<8x384xf32> to vector<8x128xf32>
    %14 = arith.addf %12, %13 : vector<8x128xf32>
    %15 = arith.negf %14 : vector<8x128xf32>
    %16 = math.exp %15 : vector<8x128xf32>
    %cst_9 = arith.constant 1.000000e+00 : f32
    %17 = vector.broadcast %cst_9 : f32 to vector<8x128xf32>
    %18 = arith.addf %17, %16 : vector<8x128xf32>
    %19 = arith.divf %17, %18 : vector<8x128xf32>
    %20 = vector.extract_strided_slice %10 {offsets = [0, 128], sizes = [8, 128], strides = [1, 1]} : vector<8x384xf32> to vector<8x128xf32>
    %21 = vector.extract_strided_slice %11 {offsets = [0, 128], sizes = [8, 128], strides = [1, 1]} : vector<8x384xf32> to vector<8x128xf32>
    %22 = arith.addf %20, %21 : vector<8x128xf32>
    %23 = arith.negf %22 : vector<8x128xf32>
    %24 = math.exp %23 : vector<8x128xf32>
    %cst_10 = arith.constant 1.000000e+00 : f32
    %25 = vector.broadcast %cst_10 : f32 to vector<8x128xf32>
    %26 = arith.addf %25, %24 : vector<8x128xf32>
    %27 = arith.divf %25, %26 : vector<8x128xf32>
    %28 = vector.extract_strided_slice %10 {offsets = [0, 256], sizes = [8, 128], strides = [1, 1]} : vector<8x384xf32> to vector<8x128xf32>
    %29 = vector.extract_strided_slice %11 {offsets = [0, 256], sizes = [8, 128], strides = [1, 1]} : vector<8x384xf32> to vector<8x128xf32>
    %30 = arith.addf %29, %6 : vector<8x128xf32>
    %31 = arith.mulf %19, %30 : vector<8x128xf32>
    %32 = arith.addf %28, %31 : vector<8x128xf32>
    %33 = math.tanh %32 : vector<8x128xf32>
    %cst_11 = arith.constant 1.000000e+00 : f32
    %34 = vector.broadcast %cst_11 : f32 to vector<8x128xf32>
    %35 = arith.subf %34, %27 : vector<8x128xf32>
    %36 = arith.mulf %35, %33 : vector<8x128xf32>
    %37 = arith.mulf %27, %7 : vector<8x128xf32>
    %38 = arith.addf %36, %37 : vector<8x128xf32>
    %39 = arith.index_cast %c0_i32_6 : i32 to index
    %c0_12 = arith.constant 0 : index
    %c0_13 = arith.constant 0 : index
    %40 = vector.load %arg11[%39, %c0_12, %c0_13] : memref<8x8x128xf32, #tpu.memory_space<vmem>>, vector<1x8x128xf32>
    %41 = vector.shape_cast %40 : vector<1x8x128xf32> to vector<8x128xf32>
    %42 = vector.shape_cast %38 : vector<8x128xf32> to vector<1x8x128xf32>
    tpu.vector_store %arg11[%39, %c0_12, %c0_13], %42 {strides = array<i32>} : memref<8x8x128xf32, #tpu.memory_space<vmem>>, vector<1x8x128xf32>,
    %c1_i32 = arith.constant 1 : i32
    %43 = arith.index_cast %c1_i32 : i32 to index
    %c0_14 = arith.constant 0 : index
    %c0_15 = arith.constant 0 : index
    %44 = vector.load %arg3[%43, %c0_14, %c0_15] : memref<8x8x384xf32, #tpu.memory_space<vmem>>, vector<1x8x384xf32>
    %45 = vector.shape_cast %44 : vector<1x8x384xf32> to vector<8x384xf32>
    %cst_16 = arith.constant dense<0.000000e+00> : vector<8x384xf32>
    %46 = tpu.matmul %38, %3, %cst_16 {dimension_numbers = #tpu.dot_dimension_numbers<[1], [0], [0], [1], [0, 0, 1, 1], [], []>} : vector<8x128xf32>, vector<128x384xf32>, vector<8x384xf32> -> vector<8x384xf32>
    %47 = vector.extract_strided_slice %45 {offsets = [0, 0], sizes = [8, 128], strides = [1, 1]} : vector<8x384xf32> to vector<8x128xf32>
    %48 = vector.extract_strided_slice %46 {offsets = [0, 0], sizes = [8, 128], strides = [1, 1]} : vector<8x384xf32> to vector<8x128xf32>
    %49 = arith.addf %47, %48 : vector<8x128xf32>
    %50 = arith.negf %49 : vector<8x128xf32>
    %51 = math.exp %50 : vector<8x128xf32>
    %cst_17 = arith.constant 1.000000e+00 : f32
    %52 = vector.broadcast %cst_17 : f32 to vector<8x128xf32>
    %53 = arith.addf %52, %51 : vector<8x128xf32>
    %54 = arith.divf %52, %53 : vector<8x128xf32>
    %55 = vector.extract_strided_slice %45 {offsets = [0, 128], sizes = [8, 128], strides = [1, 1]} : vector<8x384xf32> to vector<8x128xf32>
    %56 = vector.extract_strided_slice %46 {offsets = [0, 128], sizes = [8, 128], strides = [1, 1]} : vector<8x384xf32> to vector<8x128xf32>
    %57 = arith.addf %55, %56 : vector<8x128xf32>
    %58 = arith.negf %57 : vector<8x128xf32>
    %59 = math.exp %58 : vector<8x128xf32>
    %cst_18 = arith.constant 1.000000e+00 : f32
    %60 = vector.broadcast %cst_18 : f32 to vector<8x128xf32>
    %61 = arith.addf %60, %59 : vector<8x128xf32>
    %62 = arith.divf %60, %61 : vector<8x128xf32>
    %63 = vector.extract_strided_slice %45 {offsets = [0, 256], sizes = [8, 128], strides = [1, 1]} : vector<8x384xf32> to vector<8x128xf32>
    %64 = vector.extract_strided_slice %46 {offsets = [0, 256], sizes = [8, 128], strides = [1, 1]} : vector<8x384xf32> to vector<8x128xf32>
    %65 = arith.addf %64, %6 : vector<8x128xf32>
    %66 = arith.mulf %54, %65 : vector<8x128xf32>
    %67 = arith.addf %63, %66 : vector<8x128xf32>
    %68 = math.tanh %67 : vector<8x128xf32>
    %cst_19 = arith.constant 1.000000e+00 : f32
    %69 = vector.broadcast %cst_19 : f32 to vector<8x128xf32>
    %70 = arith.subf %69, %62 : vector<8x128xf32>
    %71 = arith.mulf %70, %68 : vector<8x128xf32>
    %72 = arith.mulf %62, %38 : vector<8x128xf32>
    %73 = arith.addf %71, %72 : vector<8x128xf32>
    %74 = arith.index_cast %c1_i32 : i32 to index
    %c0_20 = arith.constant 0 : index
    %c0_21 = arith.constant 0 : index
    %75 = vector.load %arg11[%74, %c0_20, %c0_21] : memref<8x8x128xf32, #tpu.memory_space<vmem>>, vector<1x8x128xf32>
    %76 = vector.shape_cast %75 : vector<1x8x128xf32> to vector<8x128xf32>
    %77 = vector.shape_cast %73 : vector<8x128xf32> to vector<1x8x128xf32>
    tpu.vector_store %arg11[%74, %c0_20, %c0_21], %77 {strides = array<i32>} : memref<8x8x128xf32, #tpu.memory_space<vmem>>, vector<1x8x128xf32>,
    %c2_i32 = arith.constant 2 : i32
    %78 = arith.index_cast %c2_i32 : i32 to index
    %c0_22 = arith.constant 0 : index
    %c0_23 = arith.constant 0 : index
    %79 = vector.load %arg3[%78, %c0_22, %c0_23] : memref<8x8x384xf32, #tpu.memory_space<vmem>>, vector<1x8x384xf32>
    %80 = vector.shape_cast %79 : vector<1x8x384xf32> to vector<8x384xf32>
    %cst_24 = arith.constant dense<0.000000e+00> : vector<8x384xf32>
    %81 = tpu.matmul %73, %3, %cst_24 {dimension_numbers = #tpu.dot_dimension_numbers<[1], [0], [0], [1], [0, 0, 1, 1], [], []>} : vector<8x128xf32>, vector<128x384xf32>, vector<8x384xf32> -> vector<8x384xf32>
    %82 = vector.extract_strided_slice %80 {offsets = [0, 0], sizes = [8, 128], strides = [1, 1]} : vector<8x384xf32> to vector<8x128xf32>
    %83 = vector.extract_strided_slice %81 {offsets = [0, 0], sizes = [8, 128], strides = [1, 1]} : vector<8x384xf32> to vector<8x128xf32>
    %84 = arith.addf %82, %83 : vector<8x128xf32>
    %85 = arith.negf %84 : vector<8x128xf32>
    %86 = math.exp %85 : vector<8x128xf32>
    %cst_25 = arith.constant 1.000000e+00 : f32
    %87 = vector.broadcast %cst_25 : f32 to vector<8x128xf32>
    %88 = arith.addf %87, %86 : vector<8x128xf32>
    %89 = arith.divf %87, %88 : vector<8x128xf32>
    %90 = vector.extract_strided_slice %80 {offsets = [0, 128], sizes = [8, 128], strides = [1, 1]} : vector<8x384xf32> to vector<8x128xf32>
    %91 = vector.extract_strided_slice %81 {offsets = [0, 128], sizes = [8, 128], strides = [1, 1]} : vector<8x384xf32> to vector<8x128xf32>
    %92 = arith.addf %90, %91 : vector<8x128xf32>
    %93 = arith.negf %92 : vector<8x128xf32>
    %94 = math.exp %93 : vector<8x128xf32>
    %cst_26 = arith.constant 1.000000e+00 : f32
    %95 = vector.broadcast %cst_26 : f32 to vector<8x128xf32>
    %96 = arith.addf %95, %94 : vector<8x128xf32>
    %97 = arith.divf %95, %96 : vector<8x128xf32>
    %98 = vector.extract_strided_slice %80 {offsets = [0, 256], sizes = [8, 128], strides = [1, 1]} : vector<8x384xf32> to vector<8x128xf32>
    %99 = vector.extract_strided_slice %81 {offsets = [0, 256], sizes = [8, 128], strides = [1, 1]} : vector<8x384xf32> to vector<8x128xf32>
    %100 = arith.addf %99, %6 : vector<8x128xf32>
    %101 = arith.mulf %89, %100 : vector<8x128xf32>
    %102 = arith.addf %98, %101 : vector<8x128xf32>
    %103 = math.tanh %102 : vector<8x128xf32>
    %cst_27 = arith.constant 1.000000e+00 : f32
    %104 = vector.broadcast %cst_27 : f32 to vector<8x128xf32>
    %105 = arith.subf %104, %97 : vector<8x128xf32>
    %106 = arith.mulf %105, %103 : vector<8x128xf32>
    %107 = arith.mulf %97, %73 : vector<8x128xf32>
    %108 = arith.addf %106, %107 : vector<8x128xf32>
    %109 = arith.index_cast %c2_i32 : i32 to index
    %c0_28 = arith.constant 0 : index
    %c0_29 = arith.constant 0 : index
    %110 = vector.load %arg11[%109, %c0_28, %c0_29] : memref<8x8x128xf32, #tpu.memory_space<vmem>>, vector<1x8x128xf32>
    %111 = vector.shape_cast %110 : vector<1x8x128xf32> to vector<8x128xf32>
    %112 = vector.shape_cast %108 : vector<8x128xf32> to vector<1x8x128xf32>
    tpu.vector_store %arg11[%109, %c0_28, %c0_29], %112 {strides = array<i32>} : memref<8x8x128xf32, #tpu.memory_space<vmem>>, vector<1x8x128xf32>,
    %c3_i32 = arith.constant 3 : i32
    %113 = arith.index_cast %c3_i32 : i32 to index
    %c0_30 = arith.constant 0 : index
    %c0_31 = arith.constant 0 : index
    %114 = vector.load %arg3[%113, %c0_30, %c0_31] : memref<8x8x384xf32, #tpu.memory_space<vmem>>, vector<1x8x384xf32>
    %115 = vector.shape_cast %114 : vector<1x8x384xf32> to vector<8x384xf32>
    %cst_32 = arith.constant dense<0.000000e+00> : vector<8x384xf32>
    %116 = tpu.matmul %108, %3, %cst_32 {dimension_numbers = #tpu.dot_dimension_numbers<[1], [0], [0], [1], [0, 0, 1, 1], [], []>} : vector<8x128xf32>, vector<128x384xf32>, vector<8x384xf32> -> vector<8x384xf32>
    %117 = vector.extract_strided_slice %115 {offsets = [0, 0], sizes = [8, 128], strides = [1, 1]} : vector<8x384xf32> to vector<8x128xf32>
    %118 = vector.extract_strided_slice %116 {offsets = [0, 0], sizes = [8, 128], strides = [1, 1]} : vector<8x384xf32> to vector<8x128xf32>
    %119 = arith.addf %117, %118 : vector<8x128xf32>
    %120 = arith.negf %119 : vector<8x128xf32>
    %121 = math.exp %120 : vector<8x128xf32>
    %cst_33 = arith.constant 1.000000e+00 : f32
    %122 = vector.broadcast %cst_33 : f32 to vector<8x128xf32>
    %123 = arith.addf %122, %121 : vector<8x128xf32>
    %124 = arith.divf %122, %123 : vector<8x128xf32>
    %125 = vector.extract_strided_slice %115 {offsets = [0, 128], sizes = [8, 128], strides = [1, 1]} : vector<8x384xf32> to vector<8x128xf32>
    %126 = vector.extract_strided_slice %116 {offsets = [0, 128], sizes = [8, 128], strides = [1, 1]} : vector<8x384xf32> to vector<8x128xf32>
    %127 = arith.addf %125, %126 : vector<8x128xf32>
    %128 = arith.negf %127 : vector<8x128xf32>
    %129 = math.exp %128 : vector<8x128xf32>
    %cst_34 = arith.constant 1.000000e+00 : f32
    %130 = vector.broadcast %cst_34 : f32 to vector<8x128xf32>
    %131 = arith.addf %130, %129 : vector<8x128xf32>
    %132 = arith.divf %130, %131 : vector<8x128xf32>
    %133 = vector.extract_strided_slice %115 {offsets = [0, 256], sizes = [8, 128], strides = [1, 1]} : vector<8x384xf32> to vector<8x128xf32>
    %134 = vector.extract_strided_slice %116 {offsets = [0, 256], sizes = [8, 128], strides = [1, 1]} : vector<8x384xf32> to vector<8x128xf32>
    %135 = arith.addf %134, %6 : vector<8x128xf32>
    %136 = arith.mulf %124, %135 : vector<8x128xf32>
    %137 = arith.addf %133, %136 : vector<8x128xf32>
    %138 = math.tanh %137 : vector<8x128xf32>
    %cst_35 = arith.constant 1.000000e+00 : f32
    %139 = vector.broadcast %cst_35 : f32 to vector<8x128xf32>
    %140 = arith.subf %139, %132 : vector<8x128xf32>
    %141 = arith.mulf %140, %138 : vector<8x128xf32>
    %142 = arith.mulf %132, %108 : vector<8x128xf32>
    %143 = arith.addf %141, %142 : vector<8x128xf32>
    %144 = arith.index_cast %c3_i32 : i32 to index
    %c0_36 = arith.constant 0 : index
    %c0_37 = arith.constant 0 : index
    %145 = vector.load %arg11[%144, %c0_36, %c0_37] : memref<8x8x128xf32, #tpu.memory_space<vmem>>, vector<1x8x128xf32>
    %146 = vector.shape_cast %145 : vector<1x8x128xf32> to vector<8x128xf32>
    %147 = vector.shape_cast %143 : vector<8x128xf32> to vector<1x8x128xf32>
    tpu.vector_store %arg11[%144, %c0_36, %c0_37], %147 {strides = array<i32>} : memref<8x8x128xf32, #tpu.memory_space<vmem>>, vector<1x8x128xf32>,
    %c4_i32 = arith.constant 4 : i32
    %148 = arith.index_cast %c4_i32 : i32 to index
    %c0_38 = arith.constant 0 : index
    %c0_39 = arith.constant 0 : index
    %149 = vector.load %arg3[%148, %c0_38, %c0_39] : memref<8x8x384xf32, #tpu.memory_space<vmem>>, vector<1x8x384xf32>
    %150 = vector.shape_cast %149 : vector<1x8x384xf32> to vector<8x384xf32>
    %cst_40 = arith.constant dense<0.000000e+00> : vector<8x384xf32>
    %151 = tpu.matmul %143, %3, %cst_40 {dimension_numbers = #tpu.dot_dimension_numbers<[1], [0], [0], [1], [0, 0, 1, 1], [], []>} : vector<8x128xf32>, vector<128x384xf32>, vector<8x384xf32> -> vector<8x384xf32>
    %152 = vector.extract_strided_slice %150 {offsets = [0, 0], sizes = [8, 128], strides = [1, 1]} : vector<8x384xf32> to vector<8x128xf32>
    %153 = vector.extract_strided_slice %151 {offsets = [0, 0], sizes = [8, 128], strides = [1, 1]} : vector<8x384xf32> to vector<8x128xf32>
    %154 = arith.addf %152, %153 : vector<8x128xf32>
    %155 = arith.negf %154 : vector<8x128xf32>
    %156 = math.exp %155 : vector<8x128xf32>
    %cst_41 = arith.constant 1.000000e+00 : f32
    %157 = vector.broadcast %cst_41 : f32 to vector<8x128xf32>
    %158 = arith.addf %157, %156 : vector<8x128xf32>
    %159 = arith.divf %157, %158 : vector<8x128xf32>
    %160 = vector.extract_strided_slice %150 {offsets = [0, 128], sizes = [8, 128], strides = [1, 1]} : vector<8x384xf32> to vector<8x128xf32>
    %161 = vector.extract_strided_slice %151 {offsets = [0, 128], sizes = [8, 128], strides = [1, 1]} : vector<8x384xf32> to vector<8x128xf32>
    %162 = arith.addf %160, %161 : vector<8x128xf32>
    %163 = arith.negf %162 : vector<8x128xf32>
    %164 = math.exp %163 : vector<8x128xf32>
    %cst_42 = arith.constant 1.000000e+00 : f32
    %165 = vector.broadcast %cst_42 : f32 to vector<8x128xf32>
    %166 = arith.addf %165, %164 : vector<8x128xf32>
    %167 = arith.divf %165, %166 : vector<8x128xf32>
    %168 = vector.extract_strided_slice %150 {offsets = [0, 256], sizes = [8, 128], strides = [1, 1]} : vector<8x384xf32> to vector<8x128xf32>
    %169 = vector.extract_strided_slice %151 {offsets = [0, 256], sizes = [8, 128], strides = [1, 1]} : vector<8x384xf32> to vector<8x128xf32>
    %170 = arith.addf %169, %6 : vector<8x128xf32>
    %171 = arith.mulf %159, %170 : vector<8x128xf32>
    %172 = arith.addf %168, %171 : vector<8x128xf32>
    %173 = math.tanh %172 : vector<8x128xf32>
    %cst_43 = arith.constant 1.000000e+00 : f32
    %174 = vector.broadcast %cst_43 : f32 to vector<8x128xf32>
    %175 = arith.subf %174, %167 : vector<8x128xf32>
    %176 = arith.mulf %175, %173 : vector<8x128xf32>
    %177 = arith.mulf %167, %143 : vector<8x128xf32>
    %178 = arith.addf %176, %177 : vector<8x128xf32>
    %179 = arith.index_cast %c4_i32 : i32 to index
    %c0_44 = arith.constant 0 : index
    %c0_45 = arith.constant 0 : index
    %180 = vector.load %arg11[%179, %c0_44, %c0_45] : memref<8x8x128xf32, #tpu.memory_space<vmem>>, vector<1x8x128xf32>
    %181 = vector.shape_cast %180 : vector<1x8x128xf32> to vector<8x128xf32>
    %182 = vector.shape_cast %178 : vector<8x128xf32> to vector<1x8x128xf32>
    tpu.vector_store %arg11[%179, %c0_44, %c0_45], %182 {strides = array<i32>} : memref<8x8x128xf32, #tpu.memory_space<vmem>>, vector<1x8x128xf32>,
    %c5_i32 = arith.constant 5 : i32
    %183 = arith.index_cast %c5_i32 : i32 to index
    %c0_46 = arith.constant 0 : index
    %c0_47 = arith.constant 0 : index
    %184 = vector.load %arg3[%183, %c0_46, %c0_47] : memref<8x8x384xf32, #tpu.memory_space<vmem>>, vector<1x8x384xf32>
    %185 = vector.shape_cast %184 : vector<1x8x384xf32> to vector<8x384xf32>
    %cst_48 = arith.constant dense<0.000000e+00> : vector<8x384xf32>
    %186 = tpu.matmul %178, %3, %cst_48 {dimension_numbers = #tpu.dot_dimension_numbers<[1], [0], [0], [1], [0, 0, 1, 1], [], []>} : vector<8x128xf32>, vector<128x384xf32>, vector<8x384xf32> -> vector<8x384xf32>
    %187 = vector.extract_strided_slice %185 {offsets = [0, 0], sizes = [8, 128], strides = [1, 1]} : vector<8x384xf32> to vector<8x128xf32>
    %188 = vector.extract_strided_slice %186 {offsets = [0, 0], sizes = [8, 128], strides = [1, 1]} : vector<8x384xf32> to vector<8x128xf32>
    %189 = arith.addf %187, %188 : vector<8x128xf32>
    %190 = arith.negf %189 : vector<8x128xf32>
    %191 = math.exp %190 : vector<8x128xf32>
    %cst_49 = arith.constant 1.000000e+00 : f32
    %192 = vector.broadcast %cst_49 : f32 to vector<8x128xf32>
    %193 = arith.addf %192, %191 : vector<8x128xf32>
    %194 = arith.divf %192, %193 : vector<8x128xf32>
    %195 = vector.extract_strided_slice %185 {offsets = [0, 128], sizes = [8, 128], strides = [1, 1]} : vector<8x384xf32> to vector<8x128xf32>
    %196 = vector.extract_strided_slice %186 {offsets = [0, 128], sizes = [8, 128], strides = [1, 1]} : vector<8x384xf32> to vector<8x128xf32>
    %197 = arith.addf %195, %196 : vector<8x128xf32>
    %198 = arith.negf %197 : vector<8x128xf32>
    %199 = math.exp %198 : vector<8x128xf32>
    %cst_50 = arith.constant 1.000000e+00 : f32
    %200 = vector.broadcast %cst_50 : f32 to vector<8x128xf32>
    %201 = arith.addf %200, %199 : vector<8x128xf32>
    %202 = arith.divf %200, %201 : vector<8x128xf32>
    %203 = vector.extract_strided_slice %185 {offsets = [0, 256], sizes = [8, 128], strides = [1, 1]} : vector<8x384xf32> to vector<8x128xf32>
    %204 = vector.extract_strided_slice %186 {offsets = [0, 256], sizes = [8, 128], strides = [1, 1]} : vector<8x384xf32> to vector<8x128xf32>
    %205 = arith.addf %204, %6 : vector<8x128xf32>
    %206 = arith.mulf %194, %205 : vector<8x128xf32>
    %207 = arith.addf %203, %206 : vector<8x128xf32>
    %208 = math.tanh %207 : vector<8x128xf32>
    %cst_51 = arith.constant 1.000000e+00 : f32
    %209 = vector.broadcast %cst_51 : f32 to vector<8x128xf32>
    %210 = arith.subf %209, %202 : vector<8x128xf32>
    %211 = arith.mulf %210, %208 : vector<8x128xf32>
    %212 = arith.mulf %202, %178 : vector<8x128xf32>
    %213 = arith.addf %211, %212 : vector<8x128xf32>
    %214 = arith.index_cast %c5_i32 : i32 to index
    %c0_52 = arith.constant 0 : index
    %c0_53 = arith.constant 0 : index
    %215 = vector.load %arg11[%214, %c0_52, %c0_53] : memref<8x8x128xf32, #tpu.memory_space<vmem>>, vector<1x8x128xf32>
    %216 = vector.shape_cast %215 : vector<1x8x128xf32> to vector<8x128xf32>
    %217 = vector.shape_cast %213 : vector<8x128xf32> to vector<1x8x128xf32>
    tpu.vector_store %arg11[%214, %c0_52, %c0_53], %217 {strides = array<i32>} : memref<8x8x128xf32, #tpu.memory_space<vmem>>, vector<1x8x128xf32>,
    %c6_i32 = arith.constant 6 : i32
    %218 = arith.index_cast %c6_i32 : i32 to index
    %c0_54 = arith.constant 0 : index
    %c0_55 = arith.constant 0 : index
    %219 = vector.load %arg3[%218, %c0_54, %c0_55] : memref<8x8x384xf32, #tpu.memory_space<vmem>>, vector<1x8x384xf32>
    %220 = vector.shape_cast %219 : vector<1x8x384xf32> to vector<8x384xf32>
    %cst_56 = arith.constant dense<0.000000e+00> : vector<8x384xf32>
    %221 = tpu.matmul %213, %3, %cst_56 {dimension_numbers = #tpu.dot_dimension_numbers<[1], [0], [0], [1], [0, 0, 1, 1], [], []>} : vector<8x128xf32>, vector<128x384xf32>, vector<8x384xf32> -> vector<8x384xf32>
    %222 = vector.extract_strided_slice %220 {offsets = [0, 0], sizes = [8, 128], strides = [1, 1]} : vector<8x384xf32> to vector<8x128xf32>
    %223 = vector.extract_strided_slice %221 {offsets = [0, 0], sizes = [8, 128], strides = [1, 1]} : vector<8x384xf32> to vector<8x128xf32>
    %224 = arith.addf %222, %223 : vector<8x128xf32>
    %225 = arith.negf %224 : vector<8x128xf32>
    %226 = math.exp %225 : vector<8x128xf32>
    %cst_57 = arith.constant 1.000000e+00 : f32
    %227 = vector.broadcast %cst_57 : f32 to vector<8x128xf32>
    %228 = arith.addf %227, %226 : vector<8x128xf32>
    %229 = arith.divf %227, %228 : vector<8x128xf32>
    %230 = vector.extract_strided_slice %220 {offsets = [0, 128], sizes = [8, 128], strides = [1, 1]} : vector<8x384xf32> to vector<8x128xf32>
    %231 = vector.extract_strided_slice %221 {offsets = [0, 128], sizes = [8, 128], strides = [1, 1]} : vector<8x384xf32> to vector<8x128xf32>
    %232 = arith.addf %230, %231 : vector<8x128xf32>
    %233 = arith.negf %232 : vector<8x128xf32>
    %234 = math.exp %233 : vector<8x128xf32>
    %cst_58 = arith.constant 1.000000e+00 : f32
    %235 = vector.broadcast %cst_58 : f32 to vector<8x128xf32>
    %236 = arith.addf %235, %234 : vector<8x128xf32>
    %237 = arith.divf %235, %236 : vector<8x128xf32>
    %238 = vector.extract_strided_slice %220 {offsets = [0, 256], sizes = [8, 128], strides = [1, 1]} : vector<8x384xf32> to vector<8x128xf32>
    %239 = vector.extract_strided_slice %221 {offsets = [0, 256], sizes = [8, 128], strides = [1, 1]} : vector<8x384xf32> to vector<8x128xf32>
    %240 = arith.addf %239, %6 : vector<8x128xf32>
    %241 = arith.mulf %229, %240 : vector<8x128xf32>
    %242 = arith.addf %238, %241 : vector<8x128xf32>
    %243 = math.tanh %242 : vector<8x128xf32>
    %cst_59 = arith.constant 1.000000e+00 : f32
    %244 = vector.broadcast %cst_59 : f32 to vector<8x128xf32>
    %245 = arith.subf %244, %237 : vector<8x128xf32>
    %246 = arith.mulf %245, %243 : vector<8x128xf32>
    %247 = arith.mulf %237, %213 : vector<8x128xf32>
    %248 = arith.addf %246, %247 : vector<8x128xf32>
    %249 = arith.index_cast %c6_i32 : i32 to index
    %c0_60 = arith.constant 0 : index
    %c0_61 = arith.constant 0 : index
    %250 = vector.load %arg11[%249, %c0_60, %c0_61] : memref<8x8x128xf32, #tpu.memory_space<vmem>>, vector<1x8x128xf32>
    %251 = vector.shape_cast %250 : vector<1x8x128xf32> to vector<8x128xf32>
    %252 = vector.shape_cast %248 : vector<8x128xf32> to vector<1x8x128xf32>
    tpu.vector_store %arg11[%249, %c0_60, %c0_61], %252 {strides = array<i32>} : memref<8x8x128xf32, #tpu.memory_space<vmem>>, vector<1x8x128xf32>,
    %c7_i32 = arith.constant 7 : i32
    %253 = arith.index_cast %c7_i32 : i32 to index
    %c0_62 = arith.constant 0 : index
    %c0_63 = arith.constant 0 : index
    %254 = vector.load %arg3[%253, %c0_62, %c0_63] : memref<8x8x384xf32, #tpu.memory_space<vmem>>, vector<1x8x384xf32>
    %255 = vector.shape_cast %254 : vector<1x8x384xf32> to vector<8x384xf32>
    %cst_64 = arith.constant dense<0.000000e+00> : vector<8x384xf32>
    %256 = tpu.matmul %248, %3, %cst_64 {dimension_numbers = #tpu.dot_dimension_numbers<[1], [0], [0], [1], [0, 0, 1, 1], [], []>} : vector<8x128xf32>, vector<128x384xf32>, vector<8x384xf32> -> vector<8x384xf32>
    %257 = vector.extract_strided_slice %255 {offsets = [0, 0], sizes = [8, 128], strides = [1, 1]} : vector<8x384xf32> to vector<8x128xf32>
    %258 = vector.extract_strided_slice %256 {offsets = [0, 0], sizes = [8, 128], strides = [1, 1]} : vector<8x384xf32> to vector<8x128xf32>
    %259 = arith.addf %257, %258 : vector<8x128xf32>
    %260 = arith.negf %259 : vector<8x128xf32>
    %261 = math.exp %260 : vector<8x128xf32>
    %cst_65 = arith.constant 1.000000e+00 : f32
    %262 = vector.broadcast %cst_65 : f32 to vector<8x128xf32>
    %263 = arith.addf %262, %261 : vector<8x128xf32>
    %264 = arith.divf %262, %263 : vector<8x128xf32>
    %265 = vector.extract_strided_slice %255 {offsets = [0, 128], sizes = [8, 128], strides = [1, 1]} : vector<8x384xf32> to vector<8x128xf32>
    %266 = vector.extract_strided_slice %256 {offsets = [0, 128], sizes = [8, 128], strides = [1, 1]} : vector<8x384xf32> to vector<8x128xf32>
    %267 = arith.addf %265, %266 : vector<8x128xf32>
    %268 = arith.negf %267 : vector<8x128xf32>
    %269 = math.exp %268 : vector<8x128xf32>
    %cst_66 = arith.constant 1.000000e+00 : f32
    %270 = vector.broadcast %cst_66 : f32 to vector<8x128xf32>
    %271 = arith.addf %270, %269 : vector<8x128xf32>
    %272 = arith.divf %270, %271 : vector<8x128xf32>
    %273 = vector.extract_strided_slice %255 {offsets = [0, 256], sizes = [8, 128], strides = [1, 1]} : vector<8x384xf32> to vector<8x128xf32>
    %274 = vector.extract_strided_slice %256 {offsets = [0, 256], sizes = [8, 128], strides = [1, 1]} : vector<8x384xf32> to vector<8x128xf32>
    %275 = arith.addf %274, %6 : vector<8x128xf32>
    %276 = arith.mulf %264, %275 : vector<8x128xf32>
    %277 = arith.addf %273, %276 : vector<8x128xf32>
    %278 = math.tanh %277 : vector<8x128xf32>
    %cst_67 = arith.constant 1.000000e+00 : f32
    %279 = vector.broadcast %cst_67 : f32 to vector<8x128xf32>
    %280 = arith.subf %279, %272 : vector<8x128xf32>
    %281 = arith.mulf %280, %278 : vector<8x128xf32>
    %282 = arith.mulf %272, %248 : vector<8x128xf32>
    %283 = arith.addf %281, %282 : vector<8x128xf32>
    %284 = arith.index_cast %c7_i32 : i32 to index
    %c0_68 = arith.constant 0 : index
    %c0_69 = arith.constant 0 : index
    %285 = vector.load %arg11[%284, %c0_68, %c0_69] : memref<8x8x128xf32, #tpu.memory_space<vmem>>, vector<1x8x128xf32>
    %286 = vector.shape_cast %285 : vector<1x8x128xf32> to vector<8x128xf32>
    %287 = vector.shape_cast %283 : vector<8x128xf32> to vector<1x8x128xf32>
    tpu.vector_store %arg11[%284, %c0_68, %c0_69], %287 {strides = array<i32>} : memref<8x8x128xf32, #tpu.memory_space<vmem>>, vector<1x8x128xf32>,
    %c8_i32 = arith.constant 8 : i32
    %c0_70 = arith.constant 0 : index
    %c0_71 = arith.constant 0 : index
    %288 = vector.load %arg10[%c0_70, %c0_71] : memref<8x128xf32, #tpu.memory_space<vmem>>, vector<8x128xf32>
    tpu.vector_store %arg10[%c0_70, %c0_71], %283 {strides = array<i32>} : memref<8x128xf32, #tpu.memory_space<vmem>>, vector<8x128xf32>,
    %c0_72 = arith.constant 0 : index
    %c0_73 = arith.constant 0 : index
    %c0_74 = arith.constant 0 : index
    %289 = vector.load %arg11[%c0_72, %c0_73, %c0_74] : memref<8x8x128xf32, #tpu.memory_space<vmem>>, vector<8x8x128xf32>
    %290 = vector.shape_cast %289 : vector<8x8x128xf32> to vector<64x128xf32>
    %c0_75 = arith.constant 0 : index
    %c0_76 = arith.constant 0 : index
    %291 = vector.load %arg6[%c0_75, %c0_76] : memref<128x128xf32, #tpu.memory_space<vmem>>, vector<128x128xf32>
    %cst_77 = arith.constant dense<0.000000e+00> : vector<64x128xf32>
    %292 = tpu.matmul %290, %291, %cst_77 {dimension_numbers = #tpu.dot_dimension_numbers<[1], [0], [0], [1], [0, 0, 1, 1], [], []>} : vector<64x128xf32>, vector<128x128xf32>, vector<64x128xf32> -> vector<64x128xf32>
    %c0_78 = arith.constant 0 : index
    %c0_79 = arith.constant 0 : index
    %293 = vector.load %arg7[%c0_78, %c0_79] : memref<1x128xf32, #tpu.memory_space<vmem>>, vector<1x128xf32>
    %294 = vector.shape_cast %293 : vector<1x128xf32> to vector<1x128xf32>
    %295 = vector.broadcast %294 : vector<1x128xf32> to vector<64x128xf32>
    %296 = arith.addf %292, %295 : vector<64x128xf32>
    %297 = vector.shape_cast %296 : vector<64x128xf32> to vector<8x8x128xf32>
    %c0_80 = arith.constant 0 : index
    %c0_81 = arith.constant 0 : index
    %c0_82 = arith.constant 0 : index
    %298 = vector.load %arg8[%c0_80, %c0_81, %c0_82] : memref<8x8x128xf32, #tpu.memory_space<vmem>>, vector<8x8x128xf32>
    tpu.vector_store %arg8[%c0_80, %c0_81, %c0_82], %297 {strides = array<i32>} : memref<8x8x128xf32, #tpu.memory_space<vmem>>, vector<8x8x128xf32>,
    %c0_i32_83 = arith.constant 0 : i32
    %299 = arith.cmpi eq, %arg1, %c0_i32_83 : i32
    %300 = arith.extui %299 : i1 to i32
    %c0_i32_84 = arith.constant 0 : i32
    %301 = arith.cmpi ne, %300, %c0_i32_84 : i32
    scf.if %301 {
      %c0_85 = arith.constant 0 : index
      %c0_86 = arith.constant 0 : index
      %302 = vector.load %arg9[%c0_85, %c0_86] : memref<8x128xf32, #tpu.memory_space<vmem>>, vector<8x128xf32>
      tpu.vector_store %arg9[%c0_85, %c0_86], %283 {strides = array<i32>} : memref<8x128xf32, #tpu.memory_space<vmem>>, vector<8x128xf32>,
    } else {
    }
    return
  }
  func.func @transform_0(%arg0: i32, %arg1: i32) -> (i32, i32) {
    %c0_i32 = arith.constant 0 : i32
    %c0_i32_0 = arith.constant 0 : i32
    return %arg0, %c0_i32 : i32, i32
  }
  func.func @transform_1(%arg0: i32, %arg1: i32) -> (i32, i32, i32) {
    %c0_i32 = arith.constant 0 : i32
    %c0_i32_0 = arith.constant 0 : i32
    return %arg1, %arg0, %c0_i32 : i32, i32, i32
  }
  func.func @transform_2(%arg0: i32, %arg1: i32) -> (i32, i32) {
    %c0_i32 = arith.constant 0 : i32
    %c0_i32_0 = arith.constant 0 : i32
    %c0_i32_1 = arith.constant 0 : i32
    return %c0_i32, %c0_i32_0 : i32, i32
  }
  func.func @transform_3(%arg0: i32, %arg1: i32) -> (i32, i32) {
    %c0_i32 = arith.constant 0 : i32
    %c0_i32_0 = arith.constant 0 : i32
    %c0_i32_1 = arith.constant 0 : i32
    return %c0_i32, %c0_i32_0 : i32, i32
  }
  func.func @transform_4(%arg0: i32, %arg1: i32) -> (i32, i32) {
    %c0_i32 = arith.constant 0 : i32
    %c0_i32_0 = arith.constant 0 : i32
    %c0_i32_1 = arith.constant 0 : i32
    return %c0_i32, %c0_i32_0 : i32, i32
  }
  func.func @transform_5(%arg0: i32, %arg1: i32) -> (i32, i32) {
    %c0_i32 = arith.constant 0 : i32
    %c0_i32_0 = arith.constant 0 : i32
    %c0_i32_1 = arith.constant 0 : i32
    return %c0_i32, %c0_i32_0 : i32, i32
  }
  func.func @transform_6(%arg0: i32, %arg1: i32) -> (i32, i32, i32) {
    %c0_i32 = arith.constant 0 : i32
    %c0_i32_0 = arith.constant 0 : i32
    return %arg1, %arg0, %c0_i32 : i32, i32, i32
  }
  func.func @transform_7(%arg0: i32, %arg1: i32) -> (i32, i32) {
    %c0_i32 = arith.constant 0 : i32
    %c0_i32_0 = arith.constant 0 : i32
    return %arg0, %c0_i32 : i32, i32
  }
}

</mosaic_0001>

<llo_original>
// kernel: reco_gru_flux_forward.2
$region0: #{reco_gru_flux_forward.2}
  #allocation0 [shape = 'u32[]', space=smem, size = 0x4, offset = 0x4, fixed_abs, tag = 'smem constant byte address 0x4 - core index']
  #allocation1 [shape = 'u32[144,128]{1,0:T(1,128)}', space=vmem, size = 0x12000, scoped, tag = 'internal scratch']
  #allocation2 [shape = 'f32[8,128]{1,0:T(8,128)}', space=vmem, size = 0x1000, scoped, tag = 'scratch operand']
  %s0 = inlined_call_operand.vmem [shape: f32[8,128], index: 0, kind: input, shape index: {}]
  %s1 = inlined_call_operand.vmem [shape: f32[8,8,384], index: 1, kind: input, shape index: {}]
  %s2 = inlined_call_operand.hbm [shape: f32[128,384], index: 2, kind: input, shape index: {}]
  %s3 = inlined_call_operand.vmem [shape: f32[1,128], index: 3, kind: input, shape index: {}]
  %s4 = inlined_call_operand.vmem [shape: f32[8,8,128], index: 4, kind: output, shape index: {0}]
  %s5 = inlined_call_operand.vmem [shape: f32[8,128], index: 5, kind: output, shape index: {1}]
  %6 = xla_tuple %s4, %s5
  %s7 = sld [smem:[#allocation0]]
  $region46: #{reco_gru_flux_forward.2} parent=0
    _
  %s9 = ssub.s32 1, %s7
  %s10 = scalar_select 0, %s9, %s7
  $region1: #{reco_gru_flux_forward.2} parent=0
    #allocation3 [shape = 'u8[196608]{0}', space=vmem, size = 0x30000, scoped, tag = 'input window, operand 2, single buffered']
    #allocation4 [shape = 's32[1]{0}', space=sflag, size = 0x4, scoped, tag = 'scoped memory for reco_gru_flux_forward.2']
    %11 = vsyncpa [#allocation4], 0
    // Predicated region
    $region2: #{reco_gru_flux_forward.2} parent=1 // pred_check
      _
    $region3: #{reco_gru_flux_forward.2} parent=1 // pred_check_branch
      %13 = sbr.rel (0) target = $region5
    $region4: #{reco_gru_flux_forward.2} parent=1 // pred_region
      _
    $region5: #{reco_gru_flux_forward.2} parent=1 // pred_fallthru
      _
    // Predicated region
    $region6: #{reco_gru_flux_forward.2} parent=1 // pred_check
      _
    $region7: #{reco_gru_flux_forward.2} parent=1 // pred_check_branch
      %15 = sbr.rel (0) target = $region9
    $region8: #{reco_gru_flux_forward.2} parent=1 // pred_region
      _
    $region9: #{reco_gru_flux_forward.2} parent=1 // pred_fallthru
      _
    // Predicated region
    $region10: #{reco_gru_flux_forward.2} parent=1 // pred_check
      _
    $region11: #{reco_gru_flux_forward.2} parent=1 // pred_check_branch
      %17 = sbr.rel (0) target = $region13
    $region12: #{reco_gru_flux_forward.2} parent=1 // pred_region
      %s19 = ssub.s32 6144, 6144
      %20 = vsyncadd [#allocation4], %s19
      %s21 = sshll.u32 [#allocation3], 4
      %s22 = int_to_ptr.vmem [resolvable:$true] %s21
      %27 = dma.hbm_to_vmem [thread:$0]  %s2, 6144, %s22, [#allocation4], 384, 384, 24
    $region13: #{reco_gru_flux_forward.2} parent=1 // pred_fallthru
      _
    // Predicated region
    $region14: #{reco_gru_flux_forward.2} parent=1 // pred_check
      _
    $region15: #{reco_gru_flux_forward.2} parent=1 // pred_check_branch
      %29 = sbr.rel (0) target = $region17
    $region16: #{reco_gru_flux_forward.2} parent=1 // pred_region
      _
    $region17: #{reco_gru_flux_forward.2} parent=1 // pred_fallthru
      _
    // Predicated region
    $region18: #{reco_gru_flux_forward.2} parent=1 // pred_check
      _
    $region19: #{reco_gru_flux_forward.2} parent=1 // pred_check_branch
      %31 = sbr.rel (0) target = $region21
    $region20: #{reco_gru_flux_forward.2} parent=1 // pred_region
      %32 = dma.done [#allocation4], 6144
    $region21: #{reco_gru_flux_forward.2} parent=1 // pred_fallthru
      _
    %p33 = scmp.eq.s32.totalorder 0, 0
    // Predicated region
    $region22: #{reco_gru_flux_forward.2} parent=1 // pred_check
      %p34 = pneg %p33
    $region23: #{reco_gru_flux_forward.2} parent=1 // pred_check_branch
      %36 = sbr.rel (%p34) target = $region25
    $region24: #{reco_gru_flux_forward.2} parent=1 // pred_region
      %v37 = vld [vmem:[%s0] sm:$0xff]
      %38 = vst [vmem:[#allocation2] sm:$0xff] %v37
    $region25: #{reco_gru_flux_forward.2} parent=1 // pred_fallthru
      _
    %v39 = vld [vmem:[#allocation3] sm:$0xff]
    %v40 = vld [vmem:[#allocation3 + $0x8] sm:$0xff]
    %v41 = vld [vmem:[#allocation3 + $0x10] sm:$0xff]
    %v42 = vld [vmem:[#allocation3 + $0x18] sm:$0xff]
    %v43 = vld [vmem:[#allocation3 + $0x20] sm:$0xff]
    %v44 = vld [vmem:[#allocation3 + $0x28] sm:$0xff]
    %v45 = vld [vmem:[#allocation3 + $0x30] sm:$0xff]
    %v46 = vld [vmem:[#allocation3 + $0x38] sm:$0xff]
    %v47 = vld [vmem:[#allocation3 + $0x40] sm:$0xff]
    %v48 = vld [vmem:[#allocation3 + $0x48] sm:$0xff]
    %v49 = vld [vmem:[#allocation3 + $0x50] sm:$0xff]
    %v50 = vld [vmem:[#allocation3 + $0x58] sm:$0xff]
    %v51 = vld [vmem:[#allocation3 + $0x60] sm:$0xff]
    %v52 = vld [vmem:[#allocation3 + $0x68] sm:$0xff]
    %v53 = vld [vmem:[#allocation3 + $0x70] sm:$0xff]
    %v54 = vld [vmem:[#allocation3 + $0x78] sm:$0xff]
    %v55 = vld [vmem:[#allocation3 + $0x80] sm:$0xff]
    %v56 = vld [vmem:[#allocation3 + $0x88] sm:$0xff]
    %v57 = vld [vmem:[#allocation3 + $0x90] sm:$0xff]
    %v58 = vld [vmem:[#allocation3 + $0x98] sm:$0xff]
    %v59 = vld [vmem:[#allocation3 + $0xa0] sm:$0xff]
    %v60 = vld [vmem:[#allocation3 + $0xa8] sm:$0xff]
    %v61 = vld [vmem:[#allocation3 + $0xb0] sm:$0xff]
    %v62 = vld [vmem:[#allocation3 + $0xb8] sm:$0xff]
    %v63 = vld [vmem:[#allocation3 + $0xc0] sm:$0xff]
    %v64 = vld [vmem:[#allocation3 + $0xc8] sm:$0xff]
    %v65 = vld [vmem:[#allocation3 + $0xd0] sm:$0xff]
    %v66 = vld [vmem:[#allocation3 + $0xd8] sm:$0xff]
    %v67 = vld [vmem:[#allocation3 + $0xe0] sm:$0xff]
    %v68 = vld [vmem:[#allocation3 + $0xe8] sm:$0xff]
    %v69 = vld [vmem:[#allocation3 + $0xf0] sm:$0xff]
    %v70 = vld [vmem:[#allocation3 + $0xf8] sm:$0xff]
    %v71 = vld [vmem:[#allocation3 + $0x100] sm:$0xff]
    %v72 = vld [vmem:[#allocation3 + $0x108] sm:$0xff]
    %v73 = vld [vmem:[#allocation3 + $0x110] sm:$0xff]
    %v74 = vld [vmem:[#allocation3 + $0x118] sm:$0xff]
    %v75 = vld [vmem:[#allocation3 + $0x120] sm:$0xff]
    %v76 = vld [vmem:[#allocation3 + $0x128] sm:$0xff]
    %v77 = vld [vmem:[#allocation3 + $0x130] sm:$0xff]
    %v78 = vld [vmem:[#allocation3 + $0x138] sm:$0xff]
    %v79 = vld [vmem:[#allocation3 + $0x140] sm:$0xff]
    %v80 = vld [vmem:[#allocation3 + $0x148] sm:$0xff]
    %v81 = vld [vmem:[#allocation3 + $0x150] sm:$0xff]
    %v82 = vld [vmem:[#allocation3 + $0x158] sm:$0xff]
    %v83 = vld [vmem:[#allocation3 + $0x160] sm:$0xff]
    %v84 = vld [vmem:[#allocation3 + $0x168] sm:$0xff]
    %v85 = vld [vmem:[#allocation3 + $0x170] sm:$0xff]
    %v86 = vld [vmem:[#allocation3 + $0x178] sm:$0xff]
    %v87 = vld [vmem:[%s3] sm:$0x1]
    %v89 = vlaneseq
    %v90 = vshrl.u32 %v89, 7
    %v91 = vsub.s32 0, %v90
    %v92 = vrot.slane %v87, %v91
    %v94 = vld [vmem:[#allocation2] sm:$0xff]
    %v95 = vld [vmem:[%s1] sm:$0xff]
    %v96 = vld [vmem:[%s1 + $0x8] sm:$0xff]
    %v97 = vld [vmem:[%s1 + $0x10] sm:$0xff]
    %98 = vmatprep.subr.mxu0 %v40
    %99 = vmatpush1.msra.mxu0 %v39
    %100 = vmatprep.subr.mxu0 %v43
    %101 = vmatpush1.msra.mxu0 %v42
    %102 = vmatprep.subr.mxu0 %v46
    %103 = vmatpush1.msra.mxu0 %v45
    %104 = vmatprep.subr.mxu0 %v49
    %105 = vmatpush1.msra.mxu0 %v48
    %106 = vmatprep.subr.mxu0 %v52
    %107 = vmatpush1.msra.mxu0 %v51
    %108 = vmatprep.subr.mxu0 %v55
    %109 = vmatpush1.msra.mxu0 %v54
    %110 = vmatprep.subr.mxu0 %v58
    %111 = vmatpush1.msra.mxu0 %v57
    %112 = vmatprep.subr.mxu0 %v61
    %113 = vmatpush1.msra.mxu0 %v60
    %114 = vmatprep.subr.mxu0 %v64
    %115 = vmatpush1.msra.mxu0 %v63
    %116 = vmatprep.subr.mxu0 %v67
    %117 = vmatpush1.msra.mxu0 %v66
    %118 = vmatprep.subr.mxu0 %v70
    %119 = vmatpush1.msra.mxu0 %v69
    %120 = vmatprep.subr.mxu0 %v73
    %121 = vmatpush1.msra.mxu0 %v72
    %122 = vmatprep.subr.mxu0 %v76
    %123 = vmatpush1.msra.mxu0 %v75
    %124 = vmatprep.subr.mxu0 %v79
    %125 = vmatpush1.msra.mxu0 %v78
    %126 = vmatprep.subr.mxu0 %v82
    %127 = vmatpush1.msra.mxu0 %v81
    %128 = vmatprep.subr.mxu0 %v85
    %129 = vmatpush1.msra.mxu0 %v84
    %130 = vmatprep.subr.mxu0 0.0
    %131 = vmatpush1.msra.mxu0 0.0
    %132 = vmatprep.subr.mxu0 0.0
    %133 = vmatpush1.msra.mxu0 0.0
    %134 = vmatprep.subr.mxu0 0.0
    %135 = vmatpush1.msra.mxu0 0.0
    %136 = vmatprep.subr.mxu0 0.0
    %137 = vmatpush1.msra.mxu0 0.0
    %138 = vmatprep.subr.mxu0 0.0
    %139 = vmatpush1.msra.mxu0 0.0
    %140 = vmatprep.subr.mxu0 0.0
    %141 = vmatpush1.msra.mxu0 0.0
    %142 = vmatprep.subr.mxu0 0.0
    %143 = vmatpush1.msra.mxu0 0.0
    %144 = vmatprep.subr.mxu0 0.0
    %145 = vmatpush1.msra.mxu0 0.0
    %146 = vmatprep.subr.mxu0 0.0
    %147 = vmatpush1.msra.mxu0 0.0
    %148 = vmatprep.subr.mxu0 0.0
    %149 = vmatpush1.msra.mxu0 0.0
    %150 = vmatprep.subr.mxu0 0.0
    %151 = vmatpush1.msra.mxu0 0.0
    %152 = vmatprep.subr.mxu0 0.0
    %153 = vmatpush1.msra.mxu0 0.0
    %154 = vmatprep.subr.mxu0 0.0
    %155 = vmatpush1.msra.mxu0 0.0
    %156 = vmatprep.subr.mxu0 0.0
    %157 = vmatpush1.msra.mxu0 0.0
    %158 = vmatprep.subr.mxu0 0.0
    %159 = vmatpush1.msra.mxu0 0.0
    %160 = vmatprep.subr.mxu0 0.0
    %161 = vmatpush1.msra.mxu0 0.0
    %162 = vmatprep.mubr.f32.mxu0 0.0
    %163 = vmatmul.mubr.f32.gmra.mrb[0].mxu0 %v94
    %v164 = vpop.f32.mrb[0].mxu0
    %v165 = vadd.f32 0.0, %v164
    %v166 = vpop.f32.mrb[0].mxu0
    %v167 = vadd.f32 0.0, %v166
    %168 = vdwg.mxu0
    %169 = vmatprep.subr.mxu0 0.0
    %170 = vmatpush1.msra.mxu0 %v41
    %171 = vmatprep.subr.mxu0 0.0
    %172 = vmatpush1.msra.mxu0 %v44
    %173 = vmatprep.subr.mxu0 0.0
    %174 = vmatpush1.msra.mxu0 %v47
    %175 = vmatprep.subr.mxu0 0.0
    %176 = vmatpush1.msra.mxu0 %v50
    %177 = vmatprep.subr.mxu0 0.0
    %178 = vmatpush1.msra.mxu0 %v53
    %179 = vmatprep.subr.mxu0 0.0
    %180 = vmatpush1.msra.mxu0 %v56
    %181 = vmatprep.subr.mxu0 0.0
    %182 = vmatpush1.msra.mxu0 %v59
    %183 = vmatprep.subr.mxu0 0.0
    %184 = vmatpush1.msra.mxu0 %v62
    %185 = vmatprep.subr.mxu0 0.0
    %186 = vmatpush1.msra.mxu0 %v65
    %187 = vmatprep.subr.mxu0 0.0
    %188 = vmatpush1.msra.mxu0 %v68
    %189 = vmatprep.subr.mxu0 0.0
    %190 = vmatpush1.msra.mxu0 %v71
    %191 = vmatprep.subr.mxu0 0.0
    %192 = vmatpush1.msra.mxu0 %v74
    %193 = vmatprep.subr.mxu0 0.0
    %194 = vmatpush1.msra.mxu0 %v77
    %195 = vmatprep.subr.mxu0 0.0
    %196 = vmatpush1.msra.mxu0 %v80
    %197 = vmatprep.subr.mxu0 0.0
    %198 = vmatpush1.msra.mxu0 %v83
    %199 = vmatprep.subr.mxu0 0.0
    %200 = vmatpush1.msra.mxu0 %v86
    %201 = vmatprep.subr.mxu0 0.0
    %202 = vmatpush1.msra.mxu0 0.0
    %203 = vmatprep.subr.mxu0 0.0
    %204 = vmatpush1.msra.mxu0 0.0
    %205 = vmatprep.subr.mxu0 0.0
    %206 = vmatpush1.msra.mxu0 0.0
    %207 = vmatprep.subr.mxu0 0.0
    %208 = vmatpush1.msra.mxu0 0.0
    %209 = vmatprep.subr.mxu0 0.0
    %210 = vmatpush1.msra.mxu0 0.0
    %211 = vmatprep.subr.mxu0 0.0
    %212 = vmatpush1.msra.mxu0 0.0
    %213 = vmatprep.subr.mxu0 0.0
    %214 = vmatpush1.msra.mxu0 0.0
    %215 = vmatprep.subr.mxu0 0.0
    %216 = vmatpush1.msra.mxu0 0.0
    %217 = vmatprep.subr.mxu0 0.0
    %218 = vmatpush1.msra.mxu0 0.0
    %219 = vmatprep.subr.mxu0 0.0
    %220 = vmatpush1.msra.mxu0 0.0
    %221 = vmatprep.subr.mxu0 0.0
    %222 = vmatpush1.msra.mxu0 0.0
    %223 = vmatprep.subr.mxu0 0.0
    %224 = vmatpush1.msra.mxu0 0.0
    %225 = vmatprep.subr.mxu0 0.0
    %226 = vmatpush1.msra.mxu0 0.0
    %227 = vmatprep.subr.mxu0 0.0
    %228 = vmatpush1.msra.mxu0 0.0
    %229 = vmatprep.subr.mxu0 0.0
    %230 = vmatpush1.msra.mxu0 0.0
    %231 = vmatprep.subr.mxu0 0.0
    %232 = vmatpush1.msra.mxu0 0.0
    %233 = vmatprep.mubr.f32.mxu0 0.0
    %234 = vmatmul.mubr.f32.gmra.mrb[0].mxu0 %v94
    %v235 = vpop.f32.mrb[0].mxu0
    %v236 = vadd.f32 0.0, %v235
    %v237 = vpop.f32.mrb[0].mxu0
    %238 = vdwg.mxu0
    %v239 = vadd.f32 %v95, %v165
    %v240 = vxor.u32 %v239, 2147483648
    %v241 = vmul.f32 %v240, 1.442695
    %v242 = vpow.pop %v241
    %v243 = vadd.f32 %v242, 1.0
    %v244 = vrcp.pop %v243
    %v245 = vmul.f32 1.0, %v244
    %v246 = vadd.f32 %v96, %v167
    %v247 = vxor.u32 %v246, 2147483648
    %v248 = vmul.f32 %v247, 1.442695
    %v249 = vpow.pop %v248
    %v250 = vadd.f32 %v249, 1.0
    %v251 = vrcp.pop %v250
    %v252 = vmul.f32 1.0, %v251
    %v253 = vadd.f32 %v236, %v92
    %v254 = vmul.f32 %v245, %v253
    %v255 = vadd.f32 %v97, %v254
    %v256 = vtanh.pop %v255
    %v257 = vsub.f32 1.0, %v252
    %v258 = vmul.f32 %v257, %v256
    %v259 = vmul.f32 %v252, %v94
    %v260 = vadd.f32 %v258, %v259
    %261 = vst [vmem:[%s4] sm:$0xff] %v260
    %s262 = scalar_lea.vmem %s1, 24
    %v263 = vld [vmem:[%s262] sm:$0xff]
    %v264 = vld [vmem:[%s262 + $0x8] sm:$0xff]
    %v265 = vld [vmem:[%s262 + $0x10] sm:$0xff]
    %266 = vmatprep.subr.mxu0 %v40
    %267 = vmatpush1.msra.mxu0 %v39
    %268 = vmatprep.subr.mxu0 %v43
    %269 = vmatpush1.msra.mxu0 %v42
    %270 = vmatprep.subr.mxu0 %v46
    %271 = vmatpush1.msra.mxu0 %v45
    %272 = vmatprep.subr.mxu0 %v49
    %273 = vmatpush1.msra.mxu0 %v48
    %274 = vmatprep.subr.mxu0 %v52
    %275 = vmatpush1.msra.mxu0 %v51
    %276 = vmatprep.subr.mxu0 %v55
    %277 = vmatpush1.msra.mxu0 %v54
    %278 = vmatprep.subr.mxu0 %v58
    %279 = vmatpush1.msra.mxu0 %v57
    %280 = vmatprep.subr.mxu0 %v61
    %281 = vmatpush1.msra.mxu0 %v60
    %282 = vmatprep.subr.mxu0 %v64
    %283 = vmatpush1.msra.mxu0 %v63
    %284 = vmatprep.subr.mxu0 %v67
    %285 = vmatpush1.msra.mxu0 %v66
    %286 = vmatprep.subr.mxu0 %v70
    %287 = vmatpush1.msra.mxu0 %v69
    %288 = vmatprep.subr.mxu0 %v73
    %289 = vmatpush1.msra.mxu0 %v72
    %290 = vmatprep.subr.mxu0 %v76
    %291 = vmatpush1.msra.mxu0 %v75
    %292 = vmatprep.subr.mxu0 %v79
    %293 = vmatpush1.msra.mxu0 %v78
    %294 = vmatprep.subr.mxu0 %v82
    %295 = vmatpush1.msra.mxu0 %v81
    %296 = vmatprep.subr.mxu0 %v85
    %297 = vmatpush1.msra.mxu0 %v84
    %298 = vmatprep.subr.mxu0 0.0
    %299 = vmatpush1.msra.mxu0 0.0
    %300 = vmatprep.subr.mxu0 0.0
    %301 = vmatpush1.msra.mxu0 0.0
    %302 = vmatprep.subr.mxu0 0.0
    %303 = vmatpush1.msra.mxu0 0.0
    %304 = vmatprep.subr.mxu0 0.0
    %305 = vmatpush1.msra.mxu0 0.0
    %306 = vmatprep.subr.mxu0 0.0
    %307 = vmatpush1.msra.mxu0 0.0
    %308 = vmatprep.subr.mxu0 0.0
    %309 = vmatpush1.msra.mxu0 0.0
    %310 = vmatprep.subr.mxu0 0.0
    %311 = vmatpush1.msra.mxu0 0.0
    %312 = vmatprep.subr.mxu0 0.0
    %313 = vmatpush1.msra.mxu0 0.0
    %314 = vmatprep.subr.mxu0 0.0
    %315 = vmatpush1.msra.mxu0 0.0
    %316 = vmatprep.subr.mxu0 0.0
    %317 = vmatpush1.msra.mxu0 0.0
    %318 = vmatprep.subr.mxu0 0.0
    %319 = vmatpush1.msra.mxu0 0.0
    %320 = vmatprep.subr.mxu0 0.0
    %321 = vmatpush1.msra.mxu0 0.0
    %322 = vmatprep.subr.mxu0 0.0
    %323 = vmatpush1.msra.mxu0 0.0
    %324 = vmatprep.subr.mxu0 0.0
    %325 = vmatpush1.msra.mxu0 0.0
    %326 = vmatprep.subr.mxu0 0.0
    %327 = vmatpush1.msra.mxu0 0.0
    %328 = vmatprep.subr.mxu0 0.0
    %329 = vmatpush1.msra.mxu0 0.0
    %330 = vmatprep.mubr.f32.mxu0 0.0
    %331 = vmatmul.mubr.f32.gmra.mrb[0].mxu0 %v260
    %v332 = vpop.f32.mrb[0].mxu0
    %v333 = vadd.f32 0.0, %v332
    %v334 = vpop.f32.mrb[0].mxu0
    %v335 = vadd.f32 0.0, %v334
    %336 = vdwg.mxu0
    %337 = vmatprep.subr.mxu0 0.0
    %338 = vmatpush1.msra.mxu0 %v41
    %339 = vmatprep.subr.mxu0 0.0
    %340 = vmatpush1.msra.mxu0 %v44
    %341 = vmatprep.subr.mxu0 0.0
    %342 = vmatpush1.msra.mxu0 %v47
    %343 = vmatprep.subr.mxu0 0.0
    %344 = vmatpush1.msra.mxu0 %v50
    %345 = vmatprep.subr.mxu0 0.0
    %346 = vmatpush1.msra.mxu0 %v53
    %347 = vmatprep.subr.mxu0 0.0
    %348 = vmatpush1.msra.mxu0 %v56
    %349 = vmatprep.subr.mxu0 0.0
    %350 = vmatpush1.msra.mxu0 %v59
    %351 = vmatprep.subr.mxu0 0.0
    %352 = vmatpush1.msra.mxu0 %v62
    %353 = vmatprep.subr.mxu0 0.0
    %354 = vmatpush1.msra.mxu0 %v65
    %355 = vmatprep.subr.mxu0 0.0
    %356 = vmatpush1.msra.mxu0 %v68
    %357 = vmatprep.subr.mxu0 0.0
    %358 = vmatpush1.msra.mxu0 %v71
    %359 = vmatprep.subr.mxu0 0.0
    %360 = vmatpush1.msra.mxu0 %v74
    %361 = vmatprep.subr.mxu0 0.0
    %362 = vmatpush1.msra.mxu0 %v77
    %363 = vmatprep.subr.mxu0 0.0
    %364 = vmatpush1.msra.mxu0 %v80
    %365 = vmatprep.subr.mxu0 0.0
    %366 = vmatpush1.msra.mxu0 %v83
    %367 = vmatprep.subr.mxu0 0.0
    %368 = vmatpush1.msra.mxu0 %v86
    %369 = vmatprep.subr.mxu0 0.0
    %370 = vmatpush1.msra.mxu0 0.0
    %371 = vmatprep.subr.mxu0 0.0
    %372 = vmatpush1.msra.mxu0 0.0
    %373 = vmatprep.subr.mxu0 0.0
    %374 = vmatpush1.msra.mxu0 0.0
    %375 = vmatprep.subr.mxu0 0.0
    %376 = vmatpush1.msra.mxu0 0.0
    %377 = vmatprep.subr.mxu0 0.0
    %378 = vmatpush1.msra.mxu0 0.0
    %379 = vmatprep.subr.mxu0 0.0
    %380 = vmatpush1.msra.mxu0 0.0
    %381 = vmatprep.subr.mxu0 0.0
    %382 = vmatpush1.msra.mxu0 0.0
    %383 = vmatprep.subr.mxu0 0.0
    %384 = vmatpush1.msra.mxu0 0.0
    %385 = vmatprep.subr.mxu0 0.0
    %386 = vmatpush1.msra.mxu0 0.0
    %387 = vmatprep.subr.mxu0 0.0
    %388 = vmatpush1.msra.mxu0 0.0
    %389 = vmatprep.subr.mxu0 0.0
    %390 = vmatpush1.msra.mxu0 0.0
    %391 = vmatprep.subr.mxu0 0.0
    %392 = vmatpush1.msra.mxu0 0.0
    %393 = vmatprep.subr.mxu0 0.0
    %394 = vmatpush1.msra.mxu0 0.0
    %395 = vmatprep.subr.mxu0 0.0
    %396 = vmatpush1.msra.mxu0 0.0
    %397 = vmatprep.subr.mxu0 0.0
    %398 = vmatpush1.msra.mxu0 0.0
    %399 = vmatprep.subr.mxu0 0.0
    %400 = vmatpush1.msra.mxu0 0.0
    %401 = vmatprep.mubr.f32.mxu0 0.0
    %402 = vmatmul.mubr.f32.gmra.mrb[0].mxu0 %v260
    %v403 = vpop.f32.mrb[0].mxu0
    %v404 = vadd.f32 0.0, %v403
    %v405 = vpop.f32.mrb[0].mxu0
    %406 = vdwg.mxu0
    %v407 = vadd.f32 %v263, %v333
    %v408 = vxor.u32 %v407, 2147483648
    %v409 = vmul.f32 %v408, 1.442695
    %v410 = vpow.pop %v409
    %v411 = vadd.f32 %v410, 1.0
    %v412 = vrcp.pop %v411
    %v413 = vmul.f32 1.0, %v412
    %v414 = vadd.f32 %v264, %v335
    %v415 = vxor.u32 %v414, 2147483648
    %v416 = vmul.f32 %v415, 1.442695
    %v417 = vpow.pop %v416
    %v418 = vadd.f32 %v417, 1.0
    %v419 = vrcp.pop %v418
    %v420 = vmul.f32 1.0, %v419
    %v421 = vadd.f32 %v404, %v92
    %v422 = vmul.f32 %v413, %v421
    %v423 = vadd.f32 %v265, %v422
    %v424 = vtanh.pop %v423
    %v425 = vsub.f32 1.0, %v420
    %v426 = vmul.f32 %v425, %v424
    %v427 = vmul.f32 %v420, %v260
    %v428 = vadd.f32 %v426, %v427
    %s429 = scalar_lea.vmem %s4, 8
    %430 = vst [vmem:[%s429] sm:$0xff] %v428
    %s431 = scalar_lea.vmem %s1, 48
    %v432 = vld [vmem:[%s431] sm:$0xff]
    %v433 = vld [vmem:[%s431 + $0x8] sm:$0xff]
    %v434 = vld [vmem:[%s431 + $0x10] sm:$0xff]
    %435 = vmatprep.subr.mxu0 %v40
    %436 = vmatpush1.msra.mxu0 %v39
    %437 = vmatprep.subr.mxu0 %v43
    %438 = vmatpush1.msra.mxu0 %v42
    %439 = vmatprep.subr.mxu0 %v46
    %440 = vmatpush1.msra.mxu0 %v45
    %441 = vmatprep.subr.mxu0 %v49
    %442 = vmatpush1.msra.mxu0 %v48
    %443 = vmatprep.subr.mxu0 %v52
    %444 = vmatpush1.msra.mxu0 %v51
    %445 = vmatprep.subr.mxu0 %v55
    %446 = vmatpush1.msra.mxu0 %v54
    %447 = vmatprep.subr.mxu0 %v58
    %448 = vmatpush1.msra.mxu0 %v57
    %449 = vmatprep.subr.mxu0 %v61
    %450 = vmatpush1.msra.mxu0 %v60
    %451 = vmatprep.subr.mxu0 %v64
    %452 = vmatpush1.msra.mxu0 %v63
    %453 = vmatprep.subr.mxu0 %v67
    %454 = vmatpush1.msra.mxu0 %v66
    %455 = vmatprep.subr.mxu0 %v70
    %456 = vmatpush1.msra.mxu0 %v69
    %457 = vmatprep.subr.mxu0 %v73
    %458 = vmatpush1.msra.mxu0 %v72
    %459 = vmatprep.subr.mxu0 %v76
    %460 = vmatpush1.msra.mxu0 %v75
    %461 = vmatprep.subr.mxu0 %v79
    %462 = vmatpush1.msra.mxu0 %v78
    %463 = vmatprep.subr.mxu0 %v82
    %464 = vmatpush1.msra.mxu0 %v81
    %465 = vmatprep.subr.mxu0 %v85
    %466 = vmatpush1.msra.mxu0 %v84
    %467 = vmatprep.subr.mxu0 0.0
    %468 = vmatpush1.msra.mxu0 0.0
    %469 = vmatprep.subr.mxu0 0.0
    %470 = vmatpush1.msra.mxu0 0.0
    %471 = vmatprep.subr.mxu0 0.0
    %472 = vmatpush1.msra.mxu0 0.0
    %473 = vmatprep.subr.mxu0 0.0
    %474 = vmatpush1.msra.mxu0 0.0
    %475 = vmatprep.subr.mxu0 0.0
    %476 = vmatpush1.msra.mxu0 0.0
    %477 = vmatprep.subr.mxu0 0.0
    %478 = vmatpush1.msra.mxu0 0.0
    %479 = vmatprep.subr.mxu0 0.0
    %480 = vmatpush1.msra.mxu0 0.0
    %481 = vmatprep.subr.mxu0 0.0
    %482 = vmatpush1.msra.mxu0 0.0
    %483 = vmatprep.subr.mxu0 0.0
    %484 = vmatpush1.msra.mxu0 0.0
    %485 = vmatprep.subr.mxu0 0.0
    %486 = vmatpush1.msra.mxu0 0.0
    %487 = vmatprep.subr.mxu0 0.0
    %488 = vmatpush1.msra.mxu0 0.0
    %489 = vmatprep.subr.mxu0 0.0
    %490 = vmatpush1.msra.mxu0 0.0
    %491 = vmatprep.subr.mxu0 0.0
    %492 = vmatpush1.msra.mxu0 0.0
    %493 = vmatprep.subr.mxu0 0.0
    %494 = vmatpush1.msra.mxu0 0.0
    %495 = vmatprep.subr.mxu0 0.0
    %496 = vmatpush1.msra.mxu0 0.0
    %497 = vmatprep.subr.mxu0 0.0
    %498 = vmatpush1.msra.mxu0 0.0
    %499 = vmatprep.mubr.f32.mxu0 0.0
    %500 = vmatmul.mubr.f32.gmra.mrb[0].mxu0 %v428
    %v501 = vpop.f32.mrb[0].mxu0
    %v502 = vadd.f32 0.0, %v501
    %v503 = vpop.f32.mrb[0].mxu0
    %v504 = vadd.f32 0.0, %v503
    %505 = vdwg.mxu0
    %506 = vmatprep.subr.mxu0 0.0
    %507 = vmatpush1.msra.mxu0 %v41
    %508 = vmatprep.subr.mxu0 0.0
    %509 = vmatpush1.msra.mxu0 %v44
    %510 = vmatprep.subr.mxu0 0.0
    %511 = vmatpush1.msra.mxu0 %v47
    %512 = vmatprep.subr.mxu0 0.0
    %513 = vmatpush1.msra.mxu0 %v50
    %514 = vmatprep.subr.mxu0 0.0
    %515 = vmatpush1.msra.mxu0 %v53
    %516 = vmatprep.subr.mxu0 0.0
    %517 = vmatpush1.msra.mxu0 %v56
    %518 = vmatprep.subr.mxu0 0.0
    %519 = vmatpush1.msra.mxu0 %v59
    %520 = vmatprep.subr.mxu0 0.0
    %521 = vmatpush1.msra.mxu0 %v62
    %522 = vmatprep.subr.mxu0 0.0
    %523 = vmatpush1.msra.mxu0 %v65
    %524 = vmatprep.subr.mxu0 0.0
    %525 = vmatpush1.msra.mxu0 %v68
    %526 = vmatprep.subr.mxu0 0.0
    %527 = vmatpush1.msra.mxu0 %v71
    %528 = vmatprep.subr.mxu0 0.0
    %529 = vmatpush1.msra.mxu0 %v74
    %530 = vmatprep.subr.mxu0 0.0
    %531 = vmatpush1.msra.mxu0 %v77
    %532 = vmatprep.subr.mxu0 0.0
    %533 = vmatpush1.msra.mxu0 %v80
    %534 = vmatprep.subr.mxu0 0.0
    %535 = vmatpush1.msra.mxu0 %v83
    %536 = vmatprep.subr.mxu0 0.0
    %537 = vmatpush1.msra.mxu0 %v86
    %538 = vmatprep.subr.mxu0 0.0
    %539 = vmatpush1.msra.mxu0 0.0
    %540 = vmatprep.subr.mxu0 0.0
    %541 = vmatpush1.msra.mxu0 0.0
    %542 = vmatprep.subr.mxu0 0.0
    %543 = vmatpush1.msra.mxu0 0.0
    %544 = vmatprep.subr.mxu0 0.0
    %545 = vmatpush1.msra.mxu0 0.0
    %546 = vmatprep.subr.mxu0 0.0
    %547 = vmatpush1.msra.mxu0 0.0
    %548 = vmatprep.subr.mxu0 0.0
    %549 = vmatpush1.msra.mxu0 0.0
    %550 = vmatprep.subr.mxu0 0.0
    %551 = vmatpush1.msra.mxu0 0.0
    %552 = vmatprep.subr.mxu0 0.0
    %553 = vmatpush1.msra.mxu0 0.0
    %554 = vmatprep.subr.mxu0 0.0
    %555 = vmatpush1.msra.mxu0 0.0
    %556 = vmatprep.subr.mxu0 0.0
    %557 = vmatpush1.msra.mxu0 0.0
    %558 = vmatprep.subr.mxu0 0.0
    %559 = vmatpush1.msra.mxu0 0.0
    %560 = vmatprep.subr.mxu0 0.0
    %561 = vmatpush1.msra.mxu0 0.0
    %562 = vmatprep.subr.mxu0 0.0
    %563 = vmatpush1.msra.mxu0 0.0
    %564 = vmatprep.subr.mxu0 0.0
    %565 = vmatpush1.msra.mxu0 0.0
    %566 = vmatprep.subr.mxu0 0.0
    %567 = vmatpush1.msra.mxu0 0.0
    %568 = vmatprep.subr.mxu0 0.0
    %569 = vmatpush1.msra.mxu0 0.0
    %570 = vmatprep.mubr.f32.mxu0 0.0
    %571 = vmatmul.mubr.f32.gmra.mrb[0].mxu0 %v428
    %v572 = vpop.f32.mrb[0].mxu0
    %v573 = vadd.f32 0.0, %v572
    %v574 = vpop.f32.mrb[0].mxu0
    %575 = vdwg.mxu0
    %v576 = vadd.f32 %v432, %v502
    %v577 = vxor.u32 %v576, 2147483648
    %v578 = vmul.f32 %v577, 1.442695
    %v579 = vpow.pop %v578
    %v580 = vadd.f32 %v579, 1.0
    %v581 = vrcp.pop %v580
    %v582 = vmul.f32 1.0, %v581
    %v583 = vadd.f32 %v433, %v504
    %v584 = vxor.u32 %v583, 2147483648
    %v585 = vmul.f32 %v584, 1.442695
    %v586 = vpow.pop %v585
    %v587 = vadd.f32 %v586, 1.0
    %v588 = vrcp.pop %v587
    %v589 = vmul.f32 1.0, %v588
    %v590 = vadd.f32 %v573, %v92
    %v591 = vmul.f32 %v582, %v590
    %v592 = vadd.f32 %v434, %v591
    %v593 = vtanh.pop %v592
    %v594 = vsub.f32 1.0, %v589
    %v595 = vmul.f32 %v594, %v593
    %v596 = vmul.f32 %v589, %v428
    %v597 = vadd.f32 %v595, %v596
    %s598 = scalar_lea.vmem %s4, 16
    %599 = vst [vmem:[%s598] sm:$0xff] %v597
    %s600 = scalar_lea.vmem %s1, 72
    %v601 = vld [vmem:[%s600] sm:$0xff]
    %v602 = vld [vmem:[%s600 + $0x8] sm:$0xff]
    %v603 = vld [vmem:[%s600 + $0x10] sm:$0xff]
    %604 = vmatprep.subr.mxu0 %v40
    %605 = vmatpush1.msra.mxu0 %v39
    %606 = vmatprep.subr.mxu0 %v43
    %607 = vmatpush1.msra.mxu0 %v42
    %608 = vmatprep.subr.mxu0 %v46
    %609 = vmatpush1.msra.mxu0 %v45
    %610 = vmatprep.subr.mxu0 %v49
    %611 = vmatpush1.msra.mxu0 %v48
    %612 = vmatprep.subr.mxu0 %v52
    %613 = vmatpush1.msra.mxu0 %v51
    %614 = vmatprep.subr.mxu0 %v55
    %615 = vmatpush1.msra.mxu0 %v54
    %616 = vmatprep.subr.mxu0 %v58
    %617 = vmatpush1.msra.mxu0 %v57
    %618 = vmatprep.subr.mxu0 %v61
    %619 = vmatpush1.msra.mxu0 %v60
    %620 = vmatprep.subr.mxu0 %v64
    %621 = vmatpush1.msra.mxu0 %v63
    %622 = vmatprep.subr.mxu0 %v67
    %623 = vmatpush1.msra.mxu0 %v66
    %624 = vmatprep.subr.mxu0 %v70
    %625 = vmatpush1.msra.mxu0 %v69
    %626 = vmatprep.subr.mxu0 %v73
    %627 = vmatpush1.msra.mxu0 %v72
    %628 = vmatprep.subr.mxu0 %v76
    %629 = vmatpush1.msra.mxu0 %v75
    %630 = vmatprep.subr.mxu0 %v79
    %631 = vmatpush1.msra.mxu0 %v78
    %632 = vmatprep.subr.mxu0 %v82
    %633 = vmatpush1.msra.mxu0 %v81
    %634 = vmatprep.subr.mxu0 %v85
    %635 = vmatpush1.msra.mxu0 %v84
    %636 = vmatprep.subr.mxu0 0.0
    %637 = vmatpush1.msra.mxu0 0.0
    %638 = vmatprep.subr.mxu0 0.0
    %639 = vmatpush1.msra.mxu0 0.0
    %640 = vmatprep.subr.mxu0 0.0
    %641 = vmatpush1.msra.mxu0 0.0
    %642 = vmatprep.subr.mxu0 0.0
    %643 = vmatpush1.msra.mxu0 0.0
    %644 = vmatprep.subr.mxu0 0.0
    %645 = vmatpush1.msra.mxu0 0.0
    %646 = vmatprep.subr.mxu0 0.0
    %647 = vmatpush1.msra.mxu0 0.0
    %648 = vmatprep.subr.mxu0 0.0
    %649 = vmatpush1.msra.mxu0 0.0
    %650 = vmatprep.subr.mxu0 0.0
    %651 = vmatpush1.msra.mxu0 0.0
    %652 = vmatprep.subr.mxu0 0.0
    %653 = vmatpush1.msra.mxu0 0.0
    %654 = vmatprep.subr.mxu0 0.0
    %655 = vmatpush1.msra.mxu0 0.0
    %656 = vmatprep.subr.mxu0 0.0
    %657 = vmatpush1.msra.mxu0 0.0
    %658 = vmatprep.subr.mxu0 0.0
    %659 = vmatpush1.msra.mxu0 0.0
    %660 = vmatprep.subr.mxu0 0.0
    %661 = vmatpush1.msra.mxu0 0.0
    %662 = vmatprep.subr.mxu0 0.0
    %663 = vmatpush1.msra.mxu0 0.0
    %664 = vmatprep.subr.mxu0 0.0
    %665 = vmatpush1.msra.mxu0 0.0
    %666 = vmatprep.subr.mxu0 0.0
    %667 = vmatpush1.msra.mxu0 0.0
    %668 = vmatprep.mubr.f32.mxu0 0.0
    %669 = vmatmul.mubr.f32.gmra.mrb[0].mxu0 %v597
    %v670 = vpop.f32.mrb[0].mxu0
    %v671 = vadd.f32 0.0, %v670
    %v672 = vpop.f32.mrb[0].mxu0
    %v673 = vadd.f32 0.0, %v672
    %674 = vdwg.mxu0
    %675 = vmatprep.subr.mxu0 0.0
    %676 = vmatpush1.msra.mxu0 %v41
    %677 = vmatprep.subr.mxu0 0.0
    %678 = vmatpush1.msra.mxu0 %v44
    %679 = vmatprep.subr.mxu0 0.0
    %680 = vmatpush1.msra.mxu0 %v47
    %681 = vmatprep.subr.mxu0 0.0
    %682 = vmatpush1.msra.mxu0 %v50
    %683 = vmatprep.subr.mxu0 0.0
    %684 = vmatpush1.msra.mxu0 %v53
    %685 = vmatprep.subr.mxu0 0.0
    %686 = vmatpush1.msra.mxu0 %v56
    %687 = vmatprep.subr.mxu0 0.0
    %688 = vmatpush1.msra.mxu0 %v59
    %689 = vmatprep.subr.mxu0 0.0
    %690 = vmatpush1.msra.mxu0 %v62
    %691 = vmatprep.subr.mxu0 0.0
    %692 = vmatpush1.msra.mxu0 %v65
    %693 = vmatprep.subr.mxu0 0.0
    %694 = vmatpush1.msra.mxu0 %v68
    %695 = vmatprep.subr.mxu0 0.0
    %696 = vmatpush1.msra.mxu0 %v71
    %697 = vmatprep.subr.mxu0 0.0
    %698 = vmatpush1.msra.mxu0 %v74
    %699 = vmatprep.subr.mxu0 0.0
    %700 = vmatpush1.msra.mxu0 %v77
    %701 = vmatprep.subr.mxu0 0.0
    %702 = vmatpush1.msra.mxu0 %v80
    %703 = vmatprep.subr.mxu0 0.0
    %704 = vmatpush1.msra.mxu0 %v83
    %705 = vmatprep.subr.mxu0 0.0
    %706 = vmatpush1.msra.mxu0 %v86
    %707 = vmatprep.subr.mxu0 0.0
    %708 = vmatpush1.msra.mxu0 0.0
    %709 = vmatprep.subr.mxu0 0.0
    %710 = vmatpush1.msra.mxu0 0.0
    %711 = vmatprep.subr.mxu0 0.0
    %712 = vmatpush1.msra.mxu0 0.0
    %713 = vmatprep.subr.mxu0 0.0
    %714 = vmatpush1.msra.mxu0 0.0
    %715 = vmatprep.subr.mxu0 0.0
    %716 = vmatpush1.msra.mxu0 0.0
    %717 = vmatprep.subr.mxu0 0.0
    %718 = vmatpush1.msra.mxu0 0.0
    %719 = vmatprep.subr.mxu0 0.0
    %720 = vmatpush1.msra.mxu0 0.0
    %721 = vmatprep.subr.mxu0 0.0
    %722 = vmatpush1.msra.mxu0 0.0
    %723 = vmatprep.subr.mxu0 0.0
    %724 = vmatpush1.msra.mxu0 0.0
    %725 = vmatprep.subr.mxu0 0.0
    %726 = vmatpush1.msra.mxu0 0.0
    %727 = vmatprep.subr.mxu0 0.0
    %728 = vmatpush1.msra.mxu0 0.0
    %729 = vmatprep.subr.mxu0 0.0
    %730 = vmatpush1.msra.mxu0 0.0
    %731 = vmatprep.subr.mxu0 0.0
    %732 = vmatpush1.msra.mxu0 0.0
    %733 = vmatprep.subr.mxu0 0.0
    %734 = vmatpush1.msra.mxu0 0.0
    %735 = vmatprep.subr.mxu0 0.0
    %736 = vmatpush1.msra.mxu0 0.0
    %737 = vmatprep.subr.mxu0 0.0
    %738 = vmatpush1.msra.mxu0 0.0
    %739 = vmatprep.mubr.f32.mxu0 0.0
    %740 = vmatmul.mubr.f32.gmra.mrb[0].mxu0 %v597
    %v741 = vpop.f32.mrb[0].mxu0
    %v742 = vadd.f32 0.0, %v741
    %v743 = vpop.f32.mrb[0].mxu0
    %744 = vdwg.mxu0
    %v745 = vadd.f32 %v601, %v671
    %v746 = vxor.u32 %v745, 2147483648
    %v747 = vmul.f32 %v746, 1.442695
    %v748 = vpow.pop %v747
    %v749 = vadd.f32 %v748, 1.0
    %v750 = vrcp.pop %v749
    %v751 = vmul.f32 1.0, %v750
    %v752 = vadd.f32 %v602, %v673
    %v753 = vxor.u32 %v752, 2147483648
    %v754 = vmul.f32 %v753, 1.442695
    %v755 = vpow.pop %v754
    %v756 = vadd.f32 %v755, 1.0
    %v757 = vrcp.pop %v756
    %v758 = vmul.f32 1.0, %v757
    %v759 = vadd.f32 %v742, %v92
    %v760 = vmul.f32 %v751, %v759
    %v761 = vadd.f32 %v603, %v760
    %v762 = vtanh.pop %v761
    %v763 = vsub.f32 1.0, %v758
    %v764 = vmul.f32 %v763, %v762
    %v765 = vmul.f32 %v758, %v597
    %v766 = vadd.f32 %v764, %v765
    %s767 = scalar_lea.vmem %s4, 24
    %768 = vst [vmem:[%s767] sm:$0xff] %v766
    %s769 = scalar_lea.vmem %s1, 96
    %v770 = vld [vmem:[%s769] sm:$0xff]
    %v771 = vld [vmem:[%s769 + $0x8] sm:$0xff]
    %v772 = vld [vmem:[%s769 + $0x10] sm:$0xff]
    %773 = vmatprep.subr.mxu0 %v40
    %774 = vmatpush1.msra.mxu0 %v39
    %775 = vmatprep.subr.mxu0 %v43
    %776 = vmatpush1.msra.mxu0 %v42
    %777 = vmatprep.subr.mxu0 %v46
    %778 = vmatpush1.msra.mxu0 %v45
    %779 = vmatprep.subr.mxu0 %v49
    %780 = vmatpush1.msra.mxu0 %v48
    %781 = vmatprep.subr.mxu0 %v52
    %782 = vmatpush1.msra.mxu0 %v51
    %783 = vmatprep.subr.mxu0 %v55
    %784 = vmatpush1.msra.mxu0 %v54
    %785 = vmatprep.subr.mxu0 %v58
    %786 = vmatpush1.msra.mxu0 %v57
    %787 = vmatprep.subr.mxu0 %v61
    %788 = vmatpush1.msra.mxu0 %v60
    %789 = vmatprep.subr.mxu0 %v64
    %790 = vmatpush1.msra.mxu0 %v63
    %791 = vmatprep.subr.mxu0 %v67
    %792 = vmatpush1.msra.mxu0 %v66
    %793 = vmatprep.subr.mxu0 %v70
    %794 = vmatpush1.msra.mxu0 %v69
    %795 = vmatprep.subr.mxu0 %v73
    %796 = vmatpush1.msra.mxu0 %v72
    %797 = vmatprep.subr.mxu0 %v76
    %798 = vmatpush1.msra.mxu0 %v75
    %799 = vmatprep.subr.mxu0 %v79
    %800 = vmatpush1.msra.mxu0 %v78
    %801 = vmatprep.subr.mxu0 %v82
    %802 = vmatpush1.msra.mxu0 %v81
    %803 = vmatprep.subr.mxu0 %v85
    %804 = vmatpush1.msra.mxu0 %v84
    %805 = vmatprep.subr.mxu0 0.0
    %806 = vmatpush1.msra.mxu0 0.0
    %807 = vmatprep.subr.mxu0 0.0
    %808 = vmatpush1.msra.mxu0 0.0
    %809 = vmatprep.subr.mxu0 0.0
    %810 = vmatpush1.msra.mxu0 0.0
    %811 = vmatprep.subr.mxu0 0.0
    %812 = vmatpush1.msra.mxu0 0.0
    %813 = vmatprep.subr.mxu0 0.0
    %814 = vmatpush1.msra.mxu0 0.0
    %815 = vmatprep.subr.mxu0 0.0
    %816 = vmatpush1.msra.mxu0 0.0
    %817 = vmatprep.subr.mxu0 0.0
    %818 = vmatpush1.msra.mxu0 0.0
    %819 = vmatprep.subr.mxu0 0.0
    %820 = vmatpush1.msra.mxu0 0.0
    %821 = vmatprep.subr.mxu0 0.0
    %822 = vmatpush1.msra.mxu0 0.0
    %823 = vmatprep.subr.mxu0 0.0
    %824 = vmatpush1.msra.mxu0 0.0
    %825 = vmatprep.subr.mxu0 0.0
    %826 = vmatpush1.msra.mxu0 0.0
    %827 = vmatprep.subr.mxu0 0.0
    %828 = vmatpush1.msra.mxu0 0.0
    %829 = vmatprep.subr.mxu0 0.0
    %830 = vmatpush1.msra.mxu0 0.0
    %831 = vmatprep.subr.mxu0 0.0
    %832 = vmatpush1.msra.mxu0 0.0
    %833 = vmatprep.subr.mxu0 0.0
    %834 = vmatpush1.msra.mxu0 0.0
    %835 = vmatprep.subr.mxu0 0.0
    %836 = vmatpush1.msra.mxu0 0.0
    %837 = vmatprep.mubr.f32.mxu0 0.0
    %838 = vmatmul.mubr.f32.gmra.mrb[0].mxu0 %v766
    %v839 = vpop.f32.mrb[0].mxu0
    %v840 = vadd.f32 0.0, %v839
    %v841 = vpop.f32.mrb[0].mxu0
    %v842 = vadd.f32 0.0, %v841
    %843 = vdwg.mxu0
    %844 = vmatprep.subr.mxu0 0.0
    %845 = vmatpush1.msra.mxu0 %v41
    %846 = vmatprep.subr.mxu0 0.0
    %847 = vmatpush1.msra.mxu0 %v44
    %848 = vmatprep.subr.mxu0 0.0
    %849 = vmatpush1.msra.mxu0 %v47
    %850 = vmatprep.subr.mxu0 0.0
    %851 = vmatpush1.msra.mxu0 %v50
    %852 = vmatprep.subr.mxu0 0.0
    %853 = vmatpush1.msra.mxu0 %v53
    %854 = vmatprep.subr.mxu0 0.0
    %855 = vmatpush1.msra.mxu0 %v56
    %856 = vmatprep.subr.mxu0 0.0
    %857 = vmatpush1.msra.mxu0 %v59
    %858 = vmatprep.subr.mxu0 0.0
    %859 = vmatpush1.msra.mxu0 %v62
    %860 = vmatprep.subr.mxu0 0.0
    %861 = vmatpush1.msra.mxu0 %v65
    %862 = vmatprep.subr.mxu0 0.0
    %863 = vmatpush1.msra.mxu0 %v68
    %864 = vmatprep.subr.mxu0 0.0
    %865 = vmatpush1.msra.mxu0 %v71
    %866 = vmatprep.subr.mxu0 0.0
    %867 = vmatpush1.msra.mxu0 %v74
    %868 = vmatprep.subr.mxu0 0.0
    %869 = vmatpush1.msra.mxu0 %v77
    %870 = vmatprep.subr.mxu0 0.0
    %871 = vmatpush1.msra.mxu0 %v80
    %872 = vmatprep.subr.mxu0 0.0
    %873 = vmatpush1.msra.mxu0 %v83
    %874 = vmatprep.subr.mxu0 0.0
    %875 = vmatpush1.msra.mxu0 %v86
    %876 = vmatprep.subr.mxu0 0.0
    %877 = vmatpush1.msra.mxu0 0.0
    %878 = vmatprep.subr.mxu0 0.0
    %879 = vmatpush1.msra.mxu0 0.0
    %880 = vmatprep.subr.mxu0 0.0
    %881 = vmatpush1.msra.mxu0 0.0
    %882 = vmatprep.subr.mxu0 0.0
    %883 = vmatpush1.msra.mxu0 0.0
    %884 = vmatprep.subr.mxu0 0.0
    %885 = vmatpush1.msra.mxu0 0.0
    %886 = vmatprep.subr.mxu0 0.0
    %887 = vmatpush1.msra.mxu0 0.0
    %888 = vmatprep.subr.mxu0 0.0
    %889 = vmatpush1.msra.mxu0 0.0
    %890 = vmatprep.subr.mxu0 0.0
    %891 = vmatpush1.msra.mxu0 0.0
    %892 = vmatprep.subr.mxu0 0.0
    %893 = vmatpush1.msra.mxu0 0.0
    %894 = vmatprep.subr.mxu0 0.0
    %895 = vmatpush1.msra.mxu0 0.0
    %896 = vmatprep.subr.mxu0 0.0
    %897 = vmatpush1.msra.mxu0 0.0
    %898 = vmatprep.subr.mxu0 0.0
    %899 = vmatpush1.msra.mxu0 0.0
    %900 = vmatprep.subr.mxu0 0.0
    %901 = vmatpush1.msra.mxu0 0.0
    %902 = vmatprep.subr.mxu0 0.0
    %903 = vmatpush1.msra.mxu0 0.0
    %904 = vmatprep.subr.mxu0 0.0
    %905 = vmatpush1.msra.mxu0 0.0
    %906 = vmatprep.subr.mxu0 0.0
    %907 = vmatpush1.msra.mxu0 0.0
    %908 = vmatprep.mubr.f32.mxu0 0.0
    %909 = vmatmul.mubr.f32.gmra.mrb[0].mxu0 %v766
    %v910 = vpop.f32.mrb[0].mxu0
    %v911 = vadd.f32 0.0, %v910
    %v912 = vpop.f32.mrb[0].mxu0
    %913 = vdwg.mxu0
    %v914 = vadd.f32 %v770, %v840
    %v915 = vxor.u32 %v914, 2147483648
    %v916 = vmul.f32 %v915, 1.442695
    %v917 = vpow.pop %v916
    %v918 = vadd.f32 %v917, 1.0
    %v919 = vrcp.pop %v918
    %v920 = vmul.f32 1.0, %v919
    %v921 = vadd.f32 %v771, %v842
    %v922 = vxor.u32 %v921, 2147483648
    %v923 = vmul.f32 %v922, 1.442695
    %v924 = vpow.pop %v923
    %v925 = vadd.f32 %v924, 1.0
    %v926 = vrcp.pop %v925
    %v927 = vmul.f32 1.0, %v926
    %v928 = vadd.f32 %v911, %v92
    %v929 = vmul.f32 %v920, %v928
    %v930 = vadd.f32 %v772, %v929
    %v931 = vtanh.pop %v930
    %v932 = vsub.f32 1.0, %v927
    %v933 = vmul.f32 %v932, %v931
    %v934 = vmul.f32 %v927, %v766
    %v935 = vadd.f32 %v933, %v934
    %s936 = scalar_lea.vmem %s4, 32
    %937 = vst [vmem:[%s936] sm:$0xff] %v935
    %s938 = scalar_lea.vmem %s1, 120
    %v939 = vld [vmem:[%s938] sm:$0xff]
    %v940 = vld [vmem:[%s938 + $0x8] sm:$0xff]
    %v941 = vld [vmem:[%s938 + $0x10] sm:$0xff]
    %942 = vmatprep.subr.mxu0 %v40
    %943 = vmatpush1.msra.mxu0 %v39
    %944 = vmatprep.subr.mxu0 %v43
    %945 = vmatpush1.msra.mxu0 %v42
    %946 = vmatprep.subr.mxu0 %v46
    %947 = vmatpush1.msra.mxu0 %v45
    %948 = vmatprep.subr.mxu0 %v49
    %949 = vmatpush1.msra.mxu0 %v48
    %950 = vmatprep.subr.mxu0 %v52
    %951 = vmatpush1.msra.mxu0 %v51
    %952 = vmatprep.subr.mxu0 %v55
    %953 = vmatpush1.msra.mxu0 %v54
    %954 = vmatprep.subr.mxu0 %v58
    %955 = vmatpush1.msra.mxu0 %v57
    %956 = vmatprep.subr.mxu0 %v61
    %957 = vmatpush1.msra.mxu0 %v60
    %958 = vmatprep.subr.mxu0 %v64
    %959 = vmatpush1.msra.mxu0 %v63
    %960 = vmatprep.subr.mxu0 %v67
    %961 = vmatpush1.msra.mxu0 %v66
    %962 = vmatprep.subr.mxu0 %v70
    %963 = vmatpush1.msra.mxu0 %v69
    %964 = vmatprep.subr.mxu0 %v73
    %965 = vmatpush1.msra.mxu0 %v72
    %966 = vmatprep.subr.mxu0 %v76
    %967 = vmatpush1.msra.mxu0 %v75
    %968 = vmatprep.subr.mxu0 %v79
    %969 = vmatpush1.msra.mxu0 %v78
    %970 = vmatprep.subr.mxu0 %v82
    %971 = vmatpush1.msra.mxu0 %v81
    %972 = vmatprep.subr.mxu0 %v85
    %973 = vmatpush1.msra.mxu0 %v84
    %974 = vmatprep.subr.mxu0 0.0
    %975 = vmatpush1.msra.mxu0 0.0
    %976 = vmatprep.subr.mxu0 0.0
    %977 = vmatpush1.msra.mxu0 0.0
    %978 = vmatprep.subr.mxu0 0.0
    %979 = vmatpush1.msra.mxu0 0.0
    %980 = vmatprep.subr.mxu0 0.0
    %981 = vmatpush1.msra.mxu0 0.0
    %982 = vmatprep.subr.mxu0 0.0
    %983 = vmatpush1.msra.mxu0 0.0
    %984 = vmatprep.subr.mxu0 0.0
    %985 = vmatpush1.msra.mxu0 0.0
    %986 = vmatprep.subr.mxu0 0.0
    %987 = vmatpush1.msra.mxu0 0.0
    %988 = vmatprep.subr.mxu0 0.0
    %989 = vmatpush1.msra.mxu0 0.0
    %990 = vmatprep.subr.mxu0 0.0
    %991 = vmatpush1.msra.mxu0 0.0
    %992 = vmatprep.subr.mxu0 0.0
    %993 = vmatpush1.msra.mxu0 0.0
    %994 = vmatprep.subr.mxu0 0.0
    %995 = vmatpush1.msra.mxu0 0.0
    %996 = vmatprep.subr.mxu0 0.0
    %997 = vmatpush1.msra.mxu0 0.0
    %998 = vmatprep.subr.mxu0 0.0
    %999 = vmatpush1.msra.mxu0 0.0
    %1000 = vmatprep.subr.mxu0 0.0
    %1001 = vmatpush1.msra.mxu0 0.0
    %1002 = vmatprep.subr.mxu0 0.0
    %1003 = vmatpush1.msra.mxu0 0.0
    %1004 = vmatprep.subr.mxu0 0.0
    %1005 = vmatpush1.msra.mxu0 0.0
    %1006 = vmatprep.mubr.f32.mxu0 0.0
    %1007 = vmatmul.mubr.f32.gmra.mrb[0].mxu0 %v935
    %v1008 = vpop.f32.mrb[0].mxu0
    %v1009 = vadd.f32 0.0, %v1008
    %v1010 = vpop.f32.mrb[0].mxu0
    %v1011 = vadd.f32 0.0, %v1010
    %1012 = vdwg.mxu0
    %1013 = vmatprep.subr.mxu0 0.0
    %1014 = vmatpush1.msra.mxu0 %v41
    %1015 = vmatprep.subr.mxu0 0.0
    %1016 = vmatpush1.msra.mxu0 %v44
    %1017 = vmatprep.subr.mxu0 0.0
    %1018 = vmatpush1.msra.mxu0 %v47
    %1019 = vmatprep.subr.mxu0 0.0
    %1020 = vmatpush1.msra.mxu0 %v50
    %1021 = vmatprep.subr.mxu0 0.0
    %1022 = vmatpush1.msra.mxu0 %v53
    %1023 = vmatprep.subr.mxu0 0.0
    %1024 = vmatpush1.msra.mxu0 %v56
    %1025 = vmatprep.subr.mxu0 0.0
    %1026 = vmatpush1.msra.mxu0 %v59
    %1027 = vmatprep.subr.mxu0 0.0
    %1028 = vmatpush1.msra.mxu0 %v62
    %1029 = vmatprep.subr.mxu0 0.0
    %1030 = vmatpush1.msra.mxu0 %v65
    %1031 = vmatprep.subr.mxu0 0.0
    %1032 = vmatpush1.msra.mxu0 %v68
    %1033 = vmatprep.subr.mxu0 0.0
    %1034 = vmatpush1.msra.mxu0 %v71
    %1035 = vmatprep.subr.mxu0 0.0
    %1036 = vmatpush1.msra.mxu0 %v74
    %1037 = vmatprep.subr.mxu0 0.0
    %1038 = vmatpush1.msra.mxu0 %v77
    %1039 = vmatprep.subr.mxu0 0.0
    %1040 = vmatpush1.msra.mxu0 %v80
    %1041 = vmatprep.subr.mxu0 0.0
    %1042 = vmatpush1.msra.mxu0 %v83
    %1043 = vmatprep.subr.mxu0 0.0
    %1044 = vmatpush1.msra.mxu0 %v86
    %1045 = vmatprep.subr.mxu0 0.0
    %1046 = vmatpush1.msra.mxu0 0.0
    %1047 = vmatprep.subr.mxu0 0.0
    %1048 = vmatpush1.msra.mxu0 0.0
    %1049 = vmatprep.subr.mxu0 0.0
    %1050 = vmatpush1.msra.mxu0 0.0
    %1051 = vmatprep.subr.mxu0 0.0
    %1052 = vmatpush1.msra.mxu0 0.0
    %1053 = vmatprep.subr.mxu0 0.0
    %1054 = vmatpush1.msra.mxu0 0.0
    %1055 = vmatprep.subr.mxu0 0.0
    %1056 = vmatpush1.msra.mxu0 0.0
    %1057 = vmatprep.subr.mxu0 0.0
    %1058 = vmatpush1.msra.mxu0 0.0
    %1059 = vmatprep.subr.mxu0 0.0
    %1060 = vmatpush1.msra.mxu0 0.0
    %1061 = vmatprep.subr.mxu0 0.0
    %1062 = vmatpush1.msra.mxu0 0.0
    %1063 = vmatprep.subr.mxu0 0.0
    %1064 = vmatpush1.msra.mxu0 0.0
    %1065 = vmatprep.subr.mxu0 0.0
    %1066 = vmatpush1.msra.mxu0 0.0
    %1067 = vmatprep.subr.mxu0 0.0
    %1068 = vmatpush1.msra.mxu0 0.0
    %1069 = vmatprep.subr.mxu0 0.0
    %1070 = vmatpush1.msra.mxu0 0.0
    %1071 = vmatprep.subr.mxu0 0.0
    %1072 = vmatpush1.msra.mxu0 0.0
    %1073 = vmatprep.subr.mxu0 0.0
    %1074 = vmatpush1.msra.mxu0 0.0
    %1075 = vmatprep.subr.mxu0 0.0
    %1076 = vmatpush1.msra.mxu0 0.0
    %1077 = vmatprep.mubr.f32.mxu0 0.0
    %1078 = vmatmul.mubr.f32.gmra.mrb[0].mxu0 %v935
    %v1079 = vpop.f32.mrb[0].mxu0
    %v1080 = vadd.f32 0.0, %v1079
    %v1081 = vpop.f32.mrb[0].mxu0
    %1082 = vdwg.mxu0
    %v1083 = vadd.f32 %v939, %v1009
    %v1084 = vxor.u32 %v1083, 2147483648
    %v1085 = vmul.f32 %v1084, 1.442695
    %v1086 = vpow.pop %v1085
    %v1087 = vadd.f32 %v1086, 1.0
    %v1088 = vrcp.pop %v1087
    %v1089 = vmul.f32 1.0, %v1088
    %v1090 = vadd.f32 %v940, %v1011
    %v1091 = vxor.u32 %v1090, 2147483648
    %v1092 = vmul.f32 %v1091, 1.442695
    %v1093 = vpow.pop %v1092
    %v1094 = vadd.f32 %v1093, 1.0
    %v1095 = vrcp.pop %v1094
    %v1096 = vmul.f32 1.0, %v1095
    %v1097 = vadd.f32 %v1080, %v92
    %v1098 = vmul.f32 %v1089, %v1097
    %v1099 = vadd.f32 %v941, %v1098
    %v1100 = vtanh.pop %v1099
    %v1101 = vsub.f32 1.0, %v1096
    %v1102 = vmul.f32 %v1101, %v1100
    %v1103 = vmul.f32 %v1096, %v935
    %v1104 = vadd.f32 %v1102, %v1103
    %s1105 = scalar_lea.vmem %s4, 40
    %1106 = vst [vmem:[%s1105] sm:$0xff] %v1104
    %s1107 = scalar_lea.vmem %s1, 144
    %v1108 = vld [vmem:[%s1107] sm:$0xff]
    %v1109 = vld [vmem:[%s1107 + $0x8] sm:$0xff]
    %v1110 = vld [vmem:[%s1107 + $0x10] sm:$0xff]
    %1111 = vmatprep.subr.mxu0 %v40
    %1112 = vmatpush1.msra.mxu0 %v39
    %1113 = vmatprep.subr.mxu0 %v43
    %1114 = vmatpush1.msra.mxu0 %v42
    %1115 = vmatprep.subr.mxu0 %v46
    %1116 = vmatpush1.msra.mxu0 %v45
    %1117 = vmatprep.subr.mxu0 %v49
    %1118 = vmatpush1.msra.mxu0 %v48
    %1119 = vmatprep.subr.mxu0 %v52
    %1120 = vmatpush1.msra.mxu0 %v51
    %1121 = vmatprep.subr.mxu0 %v55
    %1122 = vmatpush1.msra.mxu0 %v54
    %1123 = vmatprep.subr.mxu0 %v58
    %1124 = vmatpush1.msra.mxu0 %v57
    %1125 = vmatprep.subr.mxu0 %v61
    %1126 = vmatpush1.msra.mxu0 %v60
    %1127 = vmatprep.subr.mxu0 %v64
    %1128 = vmatpush1.msra.mxu0 %v63
    %1129 = vmatprep.subr.mxu0 %v67
    %1130 = vmatpush1.msra.mxu0 %v66
    %1131 = vmatprep.subr.mxu0 %v70
    %1132 = vmatpush1.msra.mxu0 %v69
    %1133 = vmatprep.subr.mxu0 %v73
    %1134 = vmatpush1.msra.mxu0 %v72
    %1135 = vmatprep.subr.mxu0 %v76
    %1136 = vmatpush1.msra.mxu0 %v75
    %1137 = vmatprep.subr.mxu0 %v79
    %1138 = vmatpush1.msra.mxu0 %v78
    %1139 = vmatprep.subr.mxu0 %v82
    %1140 = vmatpush1.msra.mxu0 %v81
    %1141 = vmatprep.subr.mxu0 %v85
    %1142 = vmatpush1.msra.mxu0 %v84
    %1143 = vmatprep.subr.mxu0 0.0
    %1144 = vmatpush1.msra.mxu0 0.0
    %1145 = vmatprep.subr.mxu0 0.0
    %1146 = vmatpush1.msra.mxu0 0.0
    %1147 = vmatprep.subr.mxu0 0.0
    %1148 = vmatpush1.msra.mxu0 0.0
    %1149 = vmatprep.subr.mxu0 0.0
    %1150 = vmatpush1.msra.mxu0 0.0
    %1151 = vmatprep.subr.mxu0 0.0
    %1152 = vmatpush1.msra.mxu0 0.0
    %1153 = vmatprep.subr.mxu0 0.0
    %1154 = vmatpush1.msra.mxu0 0.0
    %1155 = vmatprep.subr.mxu0 0.0
    %1156 = vmatpush1.msra.mxu0 0.0
    %1157 = vmatprep.subr.mxu0 0.0
    %1158 = vmatpush1.msra.mxu0 0.0
    %1159 = vmatprep.subr.mxu0 0.0
    %1160 = vmatpush1.msra.mxu0 0.0
    %1161 = vmatprep.subr.mxu0 0.0
    %1162 = vmatpush1.msra.mxu0 0.0
    %1163 = vmatprep.subr.mxu0 0.0
    %1164 = vmatpush1.msra.mxu0 0.0
    %1165 = vmatprep.subr.mxu0 0.0
    %1166 = vmatpush1.msra.mxu0 0.0
    %1167 = vmatprep.subr.mxu0 0.0
    %1168 = vmatpush1.msra.mxu0 0.0
    %1169 = vmatprep.subr.mxu0 0.0
    %1170 = vmatpush1.msra.mxu0 0.0
    %1171 = vmatprep.subr.mxu0 0.0
    %1172 = vmatpush1.msra.mxu0 0.0
    %1173 = vmatprep.subr.mxu0 0.0
    %1174 = vmatpush1.msra.mxu0 0.0
    %1175 = vmatprep.mubr.f32.mxu0 0.0
    %1176 = vmatmul.mubr.f32.gmra.mrb[0].mxu0 %v1104
    %v1177 = vpop.f32.mrb[0].mxu0
    %v1178 = vadd.f32 0.0, %v1177
    %v1179 = vpop.f32.mrb[0].mxu0
    %v1180 = vadd.f32 0.0, %v1179
    %1181 = vdwg.mxu0
    %1182 = vmatprep.subr.mxu0 0.0
    %1183 = vmatpush1.msra.mxu0 %v41
    %1184 = vmatprep.subr.mxu0 0.0
    %1185 = vmatpush1.msra.mxu0 %v44
    %1186 = vmatprep.subr.mxu0 0.0
    %1187 = vmatpush1.msra.mxu0 %v47
    %1188 = vmatprep.subr.mxu0 0.0
    %1189 = vmatpush1.msra.mxu0 %v50
    %1190 = vmatprep.subr.mxu0 0.0
    %1191 = vmatpush1.msra.mxu0 %v53
    %1192 = vmatprep.subr.mxu0 0.0
    %1193 = vmatpush1.msra.mxu0 %v56
    %1194 = vmatprep.subr.mxu0 0.0
    %1195 = vmatpush1.msra.mxu0 %v59
    %1196 = vmatprep.subr.mxu0 0.0
    %1197 = vmatpush1.msra.mxu0 %v62
    %1198 = vmatprep.subr.mxu0 0.0
    %1199 = vmatpush1.msra.mxu0 %v65
    %1200 = vmatprep.subr.mxu0 0.0
    %1201 = vmatpush1.msra.mxu0 %v68
    %1202 = vmatprep.subr.mxu0 0.0
    %1203 = vmatpush1.msra.mxu0 %v71
    %1204 = vmatprep.subr.mxu0 0.0
    %1205 = vmatpush1.msra.mxu0 %v74
    %1206 = vmatprep.subr.mxu0 0.0
    %1207 = vmatpush1.msra.mxu0 %v77
    %1208 = vmatprep.subr.mxu0 0.0
    %1209 = vmatpush1.msra.mxu0 %v80
    %1210 = vmatprep.subr.mxu0 0.0
    %1211 = vmatpush1.msra.mxu0 %v83
    %1212 = vmatprep.subr.mxu0 0.0
    %1213 = vmatpush1.msra.mxu0 %v86
    %1214 = vmatprep.subr.mxu0 0.0
    %1215 = vmatpush1.msra.mxu0 0.0
    %1216 = vmatprep.subr.mxu0 0.0
    %1217 = vmatpush1.msra.mxu0 0.0
    %1218 = vmatprep.subr.mxu0 0.0
    %1219 = vmatpush1.msra.mxu0 0.0
    %1220 = vmatprep.subr.mxu0 0.0
    %1221 = vmatpush1.msra.mxu0 0.0
    %1222 = vmatprep.subr.mxu0 0.0
    %1223 = vmatpush1.msra.mxu0 0.0
    %1224 = vmatprep.subr.mxu0 0.0
    %1225 = vmatpush1.msra.mxu0 0.0
    %1226 = vmatprep.subr.mxu0 0.0
    %1227 = vmatpush1.msra.mxu0 0.0
    %1228 = vmatprep.subr.mxu0 0.0
    %1229 = vmatpush1.msra.mxu0 0.0
    %1230 = vmatprep.subr.mxu0 0.0
    %1231 = vmatpush1.msra.mxu0 0.0
    %1232 = vmatprep.subr.mxu0 0.0
    %1233 = vmatpush1.msra.mxu0 0.0
    %1234 = vmatprep.subr.mxu0 0.0
    %1235 = vmatpush1.msra.mxu0 0.0
    %1236 = vmatprep.subr.mxu0 0.0
    %1237 = vmatpush1.msra.mxu0 0.0
    %1238 = vmatprep.subr.mxu0 0.0
    %1239 = vmatpush1.msra.mxu0 0.0
    %1240 = vmatprep.subr.mxu0 0.0
    %1241 = vmatpush1.msra.mxu0 0.0
    %1242 = vmatprep.subr.mxu0 0.0
    %1243 = vmatpush1.msra.mxu0 0.0
    %1244 = vmatprep.subr.mxu0 0.0
    %1245 = vmatpush1.msra.mxu0 0.0
    %1246 = vmatprep.mubr.f32.mxu0 0.0
    %1247 = vmatmul.mubr.f32.gmra.mrb[0].mxu0 %v1104
    %v1248 = vpop.f32.mrb[0].mxu0
    %v1249 = vadd.f32 0.0, %v1248
    %v1250 = vpop.f32.mrb[0].mxu0
    %1251 = vdwg.mxu0
    %v1252 = vadd.f32 %v1108, %v1178
    %v1253 = vxor.u32 %v1252, 2147483648
    %v1254 = vmul.f32 %v1253, 1.442695
    %v1255 = vpow.pop %v1254
    %v1256 = vadd.f32 %v1255, 1.0
    %v1257 = vrcp.pop %v1256
    %v1258 = vmul.f32 1.0, %v1257
    %v1259 = vadd.f32 %v1109, %v1180
    %v1260 = vxor.u32 %v1259, 2147483648
    %v1261 = vmul.f32 %v1260, 1.442695
    %v1262 = vpow.pop %v1261
    %v1263 = vadd.f32 %v1262, 1.0
    %v1264 = vrcp.pop %v1263
    %v1265 = vmul.f32 1.0, %v1264
    %v1266 = vadd.f32 %v1249, %v92
    %v1267 = vmul.f32 %v1258, %v1266
    %v1268 = vadd.f32 %v1110, %v1267
    %v1269 = vtanh.pop %v1268
    %v1270 = vsub.f32 1.0, %v1265
    %v1271 = vmul.f32 %v1270, %v1269
    %v1272 = vmul.f32 %v1265, %v1104
    %v1273 = vadd.f32 %v1271, %v1272
    %s1274 = scalar_lea.vmem %s4, 48
    %1275 = vst [vmem:[%s1274] sm:$0xff] %v1273
    %s1276 = scalar_lea.vmem %s1, 168
    %v1277 = vld [vmem:[%s1276] sm:$0xff]
    %v1278 = vld [vmem:[%s1276 + $0x8] sm:$0xff]
    %v1279 = vld [vmem:[%s1276 + $0x10] sm:$0xff]
    %1280 = vmatprep.subr.mxu0 %v40
    %1281 = vmatpush1.msra.mxu0 %v39
    %1282 = vmatprep.subr.mxu0 %v43
    %1283 = vmatpush1.msra.mxu0 %v42
    %1284 = vmatprep.subr.mxu0 %v46
    %1285 = vmatpush1.msra.mxu0 %v45
    %1286 = vmatprep.subr.mxu0 %v49
    %1287 = vmatpush1.msra.mxu0 %v48
    %1288 = vmatprep.subr.mxu0 %v52
    %1289 = vmatpush1.msra.mxu0 %v51
    %1290 = vmatprep.subr.mxu0 %v55
    %1291 = vmatpush1.msra.mxu0 %v54
    %1292 = vmatprep.subr.mxu0 %v58
    %1293 = vmatpush1.msra.mxu0 %v57
    %1294 = vmatprep.subr.mxu0 %v61
    %1295 = vmatpush1.msra.mxu0 %v60
    %1296 = vmatprep.subr.mxu0 %v64
    %1297 = vmatpush1.msra.mxu0 %v63
    %1298 = vmatprep.subr.mxu0 %v67
    %1299 = vmatpush1.msra.mxu0 %v66
    %1300 = vmatprep.subr.mxu0 %v70
    %1301 = vmatpush1.msra.mxu0 %v69
    %1302 = vmatprep.subr.mxu0 %v73
    %1303 = vmatpush1.msra.mxu0 %v72
    %1304 = vmatprep.subr.mxu0 %v76
    %1305 = vmatpush1.msra.mxu0 %v75
    %1306 = vmatprep.subr.mxu0 %v79
    %1307 = vmatpush1.msra.mxu0 %v78
    %1308 = vmatprep.subr.mxu0 %v82
    %1309 = vmatpush1.msra.mxu0 %v81
    %1310 = vmatprep.subr.mxu0 %v85
    %1311 = vmatpush1.msra.mxu0 %v84
    %1312 = vmatprep.subr.mxu0 0.0
    %1313 = vmatpush1.msra.mxu0 0.0
    %1314 = vmatprep.subr.mxu0 0.0
    %1315 = vmatpush1.msra.mxu0 0.0
    %1316 = vmatprep.subr.mxu0 0.0
    %1317 = vmatpush1.msra.mxu0 0.0
    %1318 = vmatprep.subr.mxu0 0.0
    %1319 = vmatpush1.msra.mxu0 0.0
    %1320 = vmatprep.subr.mxu0 0.0
    %1321 = vmatpush1.msra.mxu0 0.0
    %1322 = vmatprep.subr.mxu0 0.0
    %1323 = vmatpush1.msra.mxu0 0.0
    %1324 = vmatprep.subr.mxu0 0.0
    %1325 = vmatpush1.msra.mxu0 0.0
    %1326 = vmatprep.subr.mxu0 0.0
    %1327 = vmatpush1.msra.mxu0 0.0
    %1328 = vmatprep.subr.mxu0 0.0
    %1329 = vmatpush1.msra.mxu0 0.0
    %1330 = vmatprep.subr.mxu0 0.0
    %1331 = vmatpush1.msra.mxu0 0.0
    %1332 = vmatprep.subr.mxu0 0.0
    %1333 = vmatpush1.msra.mxu0 0.0
    %1334 = vmatprep.subr.mxu0 0.0
    %1335 = vmatpush1.msra.mxu0 0.0
    %1336 = vmatprep.subr.mxu0 0.0
    %1337 = vmatpush1.msra.mxu0 0.0
    %1338 = vmatprep.subr.mxu0 0.0
    %1339 = vmatpush1.msra.mxu0 0.0
    %1340 = vmatprep.subr.mxu0 0.0
    %1341 = vmatpush1.msra.mxu0 0.0
    %1342 = vmatprep.subr.mxu0 0.0
    %1343 = vmatpush1.msra.mxu0 0.0
    %1344 = vmatprep.mubr.f32.mxu0 0.0
    %1345 = vmatmul.mubr.f32.gmra.mrb[0].mxu0 %v1273
    %v1346 = vpop.f32.mrb[0].mxu0
    %v1347 = vadd.f32 0.0, %v1346
    %v1348 = vpop.f32.mrb[0].mxu0
    %v1349 = vadd.f32 0.0, %v1348
    %1350 = vdwg.mxu0
    %1351 = vmatprep.subr.mxu0 0.0
    %1352 = vmatpush1.msra.mxu0 %v41
    %1353 = vmatprep.subr.mxu0 0.0
    %1354 = vmatpush1.msra.mxu0 %v44
    %1355 = vmatprep.subr.mxu0 0.0
    %1356 = vmatpush1.msra.mxu0 %v47
    %1357 = vmatprep.subr.mxu0 0.0
    %1358 = vmatpush1.msra.mxu0 %v50
    %1359 = vmatprep.subr.mxu0 0.0
    %1360 = vmatpush1.msra.mxu0 %v53
    %1361 = vmatprep.subr.mxu0 0.0
    %1362 = vmatpush1.msra.mxu0 %v56
    %1363 = vmatprep.subr.mxu0 0.0
    %1364 = vmatpush1.msra.mxu0 %v59
    %1365 = vmatprep.subr.mxu0 0.0
    %1366 = vmatpush1.msra.mxu0 %v62
    %1367 = vmatprep.subr.mxu0 0.0
    %1368 = vmatpush1.msra.mxu0 %v65
    %1369 = vmatprep.subr.mxu0 0.0
    %1370 = vmatpush1.msra.mxu0 %v68
    %1371 = vmatprep.subr.mxu0 0.0
    %1372 = vmatpush1.msra.mxu0 %v71
    %1373 = vmatprep.subr.mxu0 0.0
    %1374 = vmatpush1.msra.mxu0 %v74
    %1375 = vmatprep.subr.mxu0 0.0
    %1376 = vmatpush1.msra.mxu0 %v77
    %1377 = vmatprep.subr.mxu0 0.0
    %1378 = vmatpush1.msra.mxu0 %v80
    %1379 = vmatprep.subr.mxu0 0.0
    %1380 = vmatpush1.msra.mxu0 %v83
    %1381 = vmatprep.subr.mxu0 0.0
    %1382 = vmatpush1.msra.mxu0 %v86
    %1383 = vmatprep.subr.mxu0 0.0
    %1384 = vmatpush1.msra.mxu0 0.0
    %1385 = vmatprep.subr.mxu0 0.0
    %1386 = vmatpush1.msra.mxu0 0.0
    %1387 = vmatprep.subr.mxu0 0.0
    %1388 = vmatpush1.msra.mxu0 0.0
    %1389 = vmatprep.subr.mxu0 0.0
    %1390 = vmatpush1.msra.mxu0 0.0
    %1391 = vmatprep.subr.mxu0 0.0
    %1392 = vmatpush1.msra.mxu0 0.0
    %1393 = vmatprep.subr.mxu0 0.0
    %1394 = vmatpush1.msra.mxu0 0.0
    %1395 = vmatprep.subr.mxu0 0.0
    %1396 = vmatpush1.msra.mxu0 0.0
    %1397 = vmatprep.subr.mxu0 0.0
    %1398 = vmatpush1.msra.mxu0 0.0
    %1399 = vmatprep.subr.mxu0 0.0
    %1400 = vmatpush1.msra.mxu0 0.0
    %1401 = vmatprep.subr.mxu0 0.0
    %1402 = vmatpush1.msra.mxu0 0.0
    %1403 = vmatprep.subr.mxu0 0.0
    %1404 = vmatpush1.msra.mxu0 0.0
    %1405 = vmatprep.subr.mxu0 0.0
    %1406 = vmatpush1.msra.mxu0 0.0
    %1407 = vmatprep.subr.mxu0 0.0
    %1408 = vmatpush1.msra.mxu0 0.0
    %1409 = vmatprep.subr.mxu0 0.0
    %1410 = vmatpush1.msra.mxu0 0.0
    %1411 = vmatprep.subr.mxu0 0.0
    %1412 = vmatpush1.msra.mxu0 0.0
    %1413 = vmatprep.subr.mxu0 0.0
    %1414 = vmatpush1.msra.mxu0 0.0
    %1415 = vmatprep.mubr.f32.mxu0 0.0
    %1416 = vmatmul.mubr.f32.gmra.mrb[0].mxu0 %v1273
    %v1417 = vpop.f32.mrb[0].mxu0
    %v1418 = vadd.f32 0.0, %v1417
    %v1419 = vpop.f32.mrb[0].mxu0
    %1420 = vdwg.mxu0
    %v1421 = vadd.f32 %v1277, %v1347
    %v1422 = vxor.u32 %v1421, 2147483648
    %v1423 = vmul.f32 %v1422, 1.442695
    %v1424 = vpow.pop %v1423
    %v1425 = vadd.f32 %v1424, 1.0
    %v1426 = vrcp.pop %v1425
    %v1427 = vmul.f32 1.0, %v1426
    %v1428 = vadd.f32 %v1278, %v1349
    %v1429 = vxor.u32 %v1428, 2147483648
    %v1430 = vmul.f32 %v1429, 1.442695
    %v1431 = vpow.pop %v1430
    %v1432 = vadd.f32 %v1431, 1.0
    %v1433 = vrcp.pop %v1432
    %v1434 = vmul.f32 1.0, %v1433
    %v1435 = vadd.f32 %v1418, %v92
    %v1436 = vmul.f32 %v1427, %v1435
    %v1437 = vadd.f32 %v1279, %v1436
    %v1438 = vtanh.pop %v1437
    %v1439 = vsub.f32 1.0, %v1434
    %v1440 = vmul.f32 %v1439, %v1438
    %v1441 = vmul.f32 %v1434, %v1273
    %v1442 = vadd.f32 %v1440, %v1441
    %s1443 = scalar_lea.vmem %s4, 56
    %1444 = vst [vmem:[%s1443] sm:$0xff] %v1442
    %1445 = vst [vmem:[#allocation2] sm:$0xff] %v1442
    // Predicated region
    $region26: #{reco_gru_flux_forward.2} parent=1 // pred_check
      %p1446 = pneg %p33
    $region27: #{reco_gru_flux_forward.2} parent=1 // pred_check_branch
      %1448 = sbr.rel (%p1446) target = $region29
    $region28: #{reco_gru_flux_forward.2} parent=1 // pred_region
      %1449 = vst [vmem:[%s5] sm:$0xff] %v1442
    $region29: #{reco_gru_flux_forward.2} parent=1 // pred_fallthru
      _
    // Predicated region
    $region30: #{reco_gru_flux_forward.2} parent=1 // pred_check
      _
    $region31: #{reco_gru_flux_forward.2} parent=1 // pred_check_branch
      %1451 = sbr.rel (0) target = $region33
    $region32: #{reco_gru_flux_forward.2} parent=1 // pred_region
      _
    $region33: #{reco_gru_flux_forward.2} parent=1 // pred_fallthru
      _
    // Predicated region
    $region34: #{reco_gru_flux_forward.2} parent=1 // pred_check
      _
    $region35: #{reco_gru_flux_forward.2} parent=1 // pred_check_branch
      %1453 = sbr.rel (0) target = $region37
    $region36: #{reco_gru_flux_forward.2} parent=1 // pred_region
      _
    $region37: #{reco_gru_flux_forward.2} parent=1 // pred_fallthru
      _
    // Predicated region
    $region38: #{reco_gru_flux_forward.2} parent=1 // pred_check
      _
    $region39: #{reco_gru_flux_forward.2} parent=1 // pred_check_branch
      %1455 = sbr.rel (0) target = $region41
    $region40: #{reco_gru_flux_forward.2} parent=1 // pred_region
      _
    $region41: #{reco_gru_flux_forward.2} parent=1 // pred_fallthru
      _
    // Predicated region
    $region42: #{reco_gru_flux_forward.2} parent=1 // pred_check
      _
    $region43: #{reco_gru_flux_forward.2} parent=1 // pred_check_branch
      %1457 = sbr.rel (0) target = $region45
    $region44: #{reco_gru_flux_forward.2} parent=1 // pred_region
      _
    $region45: #{reco_gru_flux_forward.2} parent=1 // pred_fallthru
      _
    %1458 = vsyncpa [#allocation4], 1

// kernel: reco_gru_flux_forward.3
$region0: #{reco_gru_flux_forward.3}
  #allocation0 [shape = 'u32[]', space=smem, size = 0x4, offset = 0x4, fixed_abs, tag = 'smem constant byte address 0x4 - core index']
  #allocation1 [shape = 'u32[144,128]{1,0:T(1,128)}', space=vmem, size = 0x12000, scoped, tag = 'internal scratch']
  #allocation2 [shape = 'f32[8,128]{1,0:T(8,128)}', space=vmem, size = 0x1000, scoped, tag = 'scratch operand']
  #allocation3 [shape = 'f32[8,8,128]{2,1,0:T(8,128)}', space=vmem, size = 0x8000, scoped, tag = 'scratch operand']
  %s0 = inlined_call_operand.vmem [shape: f32[8,128], index: 0, kind: input, shape index: {}]
  %s1 = inlined_call_operand.vmem [shape: f32[8,8,384], index: 1, kind: input, shape index: {}]
  %s2 = inlined_call_operand.vmem [shape: f32[128,384], index: 2, kind: input, shape index: {}]
  %s3 = inlined_call_operand.vmem [shape: f32[1,128], index: 3, kind: input, shape index: {}]
  %s4 = inlined_call_operand.vmem [shape: f32[128,128], index: 4, kind: input, shape index: {}]
  %s5 = inlined_call_operand.vmem [shape: f32[1,128], index: 5, kind: input, shape index: {}]
  %s6 = inlined_call_operand.vmem [shape: f32[8,8,128], index: 6, kind: output, shape index: {0}]
  %s7 = inlined_call_operand.vmem [shape: f32[8,128], index: 7, kind: output, shape index: {1}]
  %8 = xla_tuple %s6, %s7
  %s9 = sld [smem:[#allocation0]]
  $region50: #{reco_gru_flux_forward.3} parent=0
    _
  %s11 = ssub.s32 1, %s9
  %s12 = scalar_select 0, %s11, %s9
  // Predicated region
  $region2: #{reco_gru_flux_forward.3} parent=0 // pred_check
    _
  $region3: #{reco_gru_flux_forward.3} parent=0 // pred_check_branch
    %14 = sbr.rel (0) target = $region5
  $region4: #{reco_gru_flux_forward.3} parent=0 // pred_region
    _
  $region5: #{reco_gru_flux_forward.3} parent=0 // pred_fallthru
    _
  // Predicated region
  $region6: #{reco_gru_flux_forward.3} parent=0 // pred_check
    _
  $region7: #{reco_gru_flux_forward.3} parent=0 // pred_check_branch
    %16 = sbr.rel (0) target = $region9
  $region8: #{reco_gru_flux_forward.3} parent=0 // pred_region
    _
  $region9: #{reco_gru_flux_forward.3} parent=0 // pred_fallthru
    _
  // Predicated region
  $region10: #{reco_gru_flux_forward.3} parent=0 // pred_check
    _
  $region11: #{reco_gru_flux_forward.3} parent=0 // pred_check_branch
    %18 = sbr.rel (0) target = $region13
  $region12: #{reco_gru_flux_forward.3} parent=0 // pred_region
    _
  $region13: #{reco_gru_flux_forward.3} parent=0 // pred_fallthru
    _
  // Predicated region
  $region14: #{reco_gru_flux_forward.3} parent=0 // pred_check
    _
  $region15: #{reco_gru_flux_forward.3} parent=0 // pred_check_branch
    %20 = sbr.rel (0) target = $region17
  $region16: #{reco_gru_flux_forward.3} parent=0 // pred_region
    _
  $region17: #{reco_gru_flux_forward.3} parent=0 // pred_fallthru
    _
  // Predicated region
  $region18: #{reco_gru_flux_forward.3} parent=0 // pred_check
    _
  $region19: #{reco_gru_flux_forward.3} parent=0 // pred_check_branch
    %22 = sbr.rel (0) target = $region21
  $region20: #{reco_gru_flux_forward.3} parent=0 // pred_region
    _
  $region21: #{reco_gru_flux_forward.3} parent=0 // pred_fallthru
    _
  // Predicated region
  $region22: #{reco_gru_flux_forward.3} parent=0 // pred_check
    _
  $region23: #{reco_gru_flux_forward.3} parent=0 // pred_check_branch
    %24 = sbr.rel (0) target = $region25
  $region24: #{reco_gru_flux_forward.3} parent=0 // pred_region
    _
  $region25: #{reco_gru_flux_forward.3} parent=0 // pred_fallthru
    _
  %p25 = scmp.eq.s32.totalorder 0, 0
  // Predicated region
  $region26: #{reco_gru_flux_forward.3} parent=0 // pred_check
    %p26 = pneg %p25
  $region27: #{reco_gru_flux_forward.3} parent=0 // pred_check_branch
    %28 = sbr.rel (%p26) target = $region29
  $region28: #{reco_gru_flux_forward.3} parent=0 // pred_region
    %v29 = vld [vmem:[%s0] sm:$0xff]
    %30 = vst [vmem:[#allocation2] sm:$0xff] %v29
  $region29: #{reco_gru_flux_forward.3} parent=0 // pred_fallthru
    _
  %v31 = vld [vmem:[%s2] sm:$0xff]
  %v32 = vld [vmem:[%s2 + $0x8] sm:$0xff]
  %v33 = vld [vmem:[%s2 + $0x10] sm:$0xff]
  %v34 = vld [vmem:[%s2 + $0x18] sm:$0xff]
  %v35 = vld [vmem:[%s2 + $0x20] sm:$0xff]
  %v36 = vld [vmem:[%s2 + $0x28] sm:$0xff]
  %v37 = vld [vmem:[%s2 + $0x30] sm:$0xff]
  %v38 = vld [vmem:[%s2 + $0x38] sm:$0xff]
  %v39 = vld [vmem:[%s2 + $0x40] sm:$0xff]
  %v40 = vld [vmem:[%s2 + $0x48] sm:$0xff]
  %v41 = vld [vmem:[%s2 + $0x50] sm:$0xff]
  %v42 = vld [vmem:[%s2 + $0x58] sm:$0xff]
  %v43 = vld [vmem:[%s2 + $0x60] sm:$0xff]
  %v44 = vld [vmem:[%s2 + $0x68] sm:$0xff]
  %v45 = vld [vmem:[%s2 + $0x70] sm:$0xff]
  %v46 = vld [vmem:[%s2 + $0x78] sm:$0xff]
  %v47 = vld [vmem:[%s2 + $0x80] sm:$0xff]
  %v48 = vld [vmem:[%s2 + $0x88] sm:$0xff]
  %v49 = vld [vmem:[%s2 + $0x90] sm:$0xff]
  %v50 = vld [vmem:[%s2 + $0x98] sm:$0xff]
  %v51 = vld [vmem:[%s2 + $0xa0] sm:$0xff]
  %v52 = vld [vmem:[%s2 + $0xa8] sm:$0xff]
  %v53 = vld [vmem:[%s2 + $0xb0] sm:$0xff]
  %v54 = vld [vmem:[%s2 + $0xb8] sm:$0xff]
  %v55 = vld [vmem:[%s2 + $0xc0] sm:$0xff]
  %v56 = vld [vmem:[%s2 + $0xc8] sm:$0xff]
  %v57 = vld [vmem:[%s2 + $0xd0] sm:$0xff]
  %v58 = vld [vmem:[%s2 + $0xd8] sm:$0xff]
  %v59 = vld [vmem:[%s2 + $0xe0] sm:$0xff]
  %v60 = vld [vmem:[%s2 + $0xe8] sm:$0xff]
  %v61 = vld [vmem:[%s2 + $0xf0] sm:$0xff]
  %v62 = vld [vmem:[%s2 + $0xf8] sm:$0xff]
  %v63 = vld [vmem:[%s2 + $0x100] sm:$0xff]
  %v64 = vld [vmem:[%s2 + $0x108] sm:$0xff]
  %v65 = vld [vmem:[%s2 + $0x110] sm:$0xff]
  %v66 = vld [vmem:[%s2 + $0x118] sm:$0xff]
  %v67 = vld [vmem:[%s2 + $0x120] sm:$0xff]
  %v68 = vld [vmem:[%s2 + $0x128] sm:$0xff]
  %v69 = vld [vmem:[%s2 + $0x130] sm:$0xff]
  %v70 = vld [vmem:[%s2 + $0x138] sm:$0xff]
  %v71 = vld [vmem:[%s2 + $0x140] sm:$0xff]
  %v72 = vld [vmem:[%s2 + $0x148] sm:$0xff]
  %v73 = vld [vmem:[%s2 + $0x150] sm:$0xff]
  %v74 = vld [vmem:[%s2 + $0x158] sm:$0xff]
  %v75 = vld [vmem:[%s2 + $0x160] sm:$0xff]
  %v76 = vld [vmem:[%s2 + $0x168] sm:$0xff]
  %v77 = vld [vmem:[%s2 + $0x170] sm:$0xff]
  %v78 = vld [vmem:[%s2 + $0x178] sm:$0xff]
  %v79 = vld [vmem:[%s3] sm:$0x1]
  %v81 = vlaneseq
  %v82 = vshrl.u32 %v81, 7
  %v83 = vsub.s32 0, %v82
  %v84 = vrot.slane %v79, %v83
  %v86 = vld [vmem:[#allocation2] sm:$0xff]
  %v87 = vld [vmem:[%s1] sm:$0xff]
  %v88 = vld [vmem:[%s1 + $0x8] sm:$0xff]
  %v89 = vld [vmem:[%s1 + $0x10] sm:$0xff]
  %90 = vmatprep.subr.mxu0 %v32
  %91 = vmatpush1.msra.mxu0 %v31
  %92 = vmatprep.subr.mxu0 %v35
  %93 = vmatpush1.msra.mxu0 %v34
  %94 = vmatprep.subr.mxu0 %v38
  %95 = vmatpush1.msra.mxu0 %v37
  %96 = vmatprep.subr.mxu0 %v41
  %97 = vmatpush1.msra.mxu0 %v40
  %98 = vmatprep.subr.mxu0 %v44
  %99 = vmatpush1.msra.mxu0 %v43
  %100 = vmatprep.subr.mxu0 %v47
  %101 = vmatpush1.msra.mxu0 %v46
  %102 = vmatprep.subr.mxu0 %v50
  %103 = vmatpush1.msra.mxu0 %v49
  %104 = vmatprep.subr.mxu0 %v53
  %105 = vmatpush1.msra.mxu0 %v52
  %106 = vmatprep.subr.mxu0 %v56
  %107 = vmatpush1.msra.mxu0 %v55
  %108 = vmatprep.subr.mxu0 %v59
  %109 = vmatpush1.msra.mxu0 %v58
  %110 = vmatprep.subr.mxu0 %v62
  %111 = vmatpush1.msra.mxu0 %v61
  %112 = vmatprep.subr.mxu0 %v65
  %113 = vmatpush1.msra.mxu0 %v64
  %114 = vmatprep.subr.mxu0 %v68
  %115 = vmatpush1.msra.mxu0 %v67
  %116 = vmatprep.subr.mxu0 %v71
  %117 = vmatpush1.msra.mxu0 %v70
  %118 = vmatprep.subr.mxu0 %v74
  %119 = vmatpush1.msra.mxu0 %v73
  %120 = vmatprep.subr.mxu0 %v77
  %121 = vmatpush1.msra.mxu0 %v76
  %122 = vmatprep.subr.mxu0 0.0
  %123 = vmatpush1.msra.mxu0 0.0
  %124 = vmatprep.subr.mxu0 0.0
  %125 = vmatpush1.msra.mxu0 0.0
  %126 = vmatprep.subr.mxu0 0.0
  %127 = vmatpush1.msra.mxu0 0.0
  %128 = vmatprep.subr.mxu0 0.0
  %129 = vmatpush1.msra.mxu0 0.0
  %130 = vmatprep.subr.mxu0 0.0
  %131 = vmatpush1.msra.mxu0 0.0
  %132 = vmatprep.subr.mxu0 0.0
  %133 = vmatpush1.msra.mxu0 0.0
  %134 = vmatprep.subr.mxu0 0.0
  %135 = vmatpush1.msra.mxu0 0.0
  %136 = vmatprep.subr.mxu0 0.0
  %137 = vmatpush1.msra.mxu0 0.0
  %138 = vmatprep.subr.mxu0 0.0
  %139 = vmatpush1.msra.mxu0 0.0
  %140 = vmatprep.subr.mxu0 0.0
  %141 = vmatpush1.msra.mxu0 0.0
  %142 = vmatprep.subr.mxu0 0.0
  %143 = vmatpush1.msra.mxu0 0.0
  %144 = vmatprep.subr.mxu0 0.0
  %145 = vmatpush1.msra.mxu0 0.0
  %146 = vmatprep.subr.mxu0 0.0
  %147 = vmatpush1.msra.mxu0 0.0
  %148 = vmatprep.subr.mxu0 0.0
  %149 = vmatpush1.msra.mxu0 0.0
  %150 = vmatprep.subr.mxu0 0.0
  %151 = vmatpush1.msra.mxu0 0.0
  %152 = vmatprep.subr.mxu0 0.0
  %153 = vmatpush1.msra.mxu0 0.0
  %154 = vmatprep.mubr.f32.mxu0 0.0
  %155 = vmatmul.mubr.f32.gmra.mrb[0].mxu0 %v86
  %v156 = vpop.f32.mrb[0].mxu0
  %v157 = vadd.f32 0.0, %v156
  %v158 = vpop.f32.mrb[0].mxu0
  %v159 = vadd.f32 0.0, %v158
  %160 = vdwg.mxu0
  %161 = vmatprep.subr.mxu0 0.0
  %162 = vmatpush1.msra.mxu0 %v33
  %163 = vmatprep.subr.mxu0 0.0
  %164 = vmatpush1.msra.mxu0 %v36
  %165 = vmatprep.subr.mxu0 0.0
  %166 = vmatpush1.msra.mxu0 %v39
  %167 = vmatprep.subr.mxu0 0.0
  %168 = vmatpush1.msra.mxu0 %v42
  %169 = vmatprep.subr.mxu0 0.0
  %170 = vmatpush1.msra.mxu0 %v45
  %171 = vmatprep.subr.mxu0 0.0
  %172 = vmatpush1.msra.mxu0 %v48
  %173 = vmatprep.subr.mxu0 0.0
  %174 = vmatpush1.msra.mxu0 %v51
  %175 = vmatprep.subr.mxu0 0.0
  %176 = vmatpush1.msra.mxu0 %v54
  %177 = vmatprep.subr.mxu0 0.0
  %178 = vmatpush1.msra.mxu0 %v57
  %179 = vmatprep.subr.mxu0 0.0
  %180 = vmatpush1.msra.mxu0 %v60
  %181 = vmatprep.subr.mxu0 0.0
  %182 = vmatpush1.msra.mxu0 %v63
  %183 = vmatprep.subr.mxu0 0.0
  %184 = vmatpush1.msra.mxu0 %v66
  %185 = vmatprep.subr.mxu0 0.0
  %186 = vmatpush1.msra.mxu0 %v69
  %187 = vmatprep.subr.mxu0 0.0
  %188 = vmatpush1.msra.mxu0 %v72
  %189 = vmatprep.subr.mxu0 0.0
  %190 = vmatpush1.msra.mxu0 %v75
  %191 = vmatprep.subr.mxu0 0.0
  %192 = vmatpush1.msra.mxu0 %v78
  %193 = vmatprep.subr.mxu0 0.0
  %194 = vmatpush1.msra.mxu0 0.0
  %195 = vmatprep.subr.mxu0 0.0
  %196 = vmatpush1.msra.mxu0 0.0
  %197 = vmatprep.subr.mxu0 0.0
  %198 = vmatpush1.msra.mxu0 0.0
  %199 = vmatprep.subr.mxu0 0.0
  %200 = vmatpush1.msra.mxu0 0.0
  %201 = vmatprep.subr.mxu0 0.0
  %202 = vmatpush1.msra.mxu0 0.0
  %203 = vmatprep.subr.mxu0 0.0
  %204 = vmatpush1.msra.mxu0 0.0
  %205 = vmatprep.subr.mxu0 0.0
  %206 = vmatpush1.msra.mxu0 0.0
  %207 = vmatprep.subr.mxu0 0.0
  %208 = vmatpush1.msra.mxu0 0.0
  %209 = vmatprep.subr.mxu0 0.0
  %210 = vmatpush1.msra.mxu0 0.0
  %211 = vmatprep.subr.mxu0 0.0
  %212 = vmatpush1.msra.mxu0 0.0
  %213 = vmatprep.subr.mxu0 0.0
  %214 = vmatpush1.msra.mxu0 0.0
  %215 = vmatprep.subr.mxu0 0.0
  %216 = vmatpush1.msra.mxu0 0.0
  %217 = vmatprep.subr.mxu0 0.0
  %218 = vmatpush1.msra.mxu0 0.0
  %219 = vmatprep.subr.mxu0 0.0
  %220 = vmatpush1.msra.mxu0 0.0
  %221 = vmatprep.subr.mxu0 0.0
  %222 = vmatpush1.msra.mxu0 0.0
  %223 = vmatprep.subr.mxu0 0.0
  %224 = vmatpush1.msra.mxu0 0.0
  %225 = vmatprep.mubr.f32.mxu0 0.0
  %226 = vmatmul.mubr.f32.gmra.mrb[0].mxu0 %v86
  %v227 = vpop.f32.mrb[0].mxu0
  %v228 = vadd.f32 0.0, %v227
  %v229 = vpop.f32.mrb[0].mxu0
  %230 = vdwg.mxu0
  %v231 = vadd.f32 %v87, %v157
  %v232 = vxor.u32 %v231, 2147483648
  %v233 = vmul.f32 %v232, 1.442695
  %v234 = vpow.pop %v233
  %v235 = vadd.f32 %v234, 1.0
  %v236 = vrcp.pop %v235
  %v237 = vmul.f32 1.0, %v236
  %v238 = vadd.f32 %v88, %v159
  %v239 = vxor.u32 %v238, 2147483648
  %v240 = vmul.f32 %v239, 1.442695
  %v241 = vpow.pop %v240
  %v242 = vadd.f32 %v241, 1.0
  %v243 = vrcp.pop %v242
  %v244 = vmul.f32 1.0, %v243
  %v245 = vadd.f32 %v228, %v84
  %v246 = vmul.f32 %v237, %v245
  %v247 = vadd.f32 %v89, %v246
  %v248 = vtanh.pop %v247
  %v249 = vsub.f32 1.0, %v244
  %v250 = vmul.f32 %v249, %v248
  %v251 = vmul.f32 %v244, %v86
  %v252 = vadd.f32 %v250, %v251
  %253 = vst [vmem:[#allocation3] sm:$0xff] %v252
  %s254 = scalar_lea.vmem %s1, 24
  %v255 = vld [vmem:[%s254] sm:$0xff]
  %v256 = vld [vmem:[%s254 + $0x8] sm:$0xff]
  %v257 = vld [vmem:[%s254 + $0x10] sm:$0xff]
  %258 = vmatprep.subr.mxu0 %v32
  %259 = vmatpush1.msra.mxu0 %v31
  %260 = vmatprep.subr.mxu0 %v35
  %261 = vmatpush1.msra.mxu0 %v34
  %262 = vmatprep.subr.mxu0 %v38
  %263 = vmatpush1.msra.mxu0 %v37
  %264 = vmatprep.subr.mxu0 %v41
  %265 = vmatpush1.msra.mxu0 %v40
  %266 = vmatprep.subr.mxu0 %v44
  %267 = vmatpush1.msra.mxu0 %v43
  %268 = vmatprep.subr.mxu0 %v47
  %269 = vmatpush1.msra.mxu0 %v46
  %270 = vmatprep.subr.mxu0 %v50
  %271 = vmatpush1.msra.mxu0 %v49
  %272 = vmatprep.subr.mxu0 %v53
  %273 = vmatpush1.msra.mxu0 %v52
  %274 = vmatprep.subr.mxu0 %v56
  %275 = vmatpush1.msra.mxu0 %v55
  %276 = vmatprep.subr.mxu0 %v59
  %277 = vmatpush1.msra.mxu0 %v58
  %278 = vmatprep.subr.mxu0 %v62
  %279 = vmatpush1.msra.mxu0 %v61
  %280 = vmatprep.subr.mxu0 %v65
  %281 = vmatpush1.msra.mxu0 %v64
  %282 = vmatprep.subr.mxu0 %v68
  %283 = vmatpush1.msra.mxu0 %v67
  %284 = vmatprep.subr.mxu0 %v71
  %285 = vmatpush1.msra.mxu0 %v70
  %286 = vmatprep.subr.mxu0 %v74
  %287 = vmatpush1.msra.mxu0 %v73
  %288 = vmatprep.subr.mxu0 %v77
  %289 = vmatpush1.msra.mxu0 %v76
  %290 = vmatprep.subr.mxu0 0.0
  %291 = vmatpush1.msra.mxu0 0.0
  %292 = vmatprep.subr.mxu0 0.0
  %293 = vmatpush1.msra.mxu0 0.0
  %294 = vmatprep.subr.mxu0 0.0
  %295 = vmatpush1.msra.mxu0 0.0
  %296 = vmatprep.subr.mxu0 0.0
  %297 = vmatpush1.msra.mxu0 0.0
  %298 = vmatprep.subr.mxu0 0.0
  %299 = vmatpush1.msra.mxu0 0.0
  %300 = vmatprep.subr.mxu0 0.0
  %301 = vmatpush1.msra.mxu0 0.0
  %302 = vmatprep.subr.mxu0 0.0
  %303 = vmatpush1.msra.mxu0 0.0
  %304 = vmatprep.subr.mxu0 0.0
  %305 = vmatpush1.msra.mxu0 0.0
  %306 = vmatprep.subr.mxu0 0.0
  %307 = vmatpush1.msra.mxu0 0.0
  %308 = vmatprep.subr.mxu0 0.0
  %309 = vmatpush1.msra.mxu0 0.0
  %310 = vmatprep.subr.mxu0 0.0
  %311 = vmatpush1.msra.mxu0 0.0
  %312 = vmatprep.subr.mxu0 0.0
  %313 = vmatpush1.msra.mxu0 0.0
  %314 = vmatprep.subr.mxu0 0.0
  %315 = vmatpush1.msra.mxu0 0.0
  %316 = vmatprep.subr.mxu0 0.0
  %317 = vmatpush1.msra.mxu0 0.0
  %318 = vmatprep.subr.mxu0 0.0
  %319 = vmatpush1.msra.mxu0 0.0
  %320 = vmatprep.subr.mxu0 0.0
  %321 = vmatpush1.msra.mxu0 0.0
  %322 = vmatprep.mubr.f32.mxu0 0.0
  %323 = vmatmul.mubr.f32.gmra.mrb[0].mxu0 %v252
  %v324 = vpop.f32.mrb[0].mxu0
  %v325 = vadd.f32 0.0, %v324
  %v326 = vpop.f32.mrb[0].mxu0
  %v327 = vadd.f32 0.0, %v326
  %328 = vdwg.mxu0
  %329 = vmatprep.subr.mxu0 0.0
  %330 = vmatpush1.msra.mxu0 %v33
  %331 = vmatprep.subr.mxu0 0.0
  %332 = vmatpush1.msra.mxu0 %v36
  %333 = vmatprep.subr.mxu0 0.0
  %334 = vmatpush1.msra.mxu0 %v39
  %335 = vmatprep.subr.mxu0 0.0
  %336 = vmatpush1.msra.mxu0 %v42
  %337 = vmatprep.subr.mxu0 0.0
  %338 = vmatpush1.msra.mxu0 %v45
  %339 = vmatprep.subr.mxu0 0.0
  %340 = vmatpush1.msra.mxu0 %v48
  %341 = vmatprep.subr.mxu0 0.0
  %342 = vmatpush1.msra.mxu0 %v51
  %343 = vmatprep.subr.mxu0 0.0
  %344 = vmatpush1.msra.mxu0 %v54
  %345 = vmatprep.subr.mxu0 0.0
  %346 = vmatpush1.msra.mxu0 %v57
  %347 = vmatprep.subr.mxu0 0.0
  %348 = vmatpush1.msra.mxu0 %v60
  %349 = vmatprep.subr.mxu0 0.0
  %350 = vmatpush1.msra.mxu0 %v63
  %351 = vmatprep.subr.mxu0 0.0
  %352 = vmatpush1.msra.mxu0 %v66
  %353 = vmatprep.subr.mxu0 0.0
  %354 = vmatpush1.msra.mxu0 %v69
  %355 = vmatprep.subr.mxu0 0.0
  %356 = vmatpush1.msra.mxu0 %v72
  %357 = vmatprep.subr.mxu0 0.0
  %358 = vmatpush1.msra.mxu0 %v75
  %359 = vmatprep.subr.mxu0 0.0
  %360 = vmatpush1.msra.mxu0 %v78
  %361 = vmatprep.subr.mxu0 0.0
  %362 = vmatpush1.msra.mxu0 0.0
  %363 = vmatprep.subr.mxu0 0.0
  %364 = vmatpush1.msra.mxu0 0.0
  %365 = vmatprep.subr.mxu0 0.0
  %366 = vmatpush1.msra.mxu0 0.0
  %367 = vmatprep.subr.mxu0 0.0
  %368 = vmatpush1.msra.mxu0 0.0
  %369 = vmatprep.subr.mxu0 0.0
  %370 = vmatpush1.msra.mxu0 0.0
  %371 = vmatprep.subr.mxu0 0.0
  %372 = vmatpush1.msra.mxu0 0.0
  %373 = vmatprep.subr.mxu0 0.0
  %374 = vmatpush1.msra.mxu0 0.0
  %375 = vmatprep.subr.mxu0 0.0
  %376 = vmatpush1.msra.mxu0 0.0
  %377 = vmatprep.subr.mxu0 0.0
  %378 = vmatpush1.msra.mxu0 0.0
  %379 = vmatprep.subr.mxu0 0.0
  %380 = vmatpush1.msra.mxu0 0.0
  %381 = vmatprep.subr.mxu0 0.0
  %382 = vmatpush1.msra.mxu0 0.0
  %383 = vmatprep.subr.mxu0 0.0
  %384 = vmatpush1.msra.mxu0 0.0
  %385 = vmatprep.subr.mxu0 0.0
  %386 = vmatpush1.msra.mxu0 0.0
  %387 = vmatprep.subr.mxu0 0.0
  %388 = vmatpush1.msra.mxu0 0.0
  %389 = vmatprep.subr.mxu0 0.0
  %390 = vmatpush1.msra.mxu0 0.0
  %391 = vmatprep.subr.mxu0 0.0
  %392 = vmatpush1.msra.mxu0 0.0
  %393 = vmatprep.mubr.f32.mxu0 0.0
  %394 = vmatmul.mubr.f32.gmra.mrb[0].mxu0 %v252
  %v395 = vpop.f32.mrb[0].mxu0
  %v396 = vadd.f32 0.0, %v395
  %v397 = vpop.f32.mrb[0].mxu0
  %398 = vdwg.mxu0
  %v399 = vadd.f32 %v255, %v325
  %v400 = vxor.u32 %v399, 2147483648
  %v401 = vmul.f32 %v400, 1.442695
  %v402 = vpow.pop %v401
  %v403 = vadd.f32 %v402, 1.0
  %v404 = vrcp.pop %v403
  %v405 = vmul.f32 1.0, %v404
  %v406 = vadd.f32 %v256, %v327
  %v407 = vxor.u32 %v406, 2147483648
  %v408 = vmul.f32 %v407, 1.442695
  %v409 = vpow.pop %v408
  %v410 = vadd.f32 %v409, 1.0
  %v411 = vrcp.pop %v410
  %v412 = vmul.f32 1.0, %v411
  %v413 = vadd.f32 %v396, %v84
  %v414 = vmul.f32 %v405, %v413
  %v415 = vadd.f32 %v257, %v414
  %v416 = vtanh.pop %v415
  %v417 = vsub.f32 1.0, %v412
  %v418 = vmul.f32 %v417, %v416
  %v419 = vmul.f32 %v412, %v252
  %v420 = vadd.f32 %v418, %v419
  %s421 = scalar_lea.vmem [#allocation3], 8
  %422 = vst [vmem:[%s421] sm:$0xff] %v420
  %s423 = scalar_lea.vmem %s1, 48
  %v424 = vld [vmem:[%s423] sm:$0xff]
  %v425 = vld [vmem:[%s423 + $0x8] sm:$0xff]
  %v426 = vld [vmem:[%s423 + $0x10] sm:$0xff]
  %427 = vmatprep.subr.mxu0 %v32
  %428 = vmatpush1.msra.mxu0 %v31
  %429 = vmatprep.subr.mxu0 %v35
  %430 = vmatpush1.msra.mxu0 %v34
  %431 = vmatprep.subr.mxu0 %v38
  %432 = vmatpush1.msra.mxu0 %v37
  %433 = vmatprep.subr.mxu0 %v41
  %434 = vmatpush1.msra.mxu0 %v40
  %435 = vmatprep.subr.mxu0 %v44
  %436 = vmatpush1.msra.mxu0 %v43
  %437 = vmatprep.subr.mxu0 %v47
  %438 = vmatpush1.msra.mxu0 %v46
  %439 = vmatprep.subr.mxu0 %v50
  %440 = vmatpush1.msra.mxu0 %v49
  %441 = vmatprep.subr.mxu0 %v53
  %442 = vmatpush1.msra.mxu0 %v52
  %443 = vmatprep.subr.mxu0 %v56
  %444 = vmatpush1.msra.mxu0 %v55
  %445 = vmatprep.subr.mxu0 %v59
  %446 = vmatpush1.msra.mxu0 %v58
  %447 = vmatprep.subr.mxu0 %v62
  %448 = vmatpush1.msra.mxu0 %v61
  %449 = vmatprep.subr.mxu0 %v65
  %450 = vmatpush1.msra.mxu0 %v64
  %451 = vmatprep.subr.mxu0 %v68
  %452 = vmatpush1.msra.mxu0 %v67
  %453 = vmatprep.subr.mxu0 %v71
  %454 = vmatpush1.msra.mxu0 %v70
  %455 = vmatprep.subr.mxu0 %v74
  %456 = vmatpush1.msra.mxu0 %v73
  %457 = vmatprep.subr.mxu0 %v77
  %458 = vmatpush1.msra.mxu0 %v76
  %459 = vmatprep.subr.mxu0 0.0
  %460 = vmatpush1.msra.mxu0 0.0
  %461 = vmatprep.subr.mxu0 0.0
  %462 = vmatpush1.msra.mxu0 0.0
  %463 = vmatprep.subr.mxu0 0.0
  %464 = vmatpush1.msra.mxu0 0.0
  %465 = vmatprep.subr.mxu0 0.0
  %466 = vmatpush1.msra.mxu0 0.0
  %467 = vmatprep.subr.mxu0 0.0
  %468 = vmatpush1.msra.mxu0 0.0
  %469 = vmatprep.subr.mxu0 0.0
  %470 = vmatpush1.msra.mxu0 0.0
  %471 = vmatprep.subr.mxu0 0.0
  %472 = vmatpush1.msra.mxu0 0.0
  %473 = vmatprep.subr.mxu0 0.0
  %474 = vmatpush1.msra.mxu0 0.0
  %475 = vmatprep.subr.mxu0 0.0
  %476 = vmatpush1.msra.mxu0 0.0
  %477 = vmatprep.subr.mxu0 0.0
  %478 = vmatpush1.msra.mxu0 0.0
  %479 = vmatprep.subr.mxu0 0.0
  %480 = vmatpush1.msra.mxu0 0.0
  %481 = vmatprep.subr.mxu0 0.0
  %482 = vmatpush1.msra.mxu0 0.0
  %483 = vmatprep.subr.mxu0 0.0
  %484 = vmatpush1.msra.mxu0 0.0
  %485 = vmatprep.subr.mxu0 0.0
  %486 = vmatpush1.msra.mxu0 0.0
  %487 = vmatprep.subr.mxu0 0.0
  %488 = vmatpush1.msra.mxu0 0.0
  %489 = vmatprep.subr.mxu0 0.0
  %490 = vmatpush1.msra.mxu0 0.0
  %491 = vmatprep.mubr.f32.mxu0 0.0
  %492 = vmatmul.mubr.f32.gmra.mrb[0].mxu0 %v420
  %v493 = vpop.f32.mrb[0].mxu0
  %v494 = vadd.f32 0.0, %v493
  %v495 = vpop.f32.mrb[0].mxu0
  %v496 = vadd.f32 0.0, %v495
  %497 = vdwg.mxu0
  %498 = vmatprep.subr.mxu0 0.0
  %499 = vmatpush1.msra.mxu0 %v33
  %500 = vmatprep.subr.mxu0 0.0
  %501 = vmatpush1.msra.mxu0 %v36
  %502 = vmatprep.subr.mxu0 0.0
  %503 = vmatpush1.msra.mxu0 %v39
  %504 = vmatprep.subr.mxu0 0.0
  %505 = vmatpush1.msra.mxu0 %v42
  %506 = vmatprep.subr.mxu0 0.0
  %507 = vmatpush1.msra.mxu0 %v45
  %508 = vmatprep.subr.mxu0 0.0
  %509 = vmatpush1.msra.mxu0 %v48
  %510 = vmatprep.subr.mxu0 0.0
  %511 = vmatpush1.msra.mxu0 %v51
  %512 = vmatprep.subr.mxu0 0.0
  %513 = vmatpush1.msra.mxu0 %v54
  %514 = vmatprep.subr.mxu0 0.0
  %515 = vmatpush1.msra.mxu0 %v57
  %516 = vmatprep.subr.mxu0 0.0
  %517 = vmatpush1.msra.mxu0 %v60
  %518 = vmatprep.subr.mxu0 0.0
  %519 = vmatpush1.msra.mxu0 %v63
  %520 = vmatprep.subr.mxu0 0.0
  %521 = vmatpush1.msra.mxu0 %v66
  %522 = vmatprep.subr.mxu0 0.0
  %523 = vmatpush1.msra.mxu0 %v69
  %524 = vmatprep.subr.mxu0 0.0
  %525 = vmatpush1.msra.mxu0 %v72
  %526 = vmatprep.subr.mxu0 0.0
  %527 = vmatpush1.msra.mxu0 %v75
  %528 = vmatprep.subr.mxu0 0.0
  %529 = vmatpush1.msra.mxu0 %v78
  %530 = vmatprep.subr.mxu0 0.0
  %531 = vmatpush1.msra.mxu0 0.0
  %532 = vmatprep.subr.mxu0 0.0
  %533 = vmatpush1.msra.mxu0 0.0
  %534 = vmatprep.subr.mxu0 0.0
  %535 = vmatpush1.msra.mxu0 0.0
  %536 = vmatprep.subr.mxu0 0.0
  %537 = vmatpush1.msra.mxu0 0.0
  %538 = vmatprep.subr.mxu0 0.0
  %539 = vmatpush1.msra.mxu0 0.0
  %540 = vmatprep.subr.mxu0 0.0
  %541 = vmatpush1.msra.mxu0 0.0
  %542 = vmatprep.subr.mxu0 0.0
  %543 = vmatpush1.msra.mxu0 0.0
  %544 = vmatprep.subr.mxu0 0.0
  %545 = vmatpush1.msra.mxu0 0.0
  %546 = vmatprep.subr.mxu0 0.0
  %547 = vmatpush1.msra.mxu0 0.0
  %548 = vmatprep.subr.mxu0 0.0
  %549 = vmatpush1.msra.mxu0 0.0
  %550 = vmatprep.subr.mxu0 0.0
  %551 = vmatpush1.msra.mxu0 0.0
  %552 = vmatprep.subr.mxu0 0.0
  %553 = vmatpush1.msra.mxu0 0.0
  %554 = vmatprep.subr.mxu0 0.0
  %555 = vmatpush1.msra.mxu0 0.0
  %556 = vmatprep.subr.mxu0 0.0
  %557 = vmatpush1.msra.mxu0 0.0
  %558 = vmatprep.subr.mxu0 0.0
  %559 = vmatpush1.msra.mxu0 0.0
  %560 = vmatprep.subr.mxu0 0.0
  %561 = vmatpush1.msra.mxu0 0.0
  %562 = vmatprep.mubr.f32.mxu0 0.0
  %563 = vmatmul.mubr.f32.gmra.mrb[0].mxu0 %v420
  %v564 = vpop.f32.mrb[0].mxu0
  %v565 = vadd.f32 0.0, %v564
  %v566 = vpop.f32.mrb[0].mxu0
  %567 = vdwg.mxu0
  %v568 = vadd.f32 %v424, %v494
  %v569 = vxor.u32 %v568, 2147483648
  %v570 = vmul.f32 %v569, 1.442695
  %v571 = vpow.pop %v570
  %v572 = vadd.f32 %v571, 1.0
  %v573 = vrcp.pop %v572
  %v574 = vmul.f32 1.0, %v573
  %v575 = vadd.f32 %v425, %v496
  %v576 = vxor.u32 %v575, 2147483648
  %v577 = vmul.f32 %v576, 1.442695
  %v578 = vpow.pop %v577
  %v579 = vadd.f32 %v578, 1.0
  %v580 = vrcp.pop %v579
  %v581 = vmul.f32 1.0, %v580
  %v582 = vadd.f32 %v565, %v84
  %v583 = vmul.f32 %v574, %v582
  %v584 = vadd.f32 %v426, %v583
  %v585 = vtanh.pop %v584
  %v586 = vsub.f32 1.0, %v581
  %v587 = vmul.f32 %v586, %v585
  %v588 = vmul.f32 %v581, %v420
  %v589 = vadd.f32 %v587, %v588
  %s590 = scalar_lea.vmem [#allocation3], 16
  %591 = vst [vmem:[%s590] sm:$0xff] %v589
  %s592 = scalar_lea.vmem %s1, 72
  %v593 = vld [vmem:[%s592] sm:$0xff]
  %v594 = vld [vmem:[%s592 + $0x8] sm:$0xff]
  %v595 = vld [vmem:[%s592 + $0x10] sm:$0xff]
  %596 = vmatprep.subr.mxu0 %v32
  %597 = vmatpush1.msra.mxu0 %v31
  %598 = vmatprep.subr.mxu0 %v35
  %599 = vmatpush1.msra.mxu0 %v34
  %600 = vmatprep.subr.mxu0 %v38
  %601 = vmatpush1.msra.mxu0 %v37
  %602 = vmatprep.subr.mxu0 %v41
  %603 = vmatpush1.msra.mxu0 %v40
  %604 = vmatprep.subr.mxu0 %v44
  %605 = vmatpush1.msra.mxu0 %v43
  %606 = vmatprep.subr.mxu0 %v47
  %607 = vmatpush1.msra.mxu0 %v46
  %608 = vmatprep.subr.mxu0 %v50
  %609 = vmatpush1.msra.mxu0 %v49
  %610 = vmatprep.subr.mxu0 %v53
  %611 = vmatpush1.msra.mxu0 %v52
  %612 = vmatprep.subr.mxu0 %v56
  %613 = vmatpush1.msra.mxu0 %v55
  %614 = vmatprep.subr.mxu0 %v59
  %615 = vmatpush1.msra.mxu0 %v58
  %616 = vmatprep.subr.mxu0 %v62
  %617 = vmatpush1.msra.mxu0 %v61
  %618 = vmatprep.subr.mxu0 %v65
  %619 = vmatpush1.msra.mxu0 %v64
  %620 = vmatprep.subr.mxu0 %v68
  %621 = vmatpush1.msra.mxu0 %v67
  %622 = vmatprep.subr.mxu0 %v71
  %623 = vmatpush1.msra.mxu0 %v70
  %624 = vmatprep.subr.mxu0 %v74
  %625 = vmatpush1.msra.mxu0 %v73
  %626 = vmatprep.subr.mxu0 %v77
  %627 = vmatpush1.msra.mxu0 %v76
  %628 = vmatprep.subr.mxu0 0.0
  %629 = vmatpush1.msra.mxu0 0.0
  %630 = vmatprep.subr.mxu0 0.0
  %631 = vmatpush1.msra.mxu0 0.0
  %632 = vmatprep.subr.mxu0 0.0
  %633 = vmatpush1.msra.mxu0 0.0
  %634 = vmatprep.subr.mxu0 0.0
  %635 = vmatpush1.msra.mxu0 0.0
  %636 = vmatprep.subr.mxu0 0.0
  %637 = vmatpush1.msra.mxu0 0.0
  %638 = vmatprep.subr.mxu0 0.0
  %639 = vmatpush1.msra.mxu0 0.0
  %640 = vmatprep.subr.mxu0 0.0
  %641 = vmatpush1.msra.mxu0 0.0
  %642 = vmatprep.subr.mxu0 0.0
  %643 = vmatpush1.msra.mxu0 0.0
  %644 = vmatprep.subr.mxu0 0.0
  %645 = vmatpush1.msra.mxu0 0.0
  %646 = vmatprep.subr.mxu0 0.0
  %647 = vmatpush1.msra.mxu0 0.0
  %648 = vmatprep.subr.mxu0 0.0
  %649 = vmatpush1.msra.mxu0 0.0
  %650 = vmatprep.subr.mxu0 0.0
  %651 = vmatpush1.msra.mxu0 0.0
  %652 = vmatprep.subr.mxu0 0.0
  %653 = vmatpush1.msra.mxu0 0.0
  %654 = vmatprep.subr.mxu0 0.0
  %655 = vmatpush1.msra.mxu0 0.0
  %656 = vmatprep.subr.mxu0 0.0
  %657 = vmatpush1.msra.mxu0 0.0
  %658 = vmatprep.subr.mxu0 0.0
  %659 = vmatpush1.msra.mxu0 0.0
  %660 = vmatprep.mubr.f32.mxu0 0.0
  %661 = vmatmul.mubr.f32.gmra.mrb[0].mxu0 %v589
  %v662 = vpop.f32.mrb[0].mxu0
  %v663 = vadd.f32 0.0, %v662
  %v664 = vpop.f32.mrb[0].mxu0
  %v665 = vadd.f32 0.0, %v664
  %666 = vdwg.mxu0
  %667 = vmatprep.subr.mxu0 0.0
  %668 = vmatpush1.msra.mxu0 %v33
  %669 = vmatprep.subr.mxu0 0.0
  %670 = vmatpush1.msra.mxu0 %v36
  %671 = vmatprep.subr.mxu0 0.0
  %672 = vmatpush1.msra.mxu0 %v39
  %673 = vmatprep.subr.mxu0 0.0
  %674 = vmatpush1.msra.mxu0 %v42
  %675 = vmatprep.subr.mxu0 0.0
  %676 = vmatpush1.msra.mxu0 %v45
  %677 = vmatprep.subr.mxu0 0.0
  %678 = vmatpush1.msra.mxu0 %v48
  %679 = vmatprep.subr.mxu0 0.0
  %680 = vmatpush1.msra.mxu0 %v51
  %681 = vmatprep.subr.mxu0 0.0
  %682 = vmatpush1.msra.mxu0 %v54
  %683 = vmatprep.subr.mxu0 0.0
  %684 = vmatpush1.msra.mxu0 %v57
  %685 = vmatprep.subr.mxu0 0.0
  %686 = vmatpush1.msra.mxu0 %v60
  %687 = vmatprep.subr.mxu0 0.0
  %688 = vmatpush1.msra.mxu0 %v63
  %689 = vmatprep.subr.mxu0 0.0
  %690 = vmatpush1.msra.mxu0 %v66
  %691 = vmatprep.subr.mxu0 0.0
  %692 = vmatpush1.msra.mxu0 %v69
  %693 = vmatprep.subr.mxu0 0.0
  %694 = vmatpush1.msra.mxu0 %v72
  %695 = vmatprep.subr.mxu0 0.0
  %696 = vmatpush1.msra.mxu0 %v75
  %697 = vmatprep.subr.mxu0 0.0
  %698 = vmatpush1.msra.mxu0 %v78
  %699 = vmatprep.subr.mxu0 0.0
  %700 = vmatpush1.msra.mxu0 0.0
  %701 = vmatprep.subr.mxu0 0.0
  %702 = vmatpush1.msra.mxu0 0.0
  %703 = vmatprep.subr.mxu0 0.0
  %704 = vmatpush1.msra.mxu0 0.0
  %705 = vmatprep.subr.mxu0 0.0
  %706 = vmatpush1.msra.mxu0 0.0
  %707 = vmatprep.subr.mxu0 0.0
  %708 = vmatpush1.msra.mxu0 0.0
  %709 = vmatprep.subr.mxu0 0.0
  %710 = vmatpush1.msra.mxu0 0.0
  %711 = vmatprep.subr.mxu0 0.0
  %712 = vmatpush1.msra.mxu0 0.0
  %713 = vmatprep.subr.mxu0 0.0
  %714 = vmatpush1.msra.mxu0 0.0
  %715 = vmatprep.subr.mxu0 0.0
  %716 = vmatpush1.msra.mxu0 0.0
  %717 = vmatprep.subr.mxu0 0.0
  %718 = vmatpush1.msra.mxu0 0.0
  %719 = vmatprep.subr.mxu0 0.0
  %720 = vmatpush1.msra.mxu0 0.0
  %721 = vmatprep.subr.mxu0 0.0
  %722 = vmatpush1.msra.mxu0 0.0
  %723 = vmatprep.subr.mxu0 0.0
  %724 = vmatpush1.msra.mxu0 0.0
  %725 = vmatprep.subr.mxu0 0.0
  %726 = vmatpush1.msra.mxu0 0.0
  %727 = vmatprep.subr.mxu0 0.0
  %728 = vmatpush1.msra.mxu0 0.0
  %729 = vmatprep.subr.mxu0 0.0
  %730 = vmatpush1.msra.mxu0 0.0
  %731 = vmatprep.mubr.f32.mxu0 0.0
  %732 = vmatmul.mubr.f32.gmra.mrb[0].mxu0 %v589
  %v733 = vpop.f32.mrb[0].mxu0
  %v734 = vadd.f32 0.0, %v733
  %v735 = vpop.f32.mrb[0].mxu0
  %736 = vdwg.mxu0
  %v737 = vadd.f32 %v593, %v663
  %v738 = vxor.u32 %v737, 2147483648
  %v739 = vmul.f32 %v738, 1.442695
  %v740 = vpow.pop %v739
  %v741 = vadd.f32 %v740, 1.0
  %v742 = vrcp.pop %v741
  %v743 = vmul.f32 1.0, %v742
  %v744 = vadd.f32 %v594, %v665
  %v745 = vxor.u32 %v744, 2147483648
  %v746 = vmul.f32 %v745, 1.442695
  %v747 = vpow.pop %v746
  %v748 = vadd.f32 %v747, 1.0
  %v749 = vrcp.pop %v748
  %v750 = vmul.f32 1.0, %v749
  %v751 = vadd.f32 %v734, %v84
  %v752 = vmul.f32 %v743, %v751
  %v753 = vadd.f32 %v595, %v752
  %v754 = vtanh.pop %v753
  %v755 = vsub.f32 1.0, %v750
  %v756 = vmul.f32 %v755, %v754
  %v757 = vmul.f32 %v750, %v589
  %v758 = vadd.f32 %v756, %v757
  %s759 = scalar_lea.vmem [#allocation3], 24
  %760 = vst [vmem:[%s759] sm:$0xff] %v758
  %s761 = scalar_lea.vmem %s1, 96
  %v762 = vld [vmem:[%s761] sm:$0xff]
  %v763 = vld [vmem:[%s761 + $0x8] sm:$0xff]
  %v764 = vld [vmem:[%s761 + $0x10] sm:$0xff]
  %765 = vmatprep.subr.mxu0 %v32
  %766 = vmatpush1.msra.mxu0 %v31
  %767 = vmatprep.subr.mxu0 %v35
  %768 = vmatpush1.msra.mxu0 %v34
  %769 = vmatprep.subr.mxu0 %v38
  %770 = vmatpush1.msra.mxu0 %v37
  %771 = vmatprep.subr.mxu0 %v41
  %772 = vmatpush1.msra.mxu0 %v40
  %773 = vmatprep.subr.mxu0 %v44
  %774 = vmatpush1.msra.mxu0 %v43
  %775 = vmatprep.subr.mxu0 %v47
  %776 = vmatpush1.msra.mxu0 %v46
  %777 = vmatprep.subr.mxu0 %v50
  %778 = vmatpush1.msra.mxu0 %v49
  %779 = vmatprep.subr.mxu0 %v53
  %780 = vmatpush1.msra.mxu0 %v52
  %781 = vmatprep.subr.mxu0 %v56
  %782 = vmatpush1.msra.mxu0 %v55
  %783 = vmatprep.subr.mxu0 %v59
  %784 = vmatpush1.msra.mxu0 %v58
  %785 = vmatprep.subr.mxu0 %v62
  %786 = vmatpush1.msra.mxu0 %v61
  %787 = vmatprep.subr.mxu0 %v65
  %788 = vmatpush1.msra.mxu0 %v64
  %789 = vmatprep.subr.mxu0 %v68
  %790 = vmatpush1.msra.mxu0 %v67
  %791 = vmatprep.subr.mxu0 %v71
  %792 = vmatpush1.msra.mxu0 %v70
  %793 = vmatprep.subr.mxu0 %v74
  %794 = vmatpush1.msra.mxu0 %v73
  %795 = vmatprep.subr.mxu0 %v77
  %796 = vmatpush1.msra.mxu0 %v76
  %797 = vmatprep.subr.mxu0 0.0
  %798 = vmatpush1.msra.mxu0 0.0
  %799 = vmatprep.subr.mxu0 0.0
  %800 = vmatpush1.msra.mxu0 0.0
  %801 = vmatprep.subr.mxu0 0.0
  %802 = vmatpush1.msra.mxu0 0.0
  %803 = vmatprep.subr.mxu0 0.0
  %804 = vmatpush1.msra.mxu0 0.0
  %805 = vmatprep.subr.mxu0 0.0
  %806 = vmatpush1.msra.mxu0 0.0
  %807 = vmatprep.subr.mxu0 0.0
  %808 = vmatpush1.msra.mxu0 0.0
  %809 = vmatprep.subr.mxu0 0.0
  %810 = vmatpush1.msra.mxu0 0.0
  %811 = vmatprep.subr.mxu0 0.0
  %812 = vmatpush1.msra.mxu0 0.0
  %813 = vmatprep.subr.mxu0 0.0
  %814 = vmatpush1.msra.mxu0 0.0
  %815 = vmatprep.subr.mxu0 0.0
  %816 = vmatpush1.msra.mxu0 0.0
  %817 = vmatprep.subr.mxu0 0.0
  %818 = vmatpush1.msra.mxu0 0.0
  %819 = vmatprep.subr.mxu0 0.0
  %820 = vmatpush1.msra.mxu0 0.0
  %821 = vmatprep.subr.mxu0 0.0
  %822 = vmatpush1.msra.mxu0 0.0
  %823 = vmatprep.subr.mxu0 0.0
  %824 = vmatpush1.msra.mxu0 0.0
  %825 = vmatprep.subr.mxu0 0.0
  %826 = vmatpush1.msra.mxu0 0.0
  %827 = vmatprep.subr.mxu0 0.0
  %828 = vmatpush1.msra.mxu0 0.0
  %829 = vmatprep.mubr.f32.mxu0 0.0
  %830 = vmatmul.mubr.f32.gmra.mrb[0].mxu0 %v758
  %v831 = vpop.f32.mrb[0].mxu0
  %v832 = vadd.f32 0.0, %v831
  %v833 = vpop.f32.mrb[0].mxu0
  %v834 = vadd.f32 0.0, %v833
  %835 = vdwg.mxu0
  %836 = vmatprep.subr.mxu0 0.0
  %837 = vmatpush1.msra.mxu0 %v33
  %838 = vmatprep.subr.mxu0 0.0
  %839 = vmatpush1.msra.mxu0 %v36
  %840 = vmatprep.subr.mxu0 0.0
  %841 = vmatpush1.msra.mxu0 %v39
  %842 = vmatprep.subr.mxu0 0.0
  %843 = vmatpush1.msra.mxu0 %v42
  %844 = vmatprep.subr.mxu0 0.0
  %845 = vmatpush1.msra.mxu0 %v45
  %846 = vmatprep.subr.mxu0 0.0
  %847 = vmatpush1.msra.mxu0 %v48
  %848 = vmatprep.subr.mxu0 0.0
  %849 = vmatpush1.msra.mxu0 %v51
  %850 = vmatprep.subr.mxu0 0.0
  %851 = vmatpush1.msra.mxu0 %v54
  %852 = vmatprep.subr.mxu0 0.0
  %853 = vmatpush1.msra.mxu0 %v57
  %854 = vmatprep.subr.mxu0 0.0
  %855 = vmatpush1.msra.mxu0 %v60
  %856 = vmatprep.subr.mxu0 0.0
  %857 = vmatpush1.msra.mxu0 %v63
  %858 = vmatprep.subr.mxu0 0.0
  %859 = vmatpush1.msra.mxu0 %v66
  %860 = vmatprep.subr.mxu0 0.0
  %861 = vmatpush1.msra.mxu0 %v69
  %862 = vmatprep.subr.mxu0 0.0
  %863 = vmatpush1.msra.mxu0 %v72
  %864 = vmatprep.subr.mxu0 0.0
  %865 = vmatpush1.msra.mxu0 %v75
  %866 = vmatprep.subr.mxu0 0.0
  %867 = vmatpush1.msra.mxu0 %v78
  %868 = vmatprep.subr.mxu0 0.0
  %869 = vmatpush1.msra.mxu0 0.0
  %870 = vmatprep.subr.mxu0 0.0
  %871 = vmatpush1.msra.mxu0 0.0
  %872 = vmatprep.subr.mxu0 0.0
  %873 = vmatpush1.msra.mxu0 0.0
  %874 = vmatprep.subr.mxu0 0.0
  %875 = vmatpush1.msra.mxu0 0.0
  %876 = vmatprep.subr.mxu0 0.0
  %877 = vmatpush1.msra.mxu0 0.0
  %878 = vmatprep.subr.mxu0 0.0
  %879 = vmatpush1.msra.mxu0 0.0
  %880 = vmatprep.subr.mxu0 0.0
  %881 = vmatpush1.msra.mxu0 0.0
  %882 = vmatprep.subr.mxu0 0.0
  %883 = vmatpush1.msra.mxu0 0.0
  %884 = vmatprep.subr.mxu0 0.0
  %885 = vmatpush1.msra.mxu0 0.0
  %886 = vmatprep.subr.mxu0 0.0
  %887 = vmatpush1.msra.mxu0 0.0
  %888 = vmatprep.subr.mxu0 0.0
  %889 = vmatpush1.msra.mxu0 0.0
  %890 = vmatprep.subr.mxu0 0.0
  %891 = vmatpush1.msra.mxu0 0.0
  %892 = vmatprep.subr.mxu0 0.0
  %893 = vmatpush1.msra.mxu0 0.0
  %894 = vmatprep.subr.mxu0 0.0
  %895 = vmatpush1.msra.mxu0 0.0
  %896 = vmatprep.subr.mxu0 0.0
  %897 = vmatpush1.msra.mxu0 0.0
  %898 = vmatprep.subr.mxu0 0.0
  %899 = vmatpush1.msra.mxu0 0.0
  %900 = vmatprep.mubr.f32.mxu0 0.0
  %901 = vmatmul.mubr.f32.gmra.mrb[0].mxu0 %v758
  %v902 = vpop.f32.mrb[0].mxu0
  %v903 = vadd.f32 0.0, %v902
  %v904 = vpop.f32.mrb[0].mxu0
  %905 = vdwg.mxu0
  %v906 = vadd.f32 %v762, %v832
  %v907 = vxor.u32 %v906, 2147483648
  %v908 = vmul.f32 %v907, 1.442695
  %v909 = vpow.pop %v908
  %v910 = vadd.f32 %v909, 1.0
  %v911 = vrcp.pop %v910
  %v912 = vmul.f32 1.0, %v911
  %v913 = vadd.f32 %v763, %v834
  %v914 = vxor.u32 %v913, 2147483648
  %v915 = vmul.f32 %v914, 1.442695
  %v916 = vpow.pop %v915
  %v917 = vadd.f32 %v916, 1.0
  %v918 = vrcp.pop %v917
  %v919 = vmul.f32 1.0, %v918
  %v920 = vadd.f32 %v903, %v84
  %v921 = vmul.f32 %v912, %v920
  %v922 = vadd.f32 %v764, %v921
  %v923 = vtanh.pop %v922
  %v924 = vsub.f32 1.0, %v919
  %v925 = vmul.f32 %v924, %v923
  %v926 = vmul.f32 %v919, %v758
  %v927 = vadd.f32 %v925, %v926
  %s928 = scalar_lea.vmem [#allocation3], 32
  %929 = vst [vmem:[%s928] sm:$0xff] %v927
  %s930 = scalar_lea.vmem %s1, 120
  %v931 = vld [vmem:[%s930] sm:$0xff]
  %v932 = vld [vmem:[%s930 + $0x8] sm:$0xff]
  %v933 = vld [vmem:[%s930 + $0x10] sm:$0xff]
  %934 = vmatprep.subr.mxu0 %v32
  %935 = vmatpush1.msra.mxu0 %v31
  %936 = vmatprep.subr.mxu0 %v35
  %937 = vmatpush1.msra.mxu0 %v34
  %938 = vmatprep.subr.mxu0 %v38
  %939 = vmatpush1.msra.mxu0 %v37
  %940 = vmatprep.subr.mxu0 %v41
  %941 = vmatpush1.msra.mxu0 %v40
  %942 = vmatprep.subr.mxu0 %v44
  %943 = vmatpush1.msra.mxu0 %v43
  %944 = vmatprep.subr.mxu0 %v47
  %945 = vmatpush1.msra.mxu0 %v46
  %946 = vmatprep.subr.mxu0 %v50
  %947 = vmatpush1.msra.mxu0 %v49
  %948 = vmatprep.subr.mxu0 %v53
  %949 = vmatpush1.msra.mxu0 %v52
  %950 = vmatprep.subr.mxu0 %v56
  %951 = vmatpush1.msra.mxu0 %v55
  %952 = vmatprep.subr.mxu0 %v59
  %953 = vmatpush1.msra.mxu0 %v58
  %954 = vmatprep.subr.mxu0 %v62
  %955 = vmatpush1.msra.mxu0 %v61
  %956 = vmatprep.subr.mxu0 %v65
  %957 = vmatpush1.msra.mxu0 %v64
  %958 = vmatprep.subr.mxu0 %v68
  %959 = vmatpush1.msra.mxu0 %v67
  %960 = vmatprep.subr.mxu0 %v71
  %961 = vmatpush1.msra.mxu0 %v70
  %962 = vmatprep.subr.mxu0 %v74
  %963 = vmatpush1.msra.mxu0 %v73
  %964 = vmatprep.subr.mxu0 %v77
  %965 = vmatpush1.msra.mxu0 %v76
  %966 = vmatprep.subr.mxu0 0.0
  %967 = vmatpush1.msra.mxu0 0.0
  %968 = vmatprep.subr.mxu0 0.0
  %969 = vmatpush1.msra.mxu0 0.0
  %970 = vmatprep.subr.mxu0 0.0
  %971 = vmatpush1.msra.mxu0 0.0
  %972 = vmatprep.subr.mxu0 0.0
  %973 = vmatpush1.msra.mxu0 0.0
  %974 = vmatprep.subr.mxu0 0.0
  %975 = vmatpush1.msra.mxu0 0.0
  %976 = vmatprep.subr.mxu0 0.0
  %977 = vmatpush1.msra.mxu0 0.0
  %978 = vmatprep.subr.mxu0 0.0
  %979 = vmatpush1.msra.mxu0 0.0
  %980 = vmatprep.subr.mxu0 0.0
  %981 = vmatpush1.msra.mxu0 0.0
  %982 = vmatprep.subr.mxu0 0.0
  %983 = vmatpush1.msra.mxu0 0.0
  %984 = vmatprep.subr.mxu0 0.0
  %985 = vmatpush1.msra.mxu0 0.0
  %986 = vmatprep.subr.mxu0 0.0
  %987 = vmatpush1.msra.mxu0 0.0
  %988 = vmatprep.subr.mxu0 0.0
  %989 = vmatpush1.msra.mxu0 0.0
  %990 = vmatprep.subr.mxu0 0.0
  %991 = vmatpush1.msra.mxu0 0.0
  %992 = vmatprep.subr.mxu0 0.0
  %993 = vmatpush1.msra.mxu0 0.0
  %994 = vmatprep.subr.mxu0 0.0
  %995 = vmatpush1.msra.mxu0 0.0
  %996 = vmatprep.subr.mxu0 0.0
  %997 = vmatpush1.msra.mxu0 0.0
  %998 = vmatprep.mubr.f32.mxu0 0.0
  %999 = vmatmul.mubr.f32.gmra.mrb[0].mxu0 %v927
  %v1000 = vpop.f32.mrb[0].mxu0
  %v1001 = vadd.f32 0.0, %v1000
  %v1002 = vpop.f32.mrb[0].mxu0
  %v1003 = vadd.f32 0.0, %v1002
  %1004 = vdwg.mxu0
  %1005 = vmatprep.subr.mxu0 0.0
  %1006 = vmatpush1.msra.mxu0 %v33
  %1007 = vmatprep.subr.mxu0 0.0
  %1008 = vmatpush1.msra.mxu0 %v36
  %1009 = vmatprep.subr.mxu0 0.0
  %1010 = vmatpush1.msra.mxu0 %v39
  %1011 = vmatprep.subr.mxu0 0.0
  %1012 = vmatpush1.msra.mxu0 %v42
  %1013 = vmatprep.subr.mxu0 0.0
  %1014 = vmatpush1.msra.mxu0 %v45
  %1015 = vmatprep.subr.mxu0 0.0
  %1016 = vmatpush1.msra.mxu0 %v48
  %1017 = vmatprep.subr.mxu0 0.0
  %1018 = vmatpush1.msra.mxu0 %v51
  %1019 = vmatprep.subr.mxu0 0.0
  %1020 = vmatpush1.msra.mxu0 %v54
  %1021 = vmatprep.subr.mxu0 0.0
  %1022 = vmatpush1.msra.mxu0 %v57
  %1023 = vmatprep.subr.mxu0 0.0
  %1024 = vmatpush1.msra.mxu0 %v60
  %1025 = vmatprep.subr.mxu0 0.0
  %1026 = vmatpush1.msra.mxu0 %v63
  %1027 = vmatprep.subr.mxu0 0.0
  %1028 = vmatpush1.msra.mxu0 %v66
  %1029 = vmatprep.subr.mxu0 0.0
  %1030 = vmatpush1.msra.mxu0 %v69
  %1031 = vmatprep.subr.mxu0 0.0
  %1032 = vmatpush1.msra.mxu0 %v72
  %1033 = vmatprep.subr.mxu0 0.0
  %1034 = vmatpush1.msra.mxu0 %v75
  %1035 = vmatprep.subr.mxu0 0.0
  %1036 = vmatpush1.msra.mxu0 %v78
  %1037 = vmatprep.subr.mxu0 0.0
  %1038 = vmatpush1.msra.mxu0 0.0
  %1039 = vmatprep.subr.mxu0 0.0
  %1040 = vmatpush1.msra.mxu0 0.0
  %1041 = vmatprep.subr.mxu0 0.0
  %1042 = vmatpush1.msra.mxu0 0.0
  %1043 = vmatprep.subr.mxu0 0.0
  %1044 = vmatpush1.msra.mxu0 0.0
  %1045 = vmatprep.subr.mxu0 0.0
  %1046 = vmatpush1.msra.mxu0 0.0
  %1047 = vmatprep.subr.mxu0 0.0
  %1048 = vmatpush1.msra.mxu0 0.0
  %1049 = vmatprep.subr.mxu0 0.0
  %1050 = vmatpush1.msra.mxu0 0.0
  %1051 = vmatprep.subr.mxu0 0.0
  %1052 = vmatpush1.msra.mxu0 0.0
  %1053 = vmatprep.subr.mxu0 0.0
  %1054 = vmatpush1.msra.mxu0 0.0
  %1055 = vmatprep.subr.mxu0 0.0
  %1056 = vmatpush1.msra.mxu0 0.0
  %1057 = vmatprep.subr.mxu0 0.0
  %1058 = vmatpush1.msra.mxu0 0.0
  %1059 = vmatprep.subr.mxu0 0.0
  %1060 = vmatpush1.msra.mxu0 0.0
  %1061 = vmatprep.subr.mxu0 0.0
  %1062 = vmatpush1.msra.mxu0 0.0
  %1063 = vmatprep.subr.mxu0 0.0
  %1064 = vmatpush1.msra.mxu0 0.0
  %1065 = vmatprep.subr.mxu0 0.0
  %1066 = vmatpush1.msra.mxu0 0.0
  %1067 = vmatprep.subr.mxu0 0.0
  %1068 = vmatpush1.msra.mxu0 0.0
  %1069 = vmatprep.mubr.f32.mxu0 0.0
  %1070 = vmatmul.mubr.f32.gmra.mrb[0].mxu0 %v927
  %v1071 = vpop.f32.mrb[0].mxu0
  %v1072 = vadd.f32 0.0, %v1071
  %v1073 = vpop.f32.mrb[0].mxu0
  %1074 = vdwg.mxu0
  %v1075 = vadd.f32 %v931, %v1001
  %v1076 = vxor.u32 %v1075, 2147483648
  %v1077 = vmul.f32 %v1076, 1.442695
  %v1078 = vpow.pop %v1077
  %v1079 = vadd.f32 %v1078, 1.0
  %v1080 = vrcp.pop %v1079
  %v1081 = vmul.f32 1.0, %v1080
  %v1082 = vadd.f32 %v932, %v1003
  %v1083 = vxor.u32 %v1082, 2147483648
  %v1084 = vmul.f32 %v1083, 1.442695
  %v1085 = vpow.pop %v1084
  %v1086 = vadd.f32 %v1085, 1.0
  %v1087 = vrcp.pop %v1086
  %v1088 = vmul.f32 1.0, %v1087
  %v1089 = vadd.f32 %v1072, %v84
  %v1090 = vmul.f32 %v1081, %v1089
  %v1091 = vadd.f32 %v933, %v1090
  %v1092 = vtanh.pop %v1091
  %v1093 = vsub.f32 1.0, %v1088
  %v1094 = vmul.f32 %v1093, %v1092
  %v1095 = vmul.f32 %v1088, %v927
  %v1096 = vadd.f32 %v1094, %v1095
  %s1097 = scalar_lea.vmem [#allocation3], 40
  %1098 = vst [vmem:[%s1097] sm:$0xff] %v1096
  %s1099 = scalar_lea.vmem %s1, 144
  %v1100 = vld [vmem:[%s1099] sm:$0xff]
  %v1101 = vld [vmem:[%s1099 + $0x8] sm:$0xff]
  %v1102 = vld [vmem:[%s1099 + $0x10] sm:$0xff]
  %1103 = vmatprep.subr.mxu0 %v32
  %1104 = vmatpush1.msra.mxu0 %v31
  %1105 = vmatprep.subr.mxu0 %v35
  %1106 = vmatpush1.msra.mxu0 %v34
  %1107 = vmatprep.subr.mxu0 %v38
  %1108 = vmatpush1.msra.mxu0 %v37
  %1109 = vmatprep.subr.mxu0 %v41
  %1110 = vmatpush1.msra.mxu0 %v40
  %1111 = vmatprep.subr.mxu0 %v44
  %1112 = vmatpush1.msra.mxu0 %v43
  %1113 = vmatprep.subr.mxu0 %v47
  %1114 = vmatpush1.msra.mxu0 %v46
  %1115 = vmatprep.subr.mxu0 %v50
  %1116 = vmatpush1.msra.mxu0 %v49
  %1117 = vmatprep.subr.mxu0 %v53
  %1118 = vmatpush1.msra.mxu0 %v52
  %1119 = vmatprep.subr.mxu0 %v56
  %1120 = vmatpush1.msra.mxu0 %v55
  %1121 = vmatprep.subr.mxu0 %v59
  %1122 = vmatpush1.msra.mxu0 %v58
  %1123 = vmatprep.subr.mxu0 %v62
  %1124 = vmatpush1.msra.mxu0 %v61
  %1125 = vmatprep.subr.mxu0 %v65
  %1126 = vmatpush1.msra.mxu0 %v64
  %1127 = vmatprep.subr.mxu0 %v68
  %1128 = vmatpush1.msra.mxu0 %v67
  %1129 = vmatprep.subr.mxu0 %v71
  %1130 = vmatpush1.msra.mxu0 %v70
  %1131 = vmatprep.subr.mxu0 %v74
  %1132 = vmatpush1.msra.mxu0 %v73
  %1133 = vmatprep.subr.mxu0 %v77
  %1134 = vmatpush1.msra.mxu0 %v76
  %1135 = vmatprep.subr.mxu0 0.0
  %1136 = vmatpush1.msra.mxu0 0.0
  %1137 = vmatprep.subr.mxu0 0.0
  %1138 = vmatpush1.msra.mxu0 0.0
  %1139 = vmatprep.subr.mxu0 0.0
  %1140 = vmatpush1.msra.mxu0 0.0
  %1141 = vmatprep.subr.mxu0 0.0
  %1142 = vmatpush1.msra.mxu0 0.0
  %1143 = vmatprep.subr.mxu0 0.0
  %1144 = vmatpush1.msra.mxu0 0.0
  %1145 = vmatprep.subr.mxu0 0.0
  %1146 = vmatpush1.msra.mxu0 0.0
  %1147 = vmatprep.subr.mxu0 0.0
  %1148 = vmatpush1.msra.mxu0 0.0
  %1149 = vmatprep.subr.mxu0 0.0
  %1150 = vmatpush1.msra.mxu0 0.0
  %1151 = vmatprep.subr.mxu0 0.0
  %1152 = vmatpush1.msra.mxu0 0.0
  %1153 = vmatprep.subr.mxu0 0.0
  %1154 = vmatpush1.msra.mxu0 0.0
  %1155 = vmatprep.subr.mxu0 0.0
  %1156 = vmatpush1.msra.mxu0 0.0
  %1157 = vmatprep.subr.mxu0 0.0
  %1158 = vmatpush1.msra.mxu0 0.0
  %1159 = vmatprep.subr.mxu0 0.0
  %1160 = vmatpush1.msra.mxu0 0.0
  %1161 = vmatprep.subr.mxu0 0.0
  %1162 = vmatpush1.msra.mxu0 0.0
  %1163 = vmatprep.subr.mxu0 0.0
  %1164 = vmatpush1.msra.mxu0 0.0
  %1165 = vmatprep.subr.mxu0 0.0
  %1166 = vmatpush1.msra.mxu0 0.0
  %1167 = vmatprep.mubr.f32.mxu0 0.0
  %1168 = vmatmul.mubr.f32.gmra.mrb[0].mxu0 %v1096
  %v1169 = vpop.f32.mrb[0].mxu0
  %v1170 = vadd.f32 0.0, %v1169
  %v1171 = vpop.f32.mrb[0].mxu0
  %v1172 = vadd.f32 0.0, %v1171
  %1173 = vdwg.mxu0
  %1174 = vmatprep.subr.mxu0 0.0
  %1175 = vmatpush1.msra.mxu0 %v33
  %1176 = vmatprep.subr.mxu0 0.0
  %1177 = vmatpush1.msra.mxu0 %v36
  %1178 = vmatprep.subr.mxu0 0.0
  %1179 = vmatpush1.msra.mxu0 %v39
  %1180 = vmatprep.subr.mxu0 0.0
  %1181 = vmatpush1.msra.mxu0 %v42
  %1182 = vmatprep.subr.mxu0 0.0
  %1183 = vmatpush1.msra.mxu0 %v45
  %1184 = vmatprep.subr.mxu0 0.0
  %1185 = vmatpush1.msra.mxu0 %v48
  %1186 = vmatprep.subr.mxu0 0.0
  %1187 = vmatpush1.msra.mxu0 %v51
  %1188 = vmatprep.subr.mxu0 0.0
  %1189 = vmatpush1.msra.mxu0 %v54
  %1190 = vmatprep.subr.mxu0 0.0
  %1191 = vmatpush1.msra.mxu0 %v57
  %1192 = vmatprep.subr.mxu0 0.0
  %1193 = vmatpush1.msra.mxu0 %v60
  %1194 = vmatprep.subr.mxu0 0.0
  %1195 = vmatpush1.msra.mxu0 %v63
  %1196 = vmatprep.subr.mxu0 0.0
  %1197 = vmatpush1.msra.mxu0 %v66
  %1198 = vmatprep.subr.mxu0 0.0
  %1199 = vmatpush1.msra.mxu0 %v69
  %1200 = vmatprep.subr.mxu0 0.0
  %1201 = vmatpush1.msra.mxu0 %v72
  %1202 = vmatprep.subr.mxu0 0.0
  %1203 = vmatpush1.msra.mxu0 %v75
  %1204 = vmatprep.subr.mxu0 0.0
  %1205 = vmatpush1.msra.mxu0 %v78
  %1206 = vmatprep.subr.mxu0 0.0
  %1207 = vmatpush1.msra.mxu0 0.0
  %1208 = vmatprep.subr.mxu0 0.0
  %1209 = vmatpush1.msra.mxu0 0.0
  %1210 = vmatprep.subr.mxu0 0.0
  %1211 = vmatpush1.msra.mxu0 0.0
  %1212 = vmatprep.subr.mxu0 0.0
  %1213 = vmatpush1.msra.mxu0 0.0
  %1214 = vmatprep.subr.mxu0 0.0
  %1215 = vmatpush1.msra.mxu0 0.0
  %1216 = vmatprep.subr.mxu0 0.0
  %1217 = vmatpush1.msra.mxu0 0.0
  %1218 = vmatprep.subr.mxu0 0.0
  %1219 = vmatpush1.msra.mxu0 0.0
  %1220 = vmatprep.subr.mxu0 0.0
  %1221 = vmatpush1.msra.mxu0 0.0
  %1222 = vmatprep.subr.mxu0 0.0
  %1223 = vmatpush1.msra.mxu0 0.0
  %1224 = vmatprep.subr.mxu0 0.0
  %1225 = vmatpush1.msra.mxu0 0.0
  %1226 = vmatprep.subr.mxu0 0.0
  %1227 = vmatpush1.msra.mxu0 0.0
  %1228 = vmatprep.subr.mxu0 0.0
  %1229 = vmatpush1.msra.mxu0 0.0
  %1230 = vmatprep.subr.mxu0 0.0
  %1231 = vmatpush1.msra.mxu0 0.0
  %1232 = vmatprep.subr.mxu0 0.0
  %1233 = vmatpush1.msra.mxu0 0.0
  %1234 = vmatprep.subr.mxu0 0.0
  %1235 = vmatpush1.msra.mxu0 0.0
  %1236 = vmatprep.subr.mxu0 0.0
  %1237 = vmatpush1.msra.mxu0 0.0
  %1238 = vmatprep.mubr.f32.mxu0 0.0
  %1239 = vmatmul.mubr.f32.gmra.mrb[0].mxu0 %v1096
  %v1240 = vpop.f32.mrb[0].mxu0
  %v1241 = vadd.f32 0.0, %v1240
  %v1242 = vpop.f32.mrb[0].mxu0
  %1243 = vdwg.mxu0
  %v1244 = vadd.f32 %v1100, %v1170
  %v1245 = vxor.u32 %v1244, 2147483648
  %v1246 = vmul.f32 %v1245, 1.442695
  %v1247 = vpow.pop %v1246
  %v1248 = vadd.f32 %v1247, 1.0
  %v1249 = vrcp.pop %v1248
  %v1250 = vmul.f32 1.0, %v1249
  %v1251 = vadd.f32 %v1101, %v1172
  %v1252 = vxor.u32 %v1251, 2147483648
  %v1253 = vmul.f32 %v1252, 1.442695
  %v1254 = vpow.pop %v1253
  %v1255 = vadd.f32 %v1254, 1.0
  %v1256 = vrcp.pop %v1255
  %v1257 = vmul.f32 1.0, %v1256
  %v1258 = vadd.f32 %v1241, %v84
  %v1259 = vmul.f32 %v1250, %v1258
  %v1260 = vadd.f32 %v1102, %v1259
  %v1261 = vtanh.pop %v1260
  %v1262 = vsub.f32 1.0, %v1257
  %v1263 = vmul.f32 %v1262, %v1261
  %v1264 = vmul.f32 %v1257, %v1096
  %v1265 = vadd.f32 %v1263, %v1264
  %s1266 = scalar_lea.vmem [#allocation3], 48
  %1267 = vst [vmem:[%s1266] sm:$0xff] %v1265
  %s1268 = scalar_lea.vmem %s1, 168
  %v1269 = vld [vmem:[%s1268] sm:$0xff]
  %v1270 = vld [vmem:[%s1268 + $0x8] sm:$0xff]
  %v1271 = vld [vmem:[%s1268 + $0x10] sm:$0xff]
  %1272 = vmatprep.subr.mxu0 %v32
  %1273 = vmatpush1.msra.mxu0 %v31
  %1274 = vmatprep.subr.mxu0 %v35
  %1275 = vmatpush1.msra.mxu0 %v34
  %1276 = vmatprep.subr.mxu0 %v38
  %1277 = vmatpush1.msra.mxu0 %v37
  %1278 = vmatprep.subr.mxu0 %v41
  %1279 = vmatpush1.msra.mxu0 %v40
  %1280 = vmatprep.subr.mxu0 %v44
  %1281 = vmatpush1.msra.mxu0 %v43
  %1282 = vmatprep.subr.mxu0 %v47
  %1283 = vmatpush1.msra.mxu0 %v46
  %1284 = vmatprep.subr.mxu0 %v50
  %1285 = vmatpush1.msra.mxu0 %v49
  %1286 = vmatprep.subr.mxu0 %v53
  %1287 = vmatpush1.msra.mxu0 %v52
  %1288 = vmatprep.subr.mxu0 %v56
  %1289 = vmatpush1.msra.mxu0 %v55
  %1290 = vmatprep.subr.mxu0 %v59
  %1291 = vmatpush1.msra.mxu0 %v58
  %1292 = vmatprep.subr.mxu0 %v62
  %1293 = vmatpush1.msra.mxu0 %v61
  %1294 = vmatprep.subr.mxu0 %v65
  %1295 = vmatpush1.msra.mxu0 %v64
  %1296 = vmatprep.subr.mxu0 %v68
  %1297 = vmatpush1.msra.mxu0 %v67
  %1298 = vmatprep.subr.mxu0 %v71
  %1299 = vmatpush1.msra.mxu0 %v70
  %1300 = vmatprep.subr.mxu0 %v74
  %1301 = vmatpush1.msra.mxu0 %v73
  %1302 = vmatprep.subr.mxu0 %v77
  %1303 = vmatpush1.msra.mxu0 %v76
  %1304 = vmatprep.subr.mxu0 0.0
  %1305 = vmatpush1.msra.mxu0 0.0
  %1306 = vmatprep.subr.mxu0 0.0
  %1307 = vmatpush1.msra.mxu0 0.0
  %1308 = vmatprep.subr.mxu0 0.0
  %1309 = vmatpush1.msra.mxu0 0.0
  %1310 = vmatprep.subr.mxu0 0.0
  %1311 = vmatpush1.msra.mxu0 0.0
  %1312 = vmatprep.subr.mxu0 0.0
  %1313 = vmatpush1.msra.mxu0 0.0
  %1314 = vmatprep.subr.mxu0 0.0
  %1315 = vmatpush1.msra.mxu0 0.0
  %1316 = vmatprep.subr.mxu0 0.0
  %1317 = vmatpush1.msra.mxu0 0.0
  %1318 = vmatprep.subr.mxu0 0.0
  %1319 = vmatpush1.msra.mxu0 0.0
  %1320 = vmatprep.subr.mxu0 0.0
  %1321 = vmatpush1.msra.mxu0 0.0
  %1322 = vmatprep.subr.mxu0 0.0
  %1323 = vmatpush1.msra.mxu0 0.0
  %1324 = vmatprep.subr.mxu0 0.0
  %1325 = vmatpush1.msra.mxu0 0.0
  %1326 = vmatprep.subr.mxu0 0.0
  %1327 = vmatpush1.msra.mxu0 0.0
  %1328 = vmatprep.subr.mxu0 0.0
  %1329 = vmatpush1.msra.mxu0 0.0
  %1330 = vmatprep.subr.mxu0 0.0
  %1331 = vmatpush1.msra.mxu0 0.0
  %1332 = vmatprep.subr.mxu0 0.0
  %1333 = vmatpush1.msra.mxu0 0.0
  %1334 = vmatprep.subr.mxu0 0.0
  %1335 = vmatpush1.msra.mxu0 0.0
  %1336 = vmatprep.mubr.f32.mxu0 0.0
  %1337 = vmatmul.mubr.f32.gmra.mrb[0].mxu0 %v1265
  %v1338 = vpop.f32.mrb[0].mxu0
  %v1339 = vadd.f32 0.0, %v1338
  %v1340 = vpop.f32.mrb[0].mxu0
  %v1341 = vadd.f32 0.0, %v1340
  %1342 = vdwg.mxu0
  %1343 = vmatprep.subr.mxu0 0.0
  %1344 = vmatpush1.msra.mxu0 %v33
  %1345 = vmatprep.subr.mxu0 0.0
  %1346 = vmatpush1.msra.mxu0 %v36
  %1347 = vmatprep.subr.mxu0 0.0
  %1348 = vmatpush1.msra.mxu0 %v39
  %1349 = vmatprep.subr.mxu0 0.0
  %1350 = vmatpush1.msra.mxu0 %v42
  %1351 = vmatprep.subr.mxu0 0.0
  %1352 = vmatpush1.msra.mxu0 %v45
  %1353 = vmatprep.subr.mxu0 0.0
  %1354 = vmatpush1.msra.mxu0 %v48
  %1355 = vmatprep.subr.mxu0 0.0
  %1356 = vmatpush1.msra.mxu0 %v51
  %1357 = vmatprep.subr.mxu0 0.0
  %1358 = vmatpush1.msra.mxu0 %v54
  %1359 = vmatprep.subr.mxu0 0.0
  %1360 = vmatpush1.msra.mxu0 %v57
  %1361 = vmatprep.subr.mxu0 0.0
  %1362 = vmatpush1.msra.mxu0 %v60
  %1363 = vmatprep.subr.mxu0 0.0
  %1364 = vmatpush1.msra.mxu0 %v63
  %1365 = vmatprep.subr.mxu0 0.0
  %1366 = vmatpush1.msra.mxu0 %v66
  %1367 = vmatprep.subr.mxu0 0.0
  %1368 = vmatpush1.msra.mxu0 %v69
  %1369 = vmatprep.subr.mxu0 0.0
  %1370 = vmatpush1.msra.mxu0 %v72
  %1371 = vmatprep.subr.mxu0 0.0
  %1372 = vmatpush1.msra.mxu0 %v75
  %1373 = vmatprep.subr.mxu0 0.0
  %1374 = vmatpush1.msra.mxu0 %v78
  %1375 = vmatprep.subr.mxu0 0.0
  %1376 = vmatpush1.msra.mxu0 0.0
  %1377 = vmatprep.subr.mxu0 0.0
  %1378 = vmatpush1.msra.mxu0 0.0
  %1379 = vmatprep.subr.mxu0 0.0
  %1380 = vmatpush1.msra.mxu0 0.0
  %1381 = vmatprep.subr.mxu0 0.0
  %1382 = vmatpush1.msra.mxu0 0.0
  %1383 = vmatprep.subr.mxu0 0.0
  %1384 = vmatpush1.msra.mxu0 0.0
  %1385 = vmatprep.subr.mxu0 0.0
  %1386 = vmatpush1.msra.mxu0 0.0
  %1387 = vmatprep.subr.mxu0 0.0
  %1388 = vmatpush1.msra.mxu0 0.0
  %1389 = vmatprep.subr.mxu0 0.0
  %1390 = vmatpush1.msra.mxu0 0.0
  %1391 = vmatprep.subr.mxu0 0.0
  %1392 = vmatpush1.msra.mxu0 0.0
  %1393 = vmatprep.subr.mxu0 0.0
  %1394 = vmatpush1.msra.mxu0 0.0
  %1395 = vmatprep.subr.mxu0 0.0
  %1396 = vmatpush1.msra.mxu0 0.0
  %1397 = vmatprep.subr.mxu0 0.0
  %1398 = vmatpush1.msra.mxu0 0.0
  %1399 = vmatprep.subr.mxu0 0.0
  %1400 = vmatpush1.msra.mxu0 0.0
  %1401 = vmatprep.subr.mxu0 0.0
  %1402 = vmatpush1.msra.mxu0 0.0
  %1403 = vmatprep.subr.mxu0 0.0
  %1404 = vmatpush1.msra.mxu0 0.0
  %1405 = vmatprep.subr.mxu0 0.0
  %1406 = vmatpush1.msra.mxu0 0.0
  %1407 = vmatprep.mubr.f32.mxu0 0.0
  %1408 = vmatmul.mubr.f32.gmra.mrb[0].mxu0 %v1265
  %v1409 = vpop.f32.mrb[0].mxu0
  %v1410 = vadd.f32 0.0, %v1409
  %v1411 = vpop.f32.mrb[0].mxu0
  %1412 = vdwg.mxu0
  %v1413 = vadd.f32 %v1269, %v1339
  %v1414 = vxor.u32 %v1413, 2147483648
  %v1415 = vmul.f32 %v1414, 1.442695
  %v1416 = vpow.pop %v1415
  %v1417 = vadd.f32 %v1416, 1.0
  %v1418 = vrcp.pop %v1417
  %v1419 = vmul.f32 1.0, %v1418
  %v1420 = vadd.f32 %v1270, %v1341
  %v1421 = vxor.u32 %v1420, 2147483648
  %v1422 = vmul.f32 %v1421, 1.442695
  %v1423 = vpow.pop %v1422
  %v1424 = vadd.f32 %v1423, 1.0
  %v1425 = vrcp.pop %v1424
  %v1426 = vmul.f32 1.0, %v1425
  %v1427 = vadd.f32 %v1410, %v84
  %v1428 = vmul.f32 %v1419, %v1427
  %v1429 = vadd.f32 %v1271, %v1428
  %v1430 = vtanh.pop %v1429
  %v1431 = vsub.f32 1.0, %v1426
  %v1432 = vmul.f32 %v1431, %v1430
  %v1433 = vmul.f32 %v1426, %v1265
  %v1434 = vadd.f32 %v1432, %v1433
  %s1435 = scalar_lea.vmem [#allocation3], 56
  %1436 = vst [vmem:[%s1435] sm:$0xff] %v1434
  %1437 = vst [vmem:[#allocation2] sm:$0xff] %v1434
  %v1438 = vld [vmem:[#allocation3] sm:$0xff]
  %v1439 = vld [vmem:[#allocation3 + $0x8] sm:$0xff]
  %v1440 = vld [vmem:[#allocation3 + $0x10] sm:$0xff]
  %v1441 = vld [vmem:[#allocation3 + $0x18] sm:$0xff]
  %v1442 = vld [vmem:[#allocation3 + $0x20] sm:$0xff]
  %v1443 = vld [vmem:[#allocation3 + $0x28] sm:$0xff]
  %v1444 = vld [vmem:[#allocation3 + $0x30] sm:$0xff]
  %v1445 = vld [vmem:[#allocation3 + $0x38] sm:$0xff]
  %v1446 = vld [vmem:[%s4] sm:$0xff]
  %v1447 = vld [vmem:[%s4 + $0x8] sm:$0xff]
  %v1448 = vld [vmem:[%s4 + $0x10] sm:$0xff]
  %v1449 = vld [vmem:[%s4 + $0x18] sm:$0xff]
  %v1450 = vld [vmem:[%s4 + $0x20] sm:$0xff]
  %v1451 = vld [vmem:[%s4 + $0x28] sm:$0xff]
  %v1452 = vld [vmem:[%s4 + $0x30] sm:$0xff]
  %v1453 = vld [vmem:[%s4 + $0x38] sm:$0xff]
  %v1454 = vld [vmem:[%s4 + $0x40] sm:$0xff]
  %v1455 = vld [vmem:[%s4 + $0x48] sm:$0xff]
  %v1456 = vld [vmem:[%s4 + $0x50] sm:$0xff]
  %v1457 = vld [vmem:[%s4 + $0x58] sm:$0xff]
  %v1458 = vld [vmem:[%s4 + $0x60] sm:$0xff]
  %v1459 = vld [vmem:[%s4 + $0x68] sm:$0xff]
  %v1460 = vld [vmem:[%s4 + $0x70] sm:$0xff]
  %v1461 = vld [vmem:[%s4 + $0x78] sm:$0xff]
  %v1462 = vld [vmem:[%s5] sm:$0x1]
  %v1464 = vlaneseq
  %v1465 = vshrl.u32 %v1464, 7
  %v1466 = vsub.s32 0, %v1465
  %v1467 = vrot.slane %v1462, %v1466
  %1469 = vmatprep.subr.mxu0 0.0
  %1470 = vmatpush1.msra.mxu0 %v1446
  %1471 = vmatprep.subr.mxu0 0.0
  %1472 = vmatpush1.msra.mxu0 %v1447
  %1473 = vmatprep.subr.mxu0 0.0
  %1474 = vmatpush1.msra.mxu0 %v1448
  %1475 = vmatprep.subr.mxu0 0.0
  %1476 = vmatpush1.msra.mxu0 %v1449
  %1477 = vmatprep.subr.mxu0 0.0
  %1478 = vmatpush1.msra.mxu0 %v1450
  %1479 = vmatprep.subr.mxu0 0.0
  %1480 = vmatpush1.msra.mxu0 %v1451
  %1481 = vmatprep.subr.mxu0 0.0
  %1482 = vmatpush1.msra.mxu0 %v1452
  %1483 = vmatprep.subr.mxu0 0.0
  %1484 = vmatpush1.msra.mxu0 %v1453
  %1485 = vmatprep.subr.mxu0 0.0
  %1486 = vmatpush1.msra.mxu0 %v1454
  %1487 = vmatprep.subr.mxu0 0.0
  %1488 = vmatpush1.msra.mxu0 %v1455
  %1489 = vmatprep.subr.mxu0 0.0
  %1490 = vmatpush1.msra.mxu0 %v1456
  %1491 = vmatprep.subr.mxu0 0.0
  %1492 = vmatpush1.msra.mxu0 %v1457
  %1493 = vmatprep.subr.mxu0 0.0
  %1494 = vmatpush1.msra.mxu0 %v1458
  %1495 = vmatprep.subr.mxu0 0.0
  %1496 = vmatpush1.msra.mxu0 %v1459
  %1497 = vmatprep.subr.mxu0 0.0
  %1498 = vmatpush1.msra.mxu0 %v1460
  %1499 = vmatprep.subr.mxu0 0.0
  %1500 = vmatpush1.msra.mxu0 %v1461
  %1501 = vmatprep.subr.mxu0 0.0
  %1502 = vmatpush1.msra.mxu0 0.0
  %1503 = vmatprep.subr.mxu0 0.0
  %1504 = vmatpush1.msra.mxu0 0.0
  %1505 = vmatprep.subr.mxu0 0.0
  %1506 = vmatpush1.msra.mxu0 0.0
  %1507 = vmatprep.subr.mxu0 0.0
  %1508 = vmatpush1.msra.mxu0 0.0
  %1509 = vmatprep.subr.mxu0 0.0
  %1510 = vmatpush1.msra.mxu0 0.0
  %1511 = vmatprep.subr.mxu0 0.0
  %1512 = vmatpush1.msra.mxu0 0.0
  %1513 = vmatprep.subr.mxu0 0.0
  %1514 = vmatpush1.msra.mxu0 0.0
  %1515 = vmatprep.subr.mxu0 0.0
  %1516 = vmatpush1.msra.mxu0 0.0
  %1517 = vmatprep.subr.mxu0 0.0
  %1518 = vmatpush1.msra.mxu0 0.0
  %1519 = vmatprep.subr.mxu0 0.0
  %1520 = vmatpush1.msra.mxu0 0.0
  %1521 = vmatprep.subr.mxu0 0.0
  %1522 = vmatpush1.msra.mxu0 0.0
  %1523 = vmatprep.subr.mxu0 0.0
  %1524 = vmatpush1.msra.mxu0 0.0
  %1525 = vmatprep.subr.mxu0 0.0
  %1526 = vmatpush1.msra.mxu0 0.0
  %1527 = vmatprep.subr.mxu0 0.0
  %1528 = vmatpush1.msra.mxu0 0.0
  %1529 = vmatprep.subr.mxu0 0.0
  %1530 = vmatpush1.msra.mxu0 0.0
  %1531 = vmatprep.subr.mxu0 0.0
  %1532 = vmatpush1.msra.mxu0 0.0
  %1533 = vmatprep.mubr.f32.mxu0 0.0
  %1534 = vmatmul.mubr.f32.gmra.mrb[0].mxu0 %v1438
  %v1535 = vpop.f32.mrb[0].mxu0
  %v1536 = vadd.f32 %v1467, %v1535
  %v1537 = vpop.f32.mrb[0].mxu0
  %1538 = vmatprep.mubr.f32.mxu0 0.0
  %1539 = vmatmul.mubr.f32.gmra.mrb[0].mxu0 %v1439
  %v1540 = vpop.f32.mrb[0].mxu0
  %v1541 = vadd.f32 %v1467, %v1540
  %v1542 = vpop.f32.mrb[0].mxu0
  %1543 = vmatprep.mubr.f32.mxu0 0.0
  %1544 = vmatmul.mubr.f32.gmra.mrb[0].mxu0 %v1440
  %v1545 = vpop.f32.mrb[0].mxu0
  %v1546 = vadd.f32 %v1467, %v1545
  %v1547 = vpop.f32.mrb[0].mxu0
  %1548 = vmatprep.mubr.f32.mxu0 0.0
  %1549 = vmatmul.mubr.f32.gmra.mrb[0].mxu0 %v1441
  %v1550 = vpop.f32.mrb[0].mxu0
  %v1551 = vadd.f32 %v1467, %v1550
  %v1552 = vpop.f32.mrb[0].mxu0
  %1553 = vmatprep.mubr.f32.mxu0 0.0
  %1554 = vmatmul.mubr.f32.gmra.mrb[0].mxu0 %v1442
  %v1555 = vpop.f32.mrb[0].mxu0
  %v1556 = vadd.f32 %v1467, %v1555
  %v1557 = vpop.f32.mrb[0].mxu0
  %1558 = vmatprep.mubr.f32.mxu0 0.0
  %1559 = vmatmul.mubr.f32.gmra.mrb[0].mxu0 %v1443
  %v1560 = vpop.f32.mrb[0].mxu0
  %v1561 = vadd.f32 %v1467, %v1560
  %v1562 = vpop.f32.mrb[0].mxu0
  %1563 = vmatprep.mubr.f32.mxu0 0.0
  %1564 = vmatmul.mubr.f32.gmra.mrb[0].mxu0 %v1444
  %v1565 = vpop.f32.mrb[0].mxu0
  %v1566 = vadd.f32 %v1467, %v1565
  %v1567 = vpop.f32.mrb[0].mxu0
  %1568 = vmatprep.mubr.f32.mxu0 0.0
  %1569 = vmatmul.mubr.f32.gmra.mrb[0].mxu0 %v1445
  %v1570 = vpop.f32.mrb[0].mxu0
  %v1571 = vadd.f32 %v1467, %v1570
  %v1572 = vpop.f32.mrb[0].mxu0
  %1573 = vdwg.mxu0
  %1574 = vst [vmem:[%s6] sm:$0xff] %v1536
  %1575 = vst [vmem:[%s6 + $0x8] sm:$0xff] %v1541
  %1576 = vst [vmem:[%s6 + $0x10] sm:$0xff] %v1546
  %1577 = vst [vmem:[%s6 + $0x18] sm:$0xff] %v1551
  %1578 = vst [vmem:[%s6 + $0x20] sm:$0xff] %v1556
  %1579 = vst [vmem:[%s6 + $0x28] sm:$0xff] %v1561
  %1580 = vst [vmem:[%s6 + $0x30] sm:$0xff] %v1566
  %1581 = vst [vmem:[%s6 + $0x38] sm:$0xff] %v1571
  // Predicated region
  $region30: #{reco_gru_flux_forward.3} parent=0 // pred_check
    %p1582 = pneg %p25
  $region31: #{reco_gru_flux_forward.3} parent=0 // pred_check_branch
    %1584 = sbr.rel (%p1582) target = $region33
  $region32: #{reco_gru_flux_forward.3} parent=0 // pred_region
    %1585 = vst [vmem:[%s7] sm:$0xff] %v1434
  $region33: #{reco_gru_flux_forward.3} parent=0 // pred_fallthru
    _
  // Predicated region
  $region34: #{reco_gru_flux_forward.3} parent=0 // pred_check
    _
  $region35: #{reco_gru_flux_forward.3} parent=0 // pred_check_branch
    %1587 = sbr.rel (0) target = $region37
  $region36: #{reco_gru_flux_forward.3} parent=0 // pred_region
    _
  $region37: #{reco_gru_flux_forward.3} parent=0 // pred_fallthru
    _
  // Predicated region
  $region38: #{reco_gru_flux_forward.3} parent=0 // pred_check
    _
  $region39: #{reco_gru_flux_forward.3} parent=0 // pred_check_branch
    %1589 = sbr.rel (0) target = $region41
  $region40: #{reco_gru_flux_forward.3} parent=0 // pred_region
    _
  $region41: #{reco_gru_flux_forward.3} parent=0 // pred_fallthru
    _
  // Predicated region
  $region42: #{reco_gru_flux_forward.3} parent=0 // pred_check
    _
  $region43: #{reco_gru_flux_forward.3} parent=0 // pred_check_branch
    %1591 = sbr.rel (0) target = $region45
  $region44: #{reco_gru_flux_forward.3} parent=0 // pred_region
    _
  $region45: #{reco_gru_flux_forward.3} parent=0 // pred_fallthru
    _
  // Predicated region
  $region46: #{reco_gru_flux_forward.3} parent=0 // pred_check
    _
  $region47: #{reco_gru_flux_forward.3} parent=0 // pred_check_branch
    %1593 = sbr.rel (0) target = $region49
  $region48: #{reco_gru_flux_forward.3} parent=0 // pred_region
    _
  $region49: #{reco_gru_flux_forward.3} parent=0 // pred_fallthru
    _

</llo_original>
